<compile_context>
chip_gen: v7x
topology: tpu7x:2x2x1
jax: 0.10.0
libtpu: 0.0.40
codegen_flags: <defaults>
</compile_context>

<pallas_src>
import math

import jax
import jax.numpy as jnp
import numpy as np
from jax.experimental import pallas as pl
from jax.experimental.pallas import tpu as pltpu


def _make_head_kernel(act_dtype):
    """act_dtype: dtype for the tanh activation (bf16 on v6e/v7x, f32 on v5e)."""

    def _head_kernel(hr_ref, hs_ref, w1_ref, b1_ref, w2_ref, fcw_ref, fcb_ref, out_ref):
        """One grid step: attention-pool both inputs for a batch tile, then fc.

        hr_ref : (Bt, S, H)  f32   reviews last_hidden_states tile
        hs_ref : (Bt, S, H)  f32   summarys last_hidden_states tile
        w1_ref : (H, A)      bf16  attention Linear(H, 512) weight
        b1_ref : (1, A)      f32   attention Linear(H, 512) bias
        w2_ref : (1, 1, A)   f32   attention Linear(512, 1) weight (bias dropped:
                                   softmax is shift-invariant)
        fcw_ref: (2, H, T)   bf16  fc weight halves [W_a (reviews), W_b (summarys)]
        fcb_ref: (1, T)      f32   fc bias
        out_ref: (Bt, T)     f32
        """
        bt, seq, hid = hr_ref.shape
        att = w1_ref.shape[-1]

        w1 = w1_ref[...]                          # (H, A)  bf16
        b1 = b1_ref[...]                          # (1, A)  f32
        w2 = w2_ref[...]                          # (1, 1, A) f32

        def pool(h_ref):
            h = h_ref[...].astype(jnp.bfloat16)   # (Bt, S, H) cast on VPU
            hm = h.reshape(bt * seq, hid)         # (M, H): one big-M MXU matmul
            # Linear(H, 512): bf16 operands, f32 accumulation, + bias.
            acc = jnp.dot(hm, w1, preferred_element_type=jnp.float32) + b1
            t = jnp.tanh(acc.astype(act_dtype))   # (M, A) on the EUP
            t3 = t.reshape(bt, seq, att)          # (Bt, S, A)
            # Linear(512, 1): VPU multiply + lane-reduce over A -> scores (Bt, S).
            s = jnp.sum(t3.astype(jnp.float32) * w2, axis=-1)
            # Softmax over the sequence (lane) axis, exact normalization.
            s = s - jnp.max(s, axis=-1, keepdims=True)
            e = jnp.exp(s)
            p = e / jnp.sum(e, axis=-1, keepdims=True)
            # Weighted sum over the sequence as a batched MXU matmul -> (Bt, H).
            f3 = jnp.einsum(
                "bqs,bsh->bqh",
                p.reshape(bt, 1, seq).astype(jnp.bfloat16),
                h,
                preferred_element_type=jnp.float32,
            )
            return f3.reshape(bt, hid)            # (Bt, H) f32

        f_rev = pool(hr_ref)
        f_sum = pool(hs_ref)

        # fc over concat(f_rev, f_sum): two plain M=Bt matmuls (no per-row weights).
        o = (
            jnp.dot(f_rev.astype(jnp.bfloat16), fcw_ref[0],
                    preferred_element_type=jnp.float32)
            + jnp.dot(f_sum.astype(jnp.bfloat16), fcw_ref[1],
                      preferred_element_type=jnp.float32)
            + fcb_ref[...]
        )
        out_ref[...] = o.astype(out_ref.dtype)

    return _head_kernel


def _tpu_generation():
    """Best-effort TPU generation (5, 6, 7) from device_kind; None if unknown."""
    try:
        kind = jax.devices()[0].device_kind.lower().replace(" ", "")
    except Exception:
        return None
    for gen in (7, 6, 5):
        if f"v{gen}" in kind or f"tpu{gen}" in kind:
            return gen
    if "trillium" in kind:
        return 6
    return None


def _pick_b_tile(batch, gen):
    # Single-TC chips (v5e/v6e): grid=1 — splitting only adds per-step overhead.
    if gen != 7 or batch < 2:
        return batch
    # v7x: 2 TensorCores -> want >= 2 "parallel" grid steps; cap rows per step at 8.
    # (With backbone-scale S/H, lower the cap to 4 to stay inside 64 MiB VMEM.)
    cap = min(8, batch // 2)
    for bt in range(cap, 0, -1):
        if batch % bt == 0:
            return bt
    return 1


def custom_model_head(h_reviews, h_summarys, params, *, b_tile=None):
    """h_reviews, h_summarys: [B, S, H] last_hidden_states (f32). Returns [B, T]."""
    B, S, H = h_reviews.shape
    A = params["attn_w1"].shape[-1]           # 512
    T = params["fc_w"].shape[-1]
    assert params["fc_w"].shape[0] == 2 * H

    gen = _tpu_generation()
    if b_tile is None:
        b_tile = _pick_b_tile(B, gen)
    assert B % b_tile == 0

    act_dtype = jnp.bfloat16 if gen in (6, 7) else jnp.float32   # bf16 EUP on v6e/v7x
    cdt = jnp.bfloat16

    w1 = params["attn_w1"].astype(cdt)                                  # (H, A)
    b1 = params["attn_b1"].reshape(1, A).astype(jnp.float32)            # (1, A)
    w2 = params["attn_w2"].reshape(1, 1, A).astype(jnp.float32)         # (1, 1, A)
    fcw = jnp.stack([params["fc_w"][:H], params["fc_w"][H:]], axis=0).astype(cdt)  # (2,H,T)
    fcb = params["fc_b"].reshape(1, T).astype(jnp.float32)              # (1, T)

    grid_spec = pltpu.PrefetchScalarGridSpec(
        num_scalar_prefetch=0,
        grid=(B // b_tile,),
        in_specs=[
            pl.BlockSpec((b_tile, S, H), lambda i: (i, 0, 0)),   # reviews hidden
            pl.BlockSpec((b_tile, S, H), lambda i: (i, 0, 0)),   # summarys hidden
            pl.BlockSpec((H, A), lambda i: (0, 0)),              # attn W1
            pl.BlockSpec((1, A), lambda i: (0, 0)),              # attn b1
            pl.BlockSpec((1, 1, A), lambda i: (0, 0, 0)),        # attn w2 (unreplicated)
            pl.BlockSpec((2, H, T), lambda i: (0, 0, 0)),        # fc weight halves
            pl.BlockSpec((1, T), lambda i: (0, 0)),              # fc bias
        ],
        out_specs=pl.BlockSpec((b_tile, T), lambda i: (i, 0)),
    )

    if gen == 7:
        vmem_limit = 48 * 1024 * 1024      # headroom inside v7x's 64 MiB per-TC VMEM
    elif gen in (5, 6):
        vmem_limit = 96 * 1024 * 1024      # 128 MiB physical VMEM
    else:
        vmem_limit = None                  # unknown chip: keep the compiler default

    out = pl.pallas_call(
        _make_head_kernel(act_dtype),
        grid_spec=grid_spec,
        out_shape=jax.ShapeDtypeStruct((B, T), jnp.float32),
        compiler_params=pltpu.CompilerParams(
            dimension_semantics=("parallel",),
            vmem_limit_bytes=vmem_limit,
        ),
    )(h_reviews, h_summarys, w1, b1, w2, fcw, fcb)
    return out


def reference_head(h_reviews, h_summarys, params):
    """Pure-JAX f32 reference mirroring the PyTorch forward (eval mode)."""
    def pool(h):
        t = jnp.tanh(h @ params["attn_w1"] + params["attn_b1"])   # [B,S,512]
        s = t @ params["attn_w2"] + params["attn_b2"]             # [B,S,1]
        w = jax.nn.softmax(s, axis=1)
        return jnp.sum(w * h, axis=1)                             # [B,H]
    f = jnp.concatenate([pool(h_reviews), pool(h_summarys)], axis=1)  # [B,2H]
    return f @ params["fc_w"] + params["fc_b"]                        # [B,T]


def init_params(key, hidden_size, attn_hidden, target_size, initializer_range=0.02):
    # matches _init_weights: weight ~ N(0, initializer_range), bias = 0
    k1, k2, k3 = jax.random.split(key, 3)
    return dict(
        attn_w1=initializer_range * jax.random.normal(k1, (hidden_size, attn_hidden), jnp.float32),
        attn_b1=jnp.zeros((attn_hidden,), jnp.float32),
        attn_w2=initializer_range * jax.random.normal(k2, (attn_hidden, 1), jnp.float32),
        attn_b2=jnp.zeros((), jnp.float32),
        fc_w=initializer_range * jax.random.normal(k3, (2 * hidden_size, target_size), jnp.float32),
        fc_b=jnp.zeros((target_size,), jnp.float32),
    )


if __name__ == "__main__":
    B, S, H, T = 16, 16, 64, 8   # batch, seq, hidden_size, target_size
    A = 512                      # attention MLP width (fixed in the module)

    key = jax.random.PRNGKey(0)
    kp, kr, ks = jax.random.split(key, 3)
    params = init_params(kp, H, A, T)

    h_reviews = jax.random.normal(kr, (B, S, H), jnp.float32)
    h_summarys = jax.random.normal(ks, (B, S, H), jnp.float32)

    out = custom_model_head(h_reviews, h_summarys, params)
    out = jax.block_until_ready(out)

    ref = reference_head(h_reviews, h_summarys, params)
    # bf16 matmul operands (f32 accumulation) -> relaxed tolerance vs f32 reference.
    np.testing.assert_allclose(np.asarray(out), np.asarray(ref), rtol=2e-2, atol=5e-3)

    print("KERNEL_OK")
</pallas_src>

<mosaic_0001>
module attributes {stable_mosaic.version = 11 : i64} {
  func.func @_head_kernel(%arg0: i32, %arg1: memref<16x16x64xf32, #tpu.memory_space<vmem>>, %arg2: memref<16x16x64xf32, #tpu.memory_space<vmem>>, %arg3: memref<64x512xbf16, #tpu.memory_space<vmem>>, %arg4: memref<1x512xf32, #tpu.memory_space<vmem>>, %arg5: memref<1x1x512xf32, #tpu.memory_space<vmem>>, %arg6: memref<2x64x8xbf16, #tpu.memory_space<vmem>>, %arg7: memref<1x8xf32, #tpu.memory_space<vmem>>, %arg8: memref<16x8xf32, #tpu.memory_space<vmem>>) attributes {dimension_semantics = [#tpu.dimension_semantics<parallel>], iteration_bounds = array<i64: 1>, scalar_prefetch = 0 : i64, scratch_operands = 0 : i64, tpu.core_type = #tpu.core_type<tc>, window_params = [{transform_indices = @transform_0, window_bounds = array<i64: 16, 16, 64>}, {transform_indices = @transform_1, window_bounds = array<i64: 16, 16, 64>}, {pipeline_mode = #tpu.pipeline_mode<synchronous>, transform_indices = @transform_2, window_bounds = array<i64: 64, 512>}, {pipeline_mode = #tpu.pipeline_mode<synchronous>, transform_indices = @transform_3, window_bounds = array<i64: 1, 512>}, {pipeline_mode = #tpu.pipeline_mode<synchronous>, transform_indices = @transform_4, window_bounds = array<i64: 1, 1, 512>}, {pipeline_mode = #tpu.pipeline_mode<synchronous>, transform_indices = @transform_5, window_bounds = array<i64: 2, 64, 8>}, {pipeline_mode = #tpu.pipeline_mode<synchronous>, transform_indices = @transform_6, window_bounds = array<i64: 1, 8>}, {transform_indices = @transform_7, window_bounds = array<i64: 16, 8>}]} {
    %c0 = arith.constant 0 : index
    %c0_0 = arith.constant 0 : index
    %0 = vector.load %arg3[%c0, %c0_0] : memref<64x512xbf16, #tpu.memory_space<vmem>>, vector<64x512xbf16>
    %c0_1 = arith.constant 0 : index
    %c0_2 = arith.constant 0 : index
    %1 = vector.load %arg4[%c0_1, %c0_2] : memref<1x512xf32, #tpu.memory_space<vmem>>, vector<1x512xf32>
    %c0_3 = arith.constant 0 : index
    %c0_4 = arith.constant 0 : index
    %c0_5 = arith.constant 0 : index
    %2 = vector.load %arg5[%c0_3, %c0_4, %c0_5] : memref<1x1x512xf32, #tpu.memory_space<vmem>>, vector<1x1x512xf32>
    %c0_6 = arith.constant 0 : index
    %c0_7 = arith.constant 0 : index
    %c0_8 = arith.constant 0 : index
    %3 = vector.load %arg1[%c0_6, %c0_7, %c0_8] : memref<16x16x64xf32, #tpu.memory_space<vmem>>, vector<16x16x64xf32>
    %4 = arith.truncf %3 : vector<16x16x64xf32> to vector<16x16x64xbf16>
    %5 = vector.shape_cast %4 : vector<16x16x64xbf16> to vector<256x64xbf16>
    %cst = arith.constant dense<0.000000e+00> : vector<256x512xf32>
    %6 = tpu.matmul %5, %0, %cst {dimension_numbers = #tpu.dot_dimension_numbers<[1], [0], [0], [1], [0, 0, 1, 1], [], []>} : vector<256x64xbf16>, vector<64x512xbf16>, vector<256x512xf32> -> vector<256x512xf32>
    %7 = vector.broadcast %1 : vector<1x512xf32> to vector<256x512xf32>
    %8 = arith.addf %6, %7 : vector<256x512xf32>
    %9 = math.tanh %8 : vector<256x512xf32>
    %10 = vector.shape_cast %9 : vector<256x512xf32> to vector<16x16x512xf32>
    %11 = vector.broadcast %2 : vector<1x1x512xf32> to vector<16x16x512xf32>
    %12 = arith.mulf %10, %11 : vector<16x16x512xf32>
    %cst_9 = arith.constant dense<0.000000e+00> : vector<16x16xf32>
    %13 = vector.multi_reduction <add>, %12, %cst_9 [2] : vector<16x16x512xf32> to vector<16x16xf32>
    %cst_10 = arith.constant dense<0xFF800000> : vector<16xf32>
    %14 = vector.multi_reduction <maximumf>, %13, %cst_10 [1] : vector<16x16xf32> to vector<16xf32>
    %15 = vector.shape_cast %14 : vector<16xf32> to vector<16x1xf32>
    %16 = vector.broadcast %15 : vector<16x1xf32> to vector<16x16xf32>
    %17 = arith.subf %13, %16 : vector<16x16xf32>
    %18 = math.exp %17 : vector<16x16xf32>
    %cst_11 = arith.constant dense<0.000000e+00> : vector<16xf32>
    %19 = vector.multi_reduction <add>, %18, %cst_11 [1] : vector<16x16xf32> to vector<16xf32>
    %20 = vector.shape_cast %19 : vector<16xf32> to vector<16x1xf32>
    %21 = vector.broadcast %20 : vector<16x1xf32> to vector<16x16xf32>
    %22 = arith.divf %18, %21 : vector<16x16xf32>
    %23 = vector.shape_cast %22 : vector<16x16xf32> to vector<16x1x16xf32>
    %24 = arith.truncf %23 : vector<16x1x16xf32> to vector<16x1x16xbf16>
    "tpu.trace_start"() <{level = 10 : i32, message = "bqs,bsh->bqh"}> : () -> ()
    %cst_12 = arith.constant dense<0.000000e+00> : vector<16x1x64xf32>
    %25 = tpu.matmul %24, %4, %cst_12 {dimension_numbers = #tpu.dot_dimension_numbers<[2], [1], [1], [2], [0, 0, 0, 1, 1, 2], [0], [0]>} : vector<16x1x16xbf16>, vector<16x16x64xbf16>, vector<16x1x64xf32> -> vector<16x1x64xf32>
    "tpu.trace_stop"() : () -> ()
    %26 = vector.shape_cast %25 : vector<16x1x64xf32> to vector<16x64xf32>
    %c0_13 = arith.constant 0 : index
    %c0_14 = arith.constant 0 : index
    %c0_15 = arith.constant 0 : index
    %27 = vector.load %arg2[%c0_13, %c0_14, %c0_15] : memref<16x16x64xf32, #tpu.memory_space<vmem>>, vector<16x16x64xf32>
    %28 = arith.truncf %27 : vector<16x16x64xf32> to vector<16x16x64xbf16>
    %29 = vector.shape_cast %28 : vector<16x16x64xbf16> to vector<256x64xbf16>
    %cst_16 = arith.constant dense<0.000000e+00> : vector<256x512xf32>
    %30 = tpu.matmul %29, %0, %cst_16 {dimension_numbers = #tpu.dot_dimension_numbers<[1], [0], [0], [1], [0, 0, 1, 1], [], []>} : vector<256x64xbf16>, vector<64x512xbf16>, vector<256x512xf32> -> vector<256x512xf32>
    %31 = vector.broadcast %1 : vector<1x512xf32> to vector<256x512xf32>
    %32 = arith.addf %30, %31 : vector<256x512xf32>
    %33 = math.tanh %32 : vector<256x512xf32>
    %34 = vector.shape_cast %33 : vector<256x512xf32> to vector<16x16x512xf32>
    %35 = vector.broadcast %2 : vector<1x1x512xf32> to vector<16x16x512xf32>
    %36 = arith.mulf %34, %35 : vector<16x16x512xf32>
    %cst_17 = arith.constant dense<0.000000e+00> : vector<16x16xf32>
    %37 = vector.multi_reduction <add>, %36, %cst_17 [2] : vector<16x16x512xf32> to vector<16x16xf32>
    %cst_18 = arith.constant dense<0xFF800000> : vector<16xf32>
    %38 = vector.multi_reduction <maximumf>, %37, %cst_18 [1] : vector<16x16xf32> to vector<16xf32>
    %39 = vector.shape_cast %38 : vector<16xf32> to vector<16x1xf32>
    %40 = vector.broadcast %39 : vector<16x1xf32> to vector<16x16xf32>
    %41 = arith.subf %37, %40 : vector<16x16xf32>
    %42 = math.exp %41 : vector<16x16xf32>
    %cst_19 = arith.constant dense<0.000000e+00> : vector<16xf32>
    %43 = vector.multi_reduction <add>, %42, %cst_19 [1] : vector<16x16xf32> to vector<16xf32>
    %44 = vector.shape_cast %43 : vector<16xf32> to vector<16x1xf32>
    %45 = vector.broadcast %44 : vector<16x1xf32> to vector<16x16xf32>
    %46 = arith.divf %42, %45 : vector<16x16xf32>
    %47 = vector.shape_cast %46 : vector<16x16xf32> to vector<16x1x16xf32>
    %48 = arith.truncf %47 : vector<16x1x16xf32> to vector<16x1x16xbf16>
    "tpu.trace_start"() <{level = 10 : i32, message = "bqs,bsh->bqh"}> : () -> ()
    %cst_20 = arith.constant dense<0.000000e+00> : vector<16x1x64xf32>
    %49 = tpu.matmul %48, %28, %cst_20 {dimension_numbers = #tpu.dot_dimension_numbers<[2], [1], [1], [2], [0, 0, 0, 1, 1, 2], [0], [0]>} : vector<16x1x16xbf16>, vector<16x16x64xbf16>, vector<16x1x64xf32> -> vector<16x1x64xf32>
    "tpu.trace_stop"() : () -> ()
    %50 = vector.shape_cast %49 : vector<16x1x64xf32> to vector<16x64xf32>
    %51 = arith.truncf %26 : vector<16x64xf32> to vector<16x64xbf16>
    %c0_21 = arith.constant 0 : index
    %c0_22 = arith.constant 0 : index
    %c0_23 = arith.constant 0 : index
    %52 = vector.load %arg6[%c0_21, %c0_22, %c0_23] : memref<2x64x8xbf16, #tpu.memory_space<vmem>>, vector<1x64x8xbf16>
    %53 = vector.shape_cast %52 : vector<1x64x8xbf16> to vector<64x8xbf16>
    %cst_24 = arith.constant dense<0.000000e+00> : vector<16x8xf32>
    %54 = tpu.matmul %51, %53, %cst_24 {dimension_numbers = #tpu.dot_dimension_numbers<[1], [0], [0], [1], [0, 0, 1, 1], [], []>} : vector<16x64xbf16>, vector<64x8xbf16>, vector<16x8xf32> -> vector<16x8xf32>
    %55 = arith.truncf %50 : vector<16x64xf32> to vector<16x64xbf16>
    %c1 = arith.constant 1 : index
    %c0_25 = arith.constant 0 : index
    %c0_26 = arith.constant 0 : index
    %56 = vector.load %arg6[%c1, %c0_25, %c0_26] : memref<2x64x8xbf16, #tpu.memory_space<vmem>>, vector<1x64x8xbf16>
    %57 = vector.shape_cast %56 : vector<1x64x8xbf16> to vector<64x8xbf16>
    %cst_27 = arith.constant dense<0.000000e+00> : vector<16x8xf32>
    %58 = tpu.matmul %55, %57, %cst_27 {dimension_numbers = #tpu.dot_dimension_numbers<[1], [0], [0], [1], [0, 0, 1, 1], [], []>} : vector<16x64xbf16>, vector<64x8xbf16>, vector<16x8xf32> -> vector<16x8xf32>
    %59 = arith.addf %54, %58 : vector<16x8xf32>
    %c0_28 = arith.constant 0 : index
    %c0_29 = arith.constant 0 : index
    %60 = vector.load %arg7[%c0_28, %c0_29] : memref<1x8xf32, #tpu.memory_space<vmem>>, vector<1x8xf32>
    %61 = vector.broadcast %60 : vector<1x8xf32> to vector<16x8xf32>
    %62 = arith.addf %59, %61 : vector<16x8xf32>
    %c0_30 = arith.constant 0 : index
    %c0_31 = arith.constant 0 : index
    %63 = vector.load %arg8[%c0_30, %c0_31] : memref<16x8xf32, #tpu.memory_space<vmem>>, vector<16x8xf32>
    tpu.vector_store %arg8[%c0_30, %c0_31], %62 {strides = array<i32>} : memref<16x8xf32, #tpu.memory_space<vmem>>, vector<16x8xf32>,
    return
  }
  func.func @transform_0(%arg0: i32) -> (i32, i32, i32) {
    %c0_i32 = arith.constant 0 : i32
    %c0_i32_0 = arith.constant 0 : i32
    %c0_i32_1 = arith.constant 0 : i32
    return %arg0, %c0_i32, %c0_i32_0 : i32, i32, i32
  }
  func.func @transform_1(%arg0: i32) -> (i32, i32, i32) {
    %c0_i32 = arith.constant 0 : i32
    %c0_i32_0 = arith.constant 0 : i32
    %c0_i32_1 = arith.constant 0 : i32
    return %arg0, %c0_i32, %c0_i32_0 : i32, i32, i32
  }
  func.func @transform_2(%arg0: i32) -> (i32, i32) {
    %c0_i32 = arith.constant 0 : i32
    %c0_i32_0 = arith.constant 0 : i32
    %c0_i32_1 = arith.constant 0 : i32
    return %c0_i32, %c0_i32_0 : i32, i32
  }
  func.func @transform_3(%arg0: i32) -> (i32, i32) {
    %c0_i32 = arith.constant 0 : i32
    %c0_i32_0 = arith.constant 0 : i32
    %c0_i32_1 = arith.constant 0 : i32
    return %c0_i32, %c0_i32_0 : i32, i32
  }
  func.func @transform_4(%arg0: i32) -> (i32, i32, i32) {
    %c0_i32 = arith.constant 0 : i32
    %c0_i32_0 = arith.constant 0 : i32
    %c0_i32_1 = arith.constant 0 : i32
    %c0_i32_2 = arith.constant 0 : i32
    return %c0_i32, %c0_i32_0, %c0_i32_1 : i32, i32, i32
  }
  func.func @transform_5(%arg0: i32) -> (i32, i32, i32) {
    %c0_i32 = arith.constant 0 : i32
    %c0_i32_0 = arith.constant 0 : i32
    %c0_i32_1 = arith.constant 0 : i32
    %c0_i32_2 = arith.constant 0 : i32
    return %c0_i32, %c0_i32_0, %c0_i32_1 : i32, i32, i32
  }
  func.func @transform_6(%arg0: i32) -> (i32, i32) {
    %c0_i32 = arith.constant 0 : i32
    %c0_i32_0 = arith.constant 0 : i32
    %c0_i32_1 = arith.constant 0 : i32
    return %c0_i32, %c0_i32_0 : i32, i32
  }
  func.func @transform_7(%arg0: i32) -> (i32, i32) {
    %c0_i32 = arith.constant 0 : i32
    %c0_i32_0 = arith.constant 0 : i32
    return %arg0, %c0_i32 : i32, i32
  }
}

</mosaic_0001>

<llo_original>
// kernel: tpu_custom_call.1
$region0: #{tpu_custom_call.1}
  #allocation0 [shape = 'u32[]', space=smem, size = 0x4, offset = 0x4, fixed_abs, tag = 'smem constant byte address 0x4 - core index']
  #allocation1 [shape = 'u32[144,128]{1,0:T(1,128)}', space=vmem, size = 0x12000, scoped, tag = 'internal scratch']
  %s0 = inlined_call_operand.hbm [shape: f32[16,16,64], index: 0, kind: input, shape index: {}]
  %s1 = inlined_call_operand.hbm [shape: f32[16,16,64], index: 1, kind: input, shape index: {}]
  %s2 = inlined_call_operand.hbm [shape: bf16[64,512], index: 2, kind: input, shape index: {}]
  %s3 = inlined_call_operand.vmem [shape: f32[1,512], index: 3, kind: input, shape index: {}]
  %s4 = inlined_call_operand.vmem [shape: f32[1,1,512], index: 4, kind: input, shape index: {}]
  %s5 = inlined_call_operand.vmem [shape: bf16[2,64,8], index: 5, kind: input, shape index: {}]
  %s6 = inlined_call_operand.vmem [shape: f32[1,8], index: 6, kind: input, shape index: {}]
  %s7 = inlined_call_operand.vmem [shape: f32[16,8], index: 7, kind: output, shape index: {}]
  %s8 = sld [smem:[#allocation0]]
  $region50: #{tpu_custom_call.1} parent=0
    _
  %s10 = ssub.s32 1, %s8
  %s11 = scalar_select 0, %s10, %s8
  $region1: #{tpu_custom_call.1} parent=0
    #allocation2 [shape = 'u8[131072]{0}', space=vmem, size = 0x20000, scoped, tag = 'input window, operand 0, single buffered']
    #allocation3 [shape = 's32[1]{0}', space=sflag, size = 0x4, scoped, tag = 'scoped memory for tpu_custom_call.1']
    #allocation4 [shape = 'u8[131072]{0}', space=vmem, size = 0x20000, scoped, tag = 'input window, operand 1, single buffered']
    #allocation5 [shape = 's32[1]{0}', space=sflag, size = 0x4, scoped, tag = 'scoped memory for tpu_custom_call.1']
    #allocation6 [shape = 'u8[65536]{0}', space=vmem, size = 0x10000, scoped, tag = 'input window, operand 2, single buffered']
    %12 = vsyncpa [#allocation3], 0
    %13 = vsyncpa [#allocation5], 0
    // Predicated region
    $region2: #{tpu_custom_call.1} parent=1 // pred_check
      _
    $region3: #{tpu_custom_call.1} parent=1 // pred_check_branch
      %15 = sbr.rel (0) target = $region5
    $region4: #{tpu_custom_call.1} parent=1 // pred_region
      %s17 = ssub.s32 4096, 4096
      %18 = vsyncadd [#allocation3], %s17
      %s19 = sshll.u32 [#allocation2], 4
      %s20 = int_to_ptr.vmem [resolvable:$true] %s19
      %25 = dma.hbm_to_vmem [thread:$0]  %s0, 4096, %s20, [#allocation3], 128, 128, 8
    $region5: #{tpu_custom_call.1} parent=1 // pred_fallthru
      _
    // Predicated region
    $region6: #{tpu_custom_call.1} parent=1 // pred_check
      _
    $region7: #{tpu_custom_call.1} parent=1 // pred_check_branch
      %27 = sbr.rel (0) target = $region9
    $region8: #{tpu_custom_call.1} parent=1 // pred_region
      %s29 = ssub.s32 4096, 4096
      %30 = vsyncadd [#allocation5], %s29
      %s31 = sshll.u32 [#allocation4], 4
      %s32 = int_to_ptr.vmem [resolvable:$true] %s31
      %37 = dma.hbm_to_vmem [thread:$0]  %s1, 4096, %s32, [#allocation5], 128, 128, 8
    $region9: #{tpu_custom_call.1} parent=1 // pred_fallthru
      _
    // Predicated region
    $region10: #{tpu_custom_call.1} parent=1 // pred_check
      _
    $region11: #{tpu_custom_call.1} parent=1 // pred_check_branch
      %39 = sbr.rel (0) target = $region13
    $region12: #{tpu_custom_call.1} parent=1 // pred_region
      %s41 = ssub.s32 2048, 2048
      %42 = vsyncadd [#allocation5], %s41
      %s43 = sshll.u32 [#allocation6], 4
      %s44 = int_to_ptr.vmem [resolvable:$true] %s43
      %49 = dma.hbm_to_vmem [thread:$0]  %s2, 2048, %s44, [#allocation5], 256, 256, 16
    $region13: #{tpu_custom_call.1} parent=1 // pred_fallthru
      _
    // Predicated region
    $region14: #{tpu_custom_call.1} parent=1 // pred_check
      _
    $region15: #{tpu_custom_call.1} parent=1 // pred_check_branch
      %51 = sbr.rel (0) target = $region17
    $region16: #{tpu_custom_call.1} parent=1 // pred_region
      _
    $region17: #{tpu_custom_call.1} parent=1 // pred_fallthru
      _
    // Predicated region
    $region18: #{tpu_custom_call.1} parent=1 // pred_check
      _
    $region19: #{tpu_custom_call.1} parent=1 // pred_check_branch
      %53 = sbr.rel (0) target = $region21
    $region20: #{tpu_custom_call.1} parent=1 // pred_region
      _
    $region21: #{tpu_custom_call.1} parent=1 // pred_fallthru
      _
    // Predicated region
    $region22: #{tpu_custom_call.1} parent=1 // pred_check
      _
    $region23: #{tpu_custom_call.1} parent=1 // pred_check_branch
      %55 = sbr.rel (0) target = $region25
    $region24: #{tpu_custom_call.1} parent=1 // pred_region
      _
    $region25: #{tpu_custom_call.1} parent=1 // pred_fallthru
      _
    // Predicated region
    $region26: #{tpu_custom_call.1} parent=1 // pred_check
      _
    $region27: #{tpu_custom_call.1} parent=1 // pred_check_branch
      %57 = sbr.rel (0) target = $region29
    $region28: #{tpu_custom_call.1} parent=1 // pred_region
      _
    $region29: #{tpu_custom_call.1} parent=1 // pred_fallthru
      _
    // Predicated region
    $region30: #{tpu_custom_call.1} parent=1 // pred_check
      _
    $region31: #{tpu_custom_call.1} parent=1 // pred_check_branch
      %59 = sbr.rel (0) target = $region33
    $region32: #{tpu_custom_call.1} parent=1 // pred_region
      %60 = dma.done [#allocation3], 4096
    $region33: #{tpu_custom_call.1} parent=1 // pred_fallthru
      _
    // Predicated region
    $region34: #{tpu_custom_call.1} parent=1 // pred_check
      _
    $region35: #{tpu_custom_call.1} parent=1 // pred_check_branch
      %62 = sbr.rel (0) target = $region37
    $region36: #{tpu_custom_call.1} parent=1 // pred_region
      %63 = dma.done [#allocation5], 4096
    $region37: #{tpu_custom_call.1} parent=1 // pred_fallthru
      _
    // Predicated region
    $region38: #{tpu_custom_call.1} parent=1 // pred_check
      _
    $region39: #{tpu_custom_call.1} parent=1 // pred_check_branch
      %65 = sbr.rel (0) target = $region41
    $region40: #{tpu_custom_call.1} parent=1 // pred_region
      %66 = dma.done [#allocation5], 2048
    $region41: #{tpu_custom_call.1} parent=1 // pred_fallthru
      _
    %v68 = vld [vmem:[#allocation6] sm:$0xff]
    %v69 = vld [vmem:[#allocation6 + $0x8] sm:$0xff]
    %v70 = vld [vmem:[#allocation6 + $0x10] sm:$0xff]
    %v71 = vld [vmem:[#allocation6 + $0x18] sm:$0xff]
    %v72 = vld [vmem:[#allocation6 + $0x20] sm:$0xff]
    %v73 = vld [vmem:[#allocation6 + $0x28] sm:$0xff]
    %v74 = vld [vmem:[#allocation6 + $0x30] sm:$0xff]
    %v75 = vld [vmem:[#allocation6 + $0x38] sm:$0xff]
    %v76 = vld [vmem:[#allocation6 + $0x40] sm:$0xff]
    %v77 = vld [vmem:[#allocation6 + $0x48] sm:$0xff]
    %v78 = vld [vmem:[#allocation6 + $0x50] sm:$0xff]
    %v79 = vld [vmem:[#allocation6 + $0x58] sm:$0xff]
    %v80 = vld [vmem:[#allocation6 + $0x60] sm:$0xff]
    %v81 = vld [vmem:[#allocation6 + $0x68] sm:$0xff]
    %v82 = vld [vmem:[#allocation6 + $0x70] sm:$0xff]
    %v83 = vld [vmem:[#allocation6 + $0x78] sm:$0xff]
    %v84 = vld [vmem:[%s3] sm:$0xf]
    %v85 = vld [vmem:[%s4] sm:$0xf]
    %v86 = vld [vmem:[#allocation2] sm:$0xff]
    %v87 = vld [vmem:[#allocation2 + $0x8] sm:$0xff]
    %v88 = vld [vmem:[#allocation2 + $0x10] sm:$0xff]
    %v89 = vld [vmem:[#allocation2 + $0x18] sm:$0xff]
    %v90 = vld [vmem:[#allocation2 + $0x20] sm:$0xff]
    %v91 = vld [vmem:[#allocation2 + $0x28] sm:$0xff]
    %v92 = vld [vmem:[#allocation2 + $0x30] sm:$0xff]
    %v93 = vld [vmem:[#allocation2 + $0x38] sm:$0xff]
    %v94 = vld [vmem:[#allocation2 + $0x40] sm:$0xff]
    %v95 = vld [vmem:[#allocation2 + $0x48] sm:$0xff]
    %v96 = vld [vmem:[#allocation2 + $0x50] sm:$0xff]
    %v97 = vld [vmem:[#allocation2 + $0x58] sm:$0xff]
    %v98 = vld [vmem:[#allocation2 + $0x60] sm:$0xff]
    %v99 = vld [vmem:[#allocation2 + $0x68] sm:$0xff]
    %v100 = vld [vmem:[#allocation2 + $0x70] sm:$0xff]
    %v101 = vld [vmem:[#allocation2 + $0x78] sm:$0xff]
    %v102 = vld [vmem:[#allocation2 + $0x80] sm:$0xff]
    %v103 = vld [vmem:[#allocation2 + $0x88] sm:$0xff]
    %v104 = vld [vmem:[#allocation2 + $0x90] sm:$0xff]
    %v105 = vld [vmem:[#allocation2 + $0x98] sm:$0xff]
    %v106 = vld [vmem:[#allocation2 + $0xa0] sm:$0xff]
    %v107 = vld [vmem:[#allocation2 + $0xa8] sm:$0xff]
    %v108 = vld [vmem:[#allocation2 + $0xb0] sm:$0xff]
    %v109 = vld [vmem:[#allocation2 + $0xb8] sm:$0xff]
    %v110 = vld [vmem:[#allocation2 + $0xc0] sm:$0xff]
    %v111 = vld [vmem:[#allocation2 + $0xc8] sm:$0xff]
    %v112 = vld [vmem:[#allocation2 + $0xd0] sm:$0xff]
    %v113 = vld [vmem:[#allocation2 + $0xd8] sm:$0xff]
    %v114 = vld [vmem:[#allocation2 + $0xe0] sm:$0xff]
    %v115 = vld [vmem:[#allocation2 + $0xe8] sm:$0xff]
    %v116 = vld [vmem:[#allocation2 + $0xf0] sm:$0xff]
    %v117 = vld [vmem:[#allocation2 + $0xf8] sm:$0xff]
    %v118 = vpack.c.bf16 %v87, %v86
    %v119 = vpack.c.bf16 %v89, %v88
    %v120 = vpack.c.bf16 %v91, %v90
    %v121 = vpack.c.bf16 %v93, %v92
    %v122 = vpack.c.bf16 %v95, %v94
    %v123 = vpack.c.bf16 %v97, %v96
    %v124 = vpack.c.bf16 %v99, %v98
    %v125 = vpack.c.bf16 %v101, %v100
    %v126 = vpack.c.bf16 %v103, %v102
    %v127 = vpack.c.bf16 %v105, %v104
    %v128 = vpack.c.bf16 %v107, %v106
    %v129 = vpack.c.bf16 %v109, %v108
    %v130 = vpack.c.bf16 %v111, %v110
    %v131 = vpack.c.bf16 %v113, %v112
    %v132 = vpack.c.bf16 %v115, %v114
    %v133 = vpack.c.bf16 %v117, %v116
    %v135 = vlaneseq
    %v136 = vshrl.u32 %v135, 7
    %v137 = vsub.s32 0, %v136
    %v138 = vrot.slane %v84, %v137
    %v139 = vlaneseq
    %v140 = vshrl.u32 %v139, 7
    %v141 = vsub.s32 1, %v140
    %v142 = vrot.slane %v84, %v141
    %v143 = vlaneseq
    %v144 = vshrl.u32 %v143, 7
    %v145 = vsub.s32 2, %v144
    %v146 = vrot.slane %v84, %v145
    %v147 = vlaneseq
    %v148 = vshrl.u32 %v147, 7
    %v149 = vsub.s32 3, %v148
    %v150 = vrot.slane %v84, %v149
    %v171 = vunpack.c.l.b16 %v68
    %v172 = vunpack.c.h.b16 %v68
    %v173 = vunpack.c.l.b16 %v69
    %v174 = vunpack.c.h.b16 %v69
    %v175 = vunpack.c.l.b16 %v70
    %v176 = vunpack.c.h.b16 %v70
    %v177 = vunpack.c.l.b16 %v71
    %v178 = vunpack.c.h.b16 %v71
    %v179 = vunpack.c.l.b16 %v72
    %v180 = vunpack.c.h.b16 %v72
    %v181 = vunpack.c.l.b16 %v73
    %v182 = vunpack.c.h.b16 %v73
    %v183 = vunpack.c.l.b16 %v74
    %v184 = vunpack.c.h.b16 %v74
    %v185 = vunpack.c.l.b16 %v75
    %v186 = vunpack.c.h.b16 %v75
    %v187 = vunpack.c.l.b16 %v76
    %v188 = vunpack.c.h.b16 %v76
    %v189 = vunpack.c.l.b16 %v77
    %v190 = vunpack.c.h.b16 %v77
    %v191 = vunpack.c.l.b16 %v78
    %v192 = vunpack.c.h.b16 %v78
    %v193 = vunpack.c.l.b16 %v79
    %v194 = vunpack.c.h.b16 %v79
    %v195 = vunpack.c.l.b16 %v80
    %v196 = vunpack.c.h.b16 %v80
    %v197 = vunpack.c.l.b16 %v81
    %v198 = vunpack.c.h.b16 %v81
    %v199 = vunpack.c.l.b16 %v82
    %v200 = vunpack.c.h.b16 %v82
    %v201 = vunpack.c.l.b16 %v83
    %v202 = vunpack.c.h.b16 %v83
    %v203 = vpack.c.b16 %v175, %v171
    %v204 = vpack.c.b16 %v176, %v172
    %v205 = vpack.c.b16 %v177, %v173
    %v206 = vpack.c.b16 %v178, %v174
    %v207 = vpack.c.b16 %v183, %v179
    %v208 = vpack.c.b16 %v184, %v180
    %v209 = vpack.c.b16 %v185, %v181
    %v210 = vpack.c.b16 %v186, %v182
    %v211 = vpack.c.b16 %v191, %v187
    %v212 = vpack.c.b16 %v192, %v188
    %v213 = vpack.c.b16 %v193, %v189
    %v214 = vpack.c.b16 %v194, %v190
    %v215 = vpack.c.b16 %v199, %v195
    %v216 = vpack.c.b16 %v200, %v196
    %v217 = vpack.c.b16 %v201, %v197
    %v218 = vpack.c.b16 %v202, %v198
    %vm235 = vcmask 523264
    %v237 = vsel %vm235, %v118, 0
    %v240 = vsel %vm235, %v119, 0
    %v243 = vsel %vm235, %v120, 0
    %v246 = vsel %vm235, %v121, 0
    %v249 = vsel %vm235, %v122, 0
    %v252 = vsel %vm235, %v123, 0
    %v255 = vsel %vm235, %v124, 0
    %v258 = vsel %vm235, %v125, 0
    %v261 = vsel %vm235, %v126, 0
    %v264 = vsel %vm235, %v127, 0
    %v267 = vsel %vm235, %v128, 0
    %v270 = vsel %vm235, %v129, 0
    %v273 = vsel %vm235, %v130, 0
    %v276 = vsel %vm235, %v131, 0
    %v279 = vsel %vm235, %v132, 0
    %v282 = vsel %vm235, %v133, 0
    %284 = vmatprep.subr.bf16.mxu0 %v204
    %285 = vmatpush1.bf16.msra.mxu0 %v203
    %286 = vmatprep.subr.bf16.mxu0 %v208
    %287 = vmatpush1.bf16.msra.mxu0 %v207
    %288 = vmatprep.subr.bf16.mxu0 %v212
    %289 = vmatpush1.bf16.msra.mxu0 %v211
    %290 = vmatprep.subr.bf16.mxu0 %v216
    %291 = vmatpush1.bf16.msra.mxu0 %v215
    %292 = vmatprep.subr.bf16.mxu0 0
    %293 = vmatpush1.bf16.msra.mxu0 0
    %294 = vmatprep.subr.bf16.mxu0 0
    %295 = vmatpush1.bf16.msra.mxu0 0
    %296 = vmatprep.subr.bf16.mxu0 0
    %297 = vmatpush1.bf16.msra.mxu0 0
    %298 = vmatprep.subr.bf16.mxu0 0
    %299 = vmatpush1.bf16.msra.mxu0 0
    %300 = vmatprep.subr.bf16.mxu0 0
    %301 = vmatpush1.bf16.msra.mxu0 0
    %302 = vmatprep.subr.bf16.mxu0 0
    %303 = vmatpush1.bf16.msra.mxu0 0
    %304 = vmatprep.subr.bf16.mxu0 0
    %305 = vmatpush1.bf16.msra.mxu0 0
    %306 = vmatprep.subr.bf16.mxu0 0
    %307 = vmatpush1.bf16.msra.mxu0 0
    %308 = vmatprep.subr.bf16.mxu0 0
    %309 = vmatpush1.bf16.msra.mxu0 0
    %310 = vmatprep.subr.bf16.mxu0 0
    %311 = vmatpush1.bf16.msra.mxu0 0
    %312 = vmatprep.subr.bf16.mxu0 0
    %313 = vmatpush1.bf16.msra.mxu0 0
    %314 = vmatprep.subr.bf16.mxu0 0
    %315 = vmatpush1.bf16.msra.mxu0 0
    %316 = vmatprep.mubr.bf16.mxu0 0
    %317 = vmatmul.mubr.bf16.gmra.mrb[0].mxu0 %v237
    %v318 = vpop.f32.mrb[0].mxu0
    %v319 = vadd.f32 %v138, %v318
    %v320 = vpop.f32.mrb[0].mxu0
    %v321 = vadd.f32 %v142, %v320
    %v322 = vpop.f32.mrb[0].mxu0
    %v323 = vadd.f32 %v138, %v322
    %v324 = vpop.f32.mrb[0].mxu0
    %v325 = vadd.f32 %v142, %v324
    %326 = vmatprep.mubr.bf16.mxu0 0
    %327 = vmatmul.mubr.bf16.gmra.mrb[0].mxu0 %v240
    %v328 = vpop.f32.mrb[0].mxu0
    %v329 = vadd.f32 %v138, %v328
    %v330 = vpop.f32.mrb[0].mxu0
    %v331 = vadd.f32 %v142, %v330
    %v332 = vpop.f32.mrb[0].mxu0
    %v333 = vadd.f32 %v138, %v332
    %v334 = vpop.f32.mrb[0].mxu0
    %v335 = vadd.f32 %v142, %v334
    %336 = vmatprep.mubr.bf16.mxu0 0
    %337 = vmatmul.mubr.bf16.gmra.mrb[0].mxu0 %v243
    %v338 = vpop.f32.mrb[0].mxu0
    %v339 = vadd.f32 %v138, %v338
    %v340 = vpop.f32.mrb[0].mxu0
    %v341 = vadd.f32 %v142, %v340
    %v342 = vpop.f32.mrb[0].mxu0
    %v343 = vadd.f32 %v138, %v342
    %v344 = vpop.f32.mrb[0].mxu0
    %v345 = vadd.f32 %v142, %v344
    %346 = vmatprep.mubr.bf16.mxu0 0
    %347 = vmatmul.mubr.bf16.gmra.mrb[0].mxu0 %v246
    %v348 = vpop.f32.mrb[0].mxu0
    %v349 = vadd.f32 %v138, %v348
    %v350 = vpop.f32.mrb[0].mxu0
    %v351 = vadd.f32 %v142, %v350
    %v352 = vpop.f32.mrb[0].mxu0
    %v353 = vadd.f32 %v138, %v352
    %v354 = vpop.f32.mrb[0].mxu0
    %v355 = vadd.f32 %v142, %v354
    %356 = vmatprep.mubr.bf16.mxu0 0
    %357 = vmatmul.mubr.bf16.gmra.mrb[0].mxu0 %v249
    %v358 = vpop.f32.mrb[0].mxu0
    %v359 = vadd.f32 %v138, %v358
    %v360 = vpop.f32.mrb[0].mxu0
    %v361 = vadd.f32 %v142, %v360
    %v362 = vpop.f32.mrb[0].mxu0
    %v363 = vadd.f32 %v138, %v362
    %v364 = vpop.f32.mrb[0].mxu0
    %v365 = vadd.f32 %v142, %v364
    %366 = vmatprep.mubr.bf16.mxu0 0
    %367 = vmatmul.mubr.bf16.gmra.mrb[0].mxu0 %v252
    %v368 = vpop.f32.mrb[0].mxu0
    %v369 = vadd.f32 %v138, %v368
    %v370 = vpop.f32.mrb[0].mxu0
    %v371 = vadd.f32 %v142, %v370
    %v372 = vpop.f32.mrb[0].mxu0
    %v373 = vadd.f32 %v138, %v372
    %v374 = vpop.f32.mrb[0].mxu0
    %v375 = vadd.f32 %v142, %v374
    %376 = vmatprep.mubr.bf16.mxu0 0
    %377 = vmatmul.mubr.bf16.gmra.mrb[0].mxu0 %v255
    %v378 = vpop.f32.mrb[0].mxu0
    %v379 = vadd.f32 %v138, %v378
    %v380 = vpop.f32.mrb[0].mxu0
    %v381 = vadd.f32 %v142, %v380
    %v382 = vpop.f32.mrb[0].mxu0
    %v383 = vadd.f32 %v138, %v382
    %v384 = vpop.f32.mrb[0].mxu0
    %v385 = vadd.f32 %v142, %v384
    %386 = vmatprep.mubr.bf16.mxu0 0
    %387 = vmatmul.mubr.bf16.gmra.mrb[0].mxu0 %v258
    %v388 = vpop.f32.mrb[0].mxu0
    %v389 = vadd.f32 %v138, %v388
    %v390 = vpop.f32.mrb[0].mxu0
    %v391 = vadd.f32 %v142, %v390
    %v392 = vpop.f32.mrb[0].mxu0
    %v393 = vadd.f32 %v138, %v392
    %v394 = vpop.f32.mrb[0].mxu0
    %v395 = vadd.f32 %v142, %v394
    %396 = vmatprep.mubr.bf16.mxu0 0
    %397 = vmatmul.mubr.bf16.gmra.mrb[0].mxu0 %v261
    %v398 = vpop.f32.mrb[0].mxu0
    %v399 = vadd.f32 %v138, %v398
    %v400 = vpop.f32.mrb[0].mxu0
    %v401 = vadd.f32 %v142, %v400
    %v402 = vpop.f32.mrb[0].mxu0
    %v403 = vadd.f32 %v138, %v402
    %v404 = vpop.f32.mrb[0].mxu0
    %v405 = vadd.f32 %v142, %v404
    %406 = vmatprep.mubr.bf16.mxu0 0
    %407 = vmatmul.mubr.bf16.gmra.mrb[0].mxu0 %v264
    %v408 = vpop.f32.mrb[0].mxu0
    %v409 = vadd.f32 %v138, %v408
    %v410 = vpop.f32.mrb[0].mxu0
    %v411 = vadd.f32 %v142, %v410
    %v412 = vpop.f32.mrb[0].mxu0
    %v413 = vadd.f32 %v138, %v412
    %v414 = vpop.f32.mrb[0].mxu0
    %v415 = vadd.f32 %v142, %v414
    %416 = vmatprep.mubr.bf16.mxu0 0
    %417 = vmatmul.mubr.bf16.gmra.mrb[0].mxu0 %v267
    %v418 = vpop.f32.mrb[0].mxu0
    %v419 = vadd.f32 %v138, %v418
    %v420 = vpop.f32.mrb[0].mxu0
    %v421 = vadd.f32 %v142, %v420
    %v422 = vpop.f32.mrb[0].mxu0
    %v423 = vadd.f32 %v138, %v422
    %v424 = vpop.f32.mrb[0].mxu0
    %v425 = vadd.f32 %v142, %v424
    %426 = vmatprep.mubr.bf16.mxu0 0
    %427 = vmatmul.mubr.bf16.gmra.mrb[0].mxu0 %v270
    %v428 = vpop.f32.mrb[0].mxu0
    %v429 = vadd.f32 %v138, %v428
    %v430 = vpop.f32.mrb[0].mxu0
    %v431 = vadd.f32 %v142, %v430
    %v432 = vpop.f32.mrb[0].mxu0
    %v433 = vadd.f32 %v138, %v432
    %v434 = vpop.f32.mrb[0].mxu0
    %v435 = vadd.f32 %v142, %v434
    %436 = vmatprep.mubr.bf16.mxu0 0
    %437 = vmatmul.mubr.bf16.gmra.mrb[0].mxu0 %v273
    %v438 = vpop.f32.mrb[0].mxu0
    %v439 = vadd.f32 %v138, %v438
    %v440 = vpop.f32.mrb[0].mxu0
    %v441 = vadd.f32 %v142, %v440
    %v442 = vpop.f32.mrb[0].mxu0
    %v443 = vadd.f32 %v138, %v442
    %v444 = vpop.f32.mrb[0].mxu0
    %v445 = vadd.f32 %v142, %v444
    %446 = vmatprep.mubr.bf16.mxu0 0
    %447 = vmatmul.mubr.bf16.gmra.mrb[0].mxu0 %v276
    %v448 = vpop.f32.mrb[0].mxu0
    %v449 = vadd.f32 %v138, %v448
    %v450 = vpop.f32.mrb[0].mxu0
    %v451 = vadd.f32 %v142, %v450
    %v452 = vpop.f32.mrb[0].mxu0
    %v453 = vadd.f32 %v138, %v452
    %v454 = vpop.f32.mrb[0].mxu0
    %v455 = vadd.f32 %v142, %v454
    %456 = vmatprep.mubr.bf16.mxu0 0
    %457 = vmatmul.mubr.bf16.gmra.mrb[0].mxu0 %v279
    %v458 = vpop.f32.mrb[0].mxu0
    %v459 = vadd.f32 %v138, %v458
    %v460 = vpop.f32.mrb[0].mxu0
    %v461 = vadd.f32 %v142, %v460
    %v462 = vpop.f32.mrb[0].mxu0
    %v463 = vadd.f32 %v138, %v462
    %v464 = vpop.f32.mrb[0].mxu0
    %v465 = vadd.f32 %v142, %v464
    %466 = vmatprep.mubr.bf16.mxu0 0
    %467 = vmatmul.mubr.bf16.gmra.mrb[0].mxu0 %v282
    %v468 = vpop.f32.mrb[0].mxu0
    %v469 = vadd.f32 %v138, %v468
    %v470 = vpop.f32.mrb[0].mxu0
    %v471 = vadd.f32 %v142, %v470
    %v472 = vpop.f32.mrb[0].mxu0
    %v473 = vadd.f32 %v138, %v472
    %v474 = vpop.f32.mrb[0].mxu0
    %v475 = vadd.f32 %v142, %v474
    %476 = vdwg.mxu0
    %477 = vmatprep.subr.bf16.mxu0 %v206
    %478 = vmatpush1.bf16.msra.mxu0 %v205
    %479 = vmatprep.subr.bf16.mxu0 %v210
    %480 = vmatpush1.bf16.msra.mxu0 %v209
    %481 = vmatprep.subr.bf16.mxu0 %v214
    %482 = vmatpush1.bf16.msra.mxu0 %v213
    %483 = vmatprep.subr.bf16.mxu0 %v218
    %484 = vmatpush1.bf16.msra.mxu0 %v217
    %485 = vmatprep.subr.bf16.mxu0 0
    %486 = vmatpush1.bf16.msra.mxu0 0
    %487 = vmatprep.subr.bf16.mxu0 0
    %488 = vmatpush1.bf16.msra.mxu0 0
    %489 = vmatprep.subr.bf16.mxu0 0
    %490 = vmatpush1.bf16.msra.mxu0 0
    %491 = vmatprep.subr.bf16.mxu0 0
    %492 = vmatpush1.bf16.msra.mxu0 0
    %493 = vmatprep.subr.bf16.mxu0 0
    %494 = vmatpush1.bf16.msra.mxu0 0
    %495 = vmatprep.subr.bf16.mxu0 0
    %496 = vmatpush1.bf16.msra.mxu0 0
    %497 = vmatprep.subr.bf16.mxu0 0
    %498 = vmatpush1.bf16.msra.mxu0 0
    %499 = vmatprep.subr.bf16.mxu0 0
    %500 = vmatpush1.bf16.msra.mxu0 0
    %501 = vmatprep.subr.bf16.mxu0 0
    %502 = vmatpush1.bf16.msra.mxu0 0
    %503 = vmatprep.subr.bf16.mxu0 0
    %504 = vmatpush1.bf16.msra.mxu0 0
    %505 = vmatprep.subr.bf16.mxu0 0
    %506 = vmatpush1.bf16.msra.mxu0 0
    %507 = vmatprep.subr.bf16.mxu0 0
    %508 = vmatpush1.bf16.msra.mxu0 0
    %509 = vmatprep.mubr.bf16.mxu0 0
    %510 = vmatmul.mubr.bf16.gmra.mrb[0].mxu0 %v237
    %v511 = vpop.f32.mrb[0].mxu0
    %v512 = vadd.f32 %v146, %v511
    %v513 = vpop.f32.mrb[0].mxu0
    %v514 = vadd.f32 %v150, %v513
    %v515 = vpop.f32.mrb[0].mxu0
    %v516 = vadd.f32 %v146, %v515
    %v517 = vpop.f32.mrb[0].mxu0
    %v518 = vadd.f32 %v150, %v517
    %519 = vmatprep.mubr.bf16.mxu0 0
    %520 = vmatmul.mubr.bf16.gmra.mrb[0].mxu0 %v240
    %v521 = vpop.f32.mrb[0].mxu0
    %v522 = vadd.f32 %v146, %v521
    %v523 = vpop.f32.mrb[0].mxu0
    %v524 = vadd.f32 %v150, %v523
    %v525 = vpop.f32.mrb[0].mxu0
    %v526 = vadd.f32 %v146, %v525
    %v527 = vpop.f32.mrb[0].mxu0
    %v528 = vadd.f32 %v150, %v527
    %529 = vmatprep.mubr.bf16.mxu0 0
    %530 = vmatmul.mubr.bf16.gmra.mrb[0].mxu0 %v243
    %v531 = vpop.f32.mrb[0].mxu0
    %v532 = vadd.f32 %v146, %v531
    %v533 = vpop.f32.mrb[0].mxu0
    %v534 = vadd.f32 %v150, %v533
    %v535 = vpop.f32.mrb[0].mxu0
    %v536 = vadd.f32 %v146, %v535
    %v537 = vpop.f32.mrb[0].mxu0
    %v538 = vadd.f32 %v150, %v537
    %539 = vmatprep.mubr.bf16.mxu0 0
    %540 = vmatmul.mubr.bf16.gmra.mrb[0].mxu0 %v246
    %v541 = vpop.f32.mrb[0].mxu0
    %v542 = vadd.f32 %v146, %v541
    %v543 = vpop.f32.mrb[0].mxu0
    %v544 = vadd.f32 %v150, %v543
    %v545 = vpop.f32.mrb[0].mxu0
    %v546 = vadd.f32 %v146, %v545
    %v547 = vpop.f32.mrb[0].mxu0
    %v548 = vadd.f32 %v150, %v547
    %549 = vmatprep.mubr.bf16.mxu0 0
    %550 = vmatmul.mubr.bf16.gmra.mrb[0].mxu0 %v249
    %v551 = vpop.f32.mrb[0].mxu0
    %v552 = vadd.f32 %v146, %v551
    %v553 = vpop.f32.mrb[0].mxu0
    %v554 = vadd.f32 %v150, %v553
    %v555 = vpop.f32.mrb[0].mxu0
    %v556 = vadd.f32 %v146, %v555
    %v557 = vpop.f32.mrb[0].mxu0
    %v558 = vadd.f32 %v150, %v557
    %559 = vmatprep.mubr.bf16.mxu0 0
    %560 = vmatmul.mubr.bf16.gmra.mrb[0].mxu0 %v252
    %v561 = vpop.f32.mrb[0].mxu0
    %v562 = vadd.f32 %v146, %v561
    %v563 = vpop.f32.mrb[0].mxu0
    %v564 = vadd.f32 %v150, %v563
    %v565 = vpop.f32.mrb[0].mxu0
    %v566 = vadd.f32 %v146, %v565
    %v567 = vpop.f32.mrb[0].mxu0
    %v568 = vadd.f32 %v150, %v567
    %569 = vmatprep.mubr.bf16.mxu0 0
    %570 = vmatmul.mubr.bf16.gmra.mrb[0].mxu0 %v255
    %v571 = vpop.f32.mrb[0].mxu0
    %v572 = vadd.f32 %v146, %v571
    %v573 = vpop.f32.mrb[0].mxu0
    %v574 = vadd.f32 %v150, %v573
    %v575 = vpop.f32.mrb[0].mxu0
    %v576 = vadd.f32 %v146, %v575
    %v577 = vpop.f32.mrb[0].mxu0
    %v578 = vadd.f32 %v150, %v577
    %579 = vmatprep.mubr.bf16.mxu0 0
    %580 = vmatmul.mubr.bf16.gmra.mrb[0].mxu0 %v258
    %v581 = vpop.f32.mrb[0].mxu0
    %v582 = vadd.f32 %v146, %v581
    %v583 = vpop.f32.mrb[0].mxu0
    %v584 = vadd.f32 %v150, %v583
    %v585 = vpop.f32.mrb[0].mxu0
    %v586 = vadd.f32 %v146, %v585
    %v587 = vpop.f32.mrb[0].mxu0
    %v588 = vadd.f32 %v150, %v587
    %589 = vmatprep.mubr.bf16.mxu0 0
    %590 = vmatmul.mubr.bf16.gmra.mrb[0].mxu0 %v261
    %v591 = vpop.f32.mrb[0].mxu0
    %v592 = vadd.f32 %v146, %v591
    %v593 = vpop.f32.mrb[0].mxu0
    %v594 = vadd.f32 %v150, %v593
    %v595 = vpop.f32.mrb[0].mxu0
    %v596 = vadd.f32 %v146, %v595
    %v597 = vpop.f32.mrb[0].mxu0
    %v598 = vadd.f32 %v150, %v597
    %599 = vmatprep.mubr.bf16.mxu0 0
    %600 = vmatmul.mubr.bf16.gmra.mrb[0].mxu0 %v264
    %v601 = vpop.f32.mrb[0].mxu0
    %v602 = vadd.f32 %v146, %v601
    %v603 = vpop.f32.mrb[0].mxu0
    %v604 = vadd.f32 %v150, %v603
    %v605 = vpop.f32.mrb[0].mxu0
    %v606 = vadd.f32 %v146, %v605
    %v607 = vpop.f32.mrb[0].mxu0
    %v608 = vadd.f32 %v150, %v607
    %609 = vmatprep.mubr.bf16.mxu0 0
    %610 = vmatmul.mubr.bf16.gmra.mrb[0].mxu0 %v267
    %v611 = vpop.f32.mrb[0].mxu0
    %v612 = vadd.f32 %v146, %v611
    %v613 = vpop.f32.mrb[0].mxu0
    %v614 = vadd.f32 %v150, %v613
    %v615 = vpop.f32.mrb[0].mxu0
    %v616 = vadd.f32 %v146, %v615
    %v617 = vpop.f32.mrb[0].mxu0
    %v618 = vadd.f32 %v150, %v617
    %619 = vmatprep.mubr.bf16.mxu0 0
    %620 = vmatmul.mubr.bf16.gmra.mrb[0].mxu0 %v270
    %v621 = vpop.f32.mrb[0].mxu0
    %v622 = vadd.f32 %v146, %v621
    %v623 = vpop.f32.mrb[0].mxu0
    %v624 = vadd.f32 %v150, %v623
    %v625 = vpop.f32.mrb[0].mxu0
    %v626 = vadd.f32 %v146, %v625
    %v627 = vpop.f32.mrb[0].mxu0
    %v628 = vadd.f32 %v150, %v627
    %629 = vmatprep.mubr.bf16.mxu0 0
    %630 = vmatmul.mubr.bf16.gmra.mrb[0].mxu0 %v273
    %v631 = vpop.f32.mrb[0].mxu0
    %v632 = vadd.f32 %v146, %v631
    %v633 = vpop.f32.mrb[0].mxu0
    %v634 = vadd.f32 %v150, %v633
    %v635 = vpop.f32.mrb[0].mxu0
    %v636 = vadd.f32 %v146, %v635
    %v637 = vpop.f32.mrb[0].mxu0
    %v638 = vadd.f32 %v150, %v637
    %639 = vmatprep.mubr.bf16.mxu0 0
    %640 = vmatmul.mubr.bf16.gmra.mrb[0].mxu0 %v276
    %v641 = vpop.f32.mrb[0].mxu0
    %v642 = vadd.f32 %v146, %v641
    %v643 = vpop.f32.mrb[0].mxu0
    %v644 = vadd.f32 %v150, %v643
    %v645 = vpop.f32.mrb[0].mxu0
    %v646 = vadd.f32 %v146, %v645
    %v647 = vpop.f32.mrb[0].mxu0
    %v648 = vadd.f32 %v150, %v647
    %649 = vmatprep.mubr.bf16.mxu0 0
    %650 = vmatmul.mubr.bf16.gmra.mrb[0].mxu0 %v279
    %v651 = vpop.f32.mrb[0].mxu0
    %v652 = vadd.f32 %v146, %v651
    %v653 = vpop.f32.mrb[0].mxu0
    %v654 = vadd.f32 %v150, %v653
    %v655 = vpop.f32.mrb[0].mxu0
    %v656 = vadd.f32 %v146, %v655
    %v657 = vpop.f32.mrb[0].mxu0
    %v658 = vadd.f32 %v150, %v657
    %659 = vmatprep.mubr.bf16.mxu0 0
    %660 = vmatmul.mubr.bf16.gmra.mrb[0].mxu0 %v282
    %v661 = vpop.f32.mrb[0].mxu0
    %v662 = vadd.f32 %v146, %v661
    %v663 = vpop.f32.mrb[0].mxu0
    %v664 = vadd.f32 %v150, %v663
    %v665 = vpop.f32.mrb[0].mxu0
    %v666 = vadd.f32 %v146, %v665
    %v667 = vpop.f32.mrb[0].mxu0
    %v668 = vadd.f32 %v150, %v667
    %669 = vdwg.mxu0
    %v670 = vtanh.pop %v319
    %v671 = vtanh.pop %v321
    %v672 = vtanh.pop %v512
    %v673 = vtanh.pop %v514
    %v674 = vtanh.pop %v323
    %v675 = vtanh.pop %v325
    %v676 = vtanh.pop %v516
    %v677 = vtanh.pop %v518
    %v678 = vtanh.pop %v329
    %v679 = vtanh.pop %v331
    %v680 = vtanh.pop %v522
    %v681 = vtanh.pop %v524
    %v682 = vtanh.pop %v333
    %v683 = vtanh.pop %v335
    %v684 = vtanh.pop %v526
    %v685 = vtanh.pop %v528
    %v686 = vtanh.pop %v339
    %v687 = vtanh.pop %v341
    %v688 = vtanh.pop %v532
    %v689 = vtanh.pop %v534
    %v690 = vtanh.pop %v343
    %v691 = vtanh.pop %v345
    %v692 = vtanh.pop %v536
    %v693 = vtanh.pop %v538
    %v694 = vtanh.pop %v349
    %v695 = vtanh.pop %v351
    %v696 = vtanh.pop %v542
    %v697 = vtanh.pop %v544
    %v698 = vtanh.pop %v353
    %v699 = vtanh.pop %v355
    %v700 = vtanh.pop %v546
    %v701 = vtanh.pop %v548
    %v702 = vtanh.pop %v359
    %v703 = vtanh.pop %v361
    %v704 = vtanh.pop %v552
    %v705 = vtanh.pop %v554
    %v706 = vtanh.pop %v363
    %v707 = vtanh.pop %v365
    %v708 = vtanh.pop %v556
    %v709 = vtanh.pop %v558
    %v710 = vtanh.pop %v369
    %v711 = vtanh.pop %v371
    %v712 = vtanh.pop %v562
    %v713 = vtanh.pop %v564
    %v714 = vtanh.pop %v373
    %v715 = vtanh.pop %v375
    %v716 = vtanh.pop %v566
    %v717 = vtanh.pop %v568
    %v718 = vtanh.pop %v379
    %v719 = vtanh.pop %v381
    %v720 = vtanh.pop %v572
    %v721 = vtanh.pop %v574
    %v722 = vtanh.pop %v383
    %v723 = vtanh.pop %v385
    %v724 = vtanh.pop %v576
    %v725 = vtanh.pop %v578
    %v726 = vtanh.pop %v389
    %v727 = vtanh.pop %v391
    %v728 = vtanh.pop %v582
    %v729 = vtanh.pop %v584
    %v730 = vtanh.pop %v393
    %v731 = vtanh.pop %v395
    %v732 = vtanh.pop %v586
    %v733 = vtanh.pop %v588
    %v734 = vtanh.pop %v399
    %v735 = vtanh.pop %v401
    %v736 = vtanh.pop %v592
    %v737 = vtanh.pop %v594
    %v738 = vtanh.pop %v403
    %v739 = vtanh.pop %v405
    %v740 = vtanh.pop %v596
    %v741 = vtanh.pop %v598
    %v742 = vtanh.pop %v409
    %v743 = vtanh.pop %v411
    %v744 = vtanh.pop %v602
    %v745 = vtanh.pop %v604
    %v746 = vtanh.pop %v413
    %v747 = vtanh.pop %v415
    %v748 = vtanh.pop %v606
    %v749 = vtanh.pop %v608
    %v750 = vtanh.pop %v419
    %v751 = vtanh.pop %v421
    %v752 = vtanh.pop %v612
    %v753 = vtanh.pop %v614
    %v754 = vtanh.pop %v423
    %v755 = vtanh.pop %v425
    %v756 = vtanh.pop %v616
    %v757 = vtanh.pop %v618
    %v758 = vtanh.pop %v429
    %v759 = vtanh.pop %v431
    %v760 = vtanh.pop %v622
    %v761 = vtanh.pop %v624
    %v762 = vtanh.pop %v433
    %v763 = vtanh.pop %v435
    %v764 = vtanh.pop %v626
    %v765 = vtanh.pop %v628
    %v766 = vtanh.pop %v439
    %v767 = vtanh.pop %v441
    %v768 = vtanh.pop %v632
    %v769 = vtanh.pop %v634
    %v770 = vtanh.pop %v443
    %v771 = vtanh.pop %v445
    %v772 = vtanh.pop %v636
    %v773 = vtanh.pop %v638
    %v774 = vtanh.pop %v449
    %v775 = vtanh.pop %v451
    %v776 = vtanh.pop %v642
    %v777 = vtanh.pop %v644
    %v778 = vtanh.pop %v453
    %v779 = vtanh.pop %v455
    %v780 = vtanh.pop %v646
    %v781 = vtanh.pop %v648
    %v782 = vtanh.pop %v459
    %v783 = vtanh.pop %v461
    %v784 = vtanh.pop %v652
    %v785 = vtanh.pop %v654
    %v786 = vtanh.pop %v463
    %v787 = vtanh.pop %v465
    %v788 = vtanh.pop %v656
    %v789 = vtanh.pop %v658
    %v790 = vtanh.pop %v469
    %v791 = vtanh.pop %v471
    %v792 = vtanh.pop %v662
    %v793 = vtanh.pop %v664
    %v794 = vtanh.pop %v473
    %v795 = vtanh.pop %v475
    %v796 = vtanh.pop %v666
    %v797 = vtanh.pop %v668
    %v799 = vlaneseq
    %v800 = vshrl.u32 %v799, 7
    %v801 = vsub.s32 0, %v800
    %v802 = vrot.slane %v85, %v801
    %v803 = vlaneseq
    %v804 = vshrl.u32 %v803, 7
    %v805 = vsub.s32 1, %v804
    %v806 = vrot.slane %v85, %v805
    %v807 = vlaneseq
    %v808 = vshrl.u32 %v807, 7
    %v809 = vsub.s32 2, %v808
    %v810 = vrot.slane %v85, %v809
    %v811 = vlaneseq
    %v812 = vshrl.u32 %v811, 7
    %v813 = vsub.s32 3, %v812
    %v814 = vrot.slane %v85, %v813
    %v819 = vmul.f32 %v670, %v802
    %v820 = vmul.f32 %v671, %v806
    %v821 = vmul.f32 %v672, %v810
    %v822 = vmul.f32 %v673, %v814
    %v823 = vmul.f32 %v674, %v802
    %v824 = vmul.f32 %v675, %v806
    %v825 = vmul.f32 %v676, %v810
    %v826 = vmul.f32 %v677, %v814
    %v827 = vmul.f32 %v678, %v802
    %v828 = vmul.f32 %v679, %v806
    %v829 = vmul.f32 %v680, %v810
    %v830 = vmul.f32 %v681, %v814
    %v831 = vmul.f32 %v682, %v802
    %v832 = vmul.f32 %v683, %v806
    %v833 = vmul.f32 %v684, %v810
    %v834 = vmul.f32 %v685, %v814
    %v835 = vmul.f32 %v686, %v802
    %v836 = vmul.f32 %v687, %v806
    %v837 = vmul.f32 %v688, %v810
    %v838 = vmul.f32 %v689, %v814
    %v839 = vmul.f32 %v690, %v802
    %v840 = vmul.f32 %v691, %v806
    %v841 = vmul.f32 %v692, %v810
    %v842 = vmul.f32 %v693, %v814
    %v843 = vmul.f32 %v694, %v802
    %v844 = vmul.f32 %v695, %v806
    %v845 = vmul.f32 %v696, %v810
    %v846 = vmul.f32 %v697, %v814
    %v847 = vmul.f32 %v698, %v802
    %v848 = vmul.f32 %v699, %v806
    %v849 = vmul.f32 %v700, %v810
    %v850 = vmul.f32 %v701, %v814
    %v851 = vmul.f32 %v702, %v802
    %v852 = vmul.f32 %v703, %v806
    %v853 = vmul.f32 %v704, %v810
    %v854 = vmul.f32 %v705, %v814
    %v855 = vmul.f32 %v706, %v802
    %v856 = vmul.f32 %v707, %v806
    %v857 = vmul.f32 %v708, %v810
    %v858 = vmul.f32 %v709, %v814
    %v859 = vmul.f32 %v710, %v802
    %v860 = vmul.f32 %v711, %v806
    %v861 = vmul.f32 %v712, %v810
    %v862 = vmul.f32 %v713, %v814
    %v863 = vmul.f32 %v714, %v802
    %v864 = vmul.f32 %v715, %v806
    %v865 = vmul.f32 %v716, %v810
    %v866 = vmul.f32 %v717, %v814
    %v867 = vmul.f32 %v718, %v802
    %v868 = vmul.f32 %v719, %v806
    %v869 = vmul.f32 %v720, %v810
    %v870 = vmul.f32 %v721, %v814
    %v871 = vmul.f32 %v722, %v802
    %v872 = vmul.f32 %v723, %v806
    %v873 = vmul.f32 %v724, %v810
    %v874 = vmul.f32 %v725, %v814
    %v875 = vmul.f32 %v726, %v802
    %v876 = vmul.f32 %v727, %v806
    %v877 = vmul.f32 %v728, %v810
    %v878 = vmul.f32 %v729, %v814
    %v879 = vmul.f32 %v730, %v802
    %v880 = vmul.f32 %v731, %v806
    %v881 = vmul.f32 %v732, %v810
    %v882 = vmul.f32 %v733, %v814
    %v883 = vmul.f32 %v734, %v802
    %v884 = vmul.f32 %v735, %v806
    %v885 = vmul.f32 %v736, %v810
    %v886 = vmul.f32 %v737, %v814
    %v887 = vmul.f32 %v738, %v802
    %v888 = vmul.f32 %v739, %v806
    %v889 = vmul.f32 %v740, %v810
    %v890 = vmul.f32 %v741, %v814
    %v891 = vmul.f32 %v742, %v802
    %v892 = vmul.f32 %v743, %v806
    %v893 = vmul.f32 %v744, %v810
    %v894 = vmul.f32 %v745, %v814
    %v895 = vmul.f32 %v746, %v802
    %v896 = vmul.f32 %v747, %v806
    %v897 = vmul.f32 %v748, %v810
    %v898 = vmul.f32 %v749, %v814
    %v899 = vmul.f32 %v750, %v802
    %v900 = vmul.f32 %v751, %v806
    %v901 = vmul.f32 %v752, %v810
    %v902 = vmul.f32 %v753, %v814
    %v903 = vmul.f32 %v754, %v802
    %v904 = vmul.f32 %v755, %v806
    %v905 = vmul.f32 %v756, %v810
    %v906 = vmul.f32 %v757, %v814
    %v907 = vmul.f32 %v758, %v802
    %v908 = vmul.f32 %v759, %v806
    %v909 = vmul.f32 %v760, %v810
    %v910 = vmul.f32 %v761, %v814
    %v911 = vmul.f32 %v762, %v802
    %v912 = vmul.f32 %v763, %v806
    %v913 = vmul.f32 %v764, %v810
    %v914 = vmul.f32 %v765, %v814
    %v915 = vmul.f32 %v766, %v802
    %v916 = vmul.f32 %v767, %v806
    %v917 = vmul.f32 %v768, %v810
    %v918 = vmul.f32 %v769, %v814
    %v919 = vmul.f32 %v770, %v802
    %v920 = vmul.f32 %v771, %v806
    %v921 = vmul.f32 %v772, %v810
    %v922 = vmul.f32 %v773, %v814
    %v923 = vmul.f32 %v774, %v802
    %v924 = vmul.f32 %v775, %v806
    %v925 = vmul.f32 %v776, %v810
    %v926 = vmul.f32 %v777, %v814
    %v927 = vmul.f32 %v778, %v802
    %v928 = vmul.f32 %v779, %v806
    %v929 = vmul.f32 %v780, %v810
    %v930 = vmul.f32 %v781, %v814
    %v931 = vmul.f32 %v782, %v802
    %v932 = vmul.f32 %v783, %v806
    %v933 = vmul.f32 %v784, %v810
    %v934 = vmul.f32 %v785, %v814
    %v935 = vmul.f32 %v786, %v802
    %v936 = vmul.f32 %v787, %v806
    %v937 = vmul.f32 %v788, %v810
    %v938 = vmul.f32 %v789, %v814
    %v939 = vmul.f32 %v790, %v802
    %v940 = vmul.f32 %v791, %v806
    %v941 = vmul.f32 %v792, %v810
    %v942 = vmul.f32 %v793, %v814
    %v943 = vmul.f32 %v794, %v802
    %v944 = vmul.f32 %v795, %v806
    %v945 = vmul.f32 %v796, %v810
    %v946 = vmul.f32 %v797, %v814
    %v947 = vadd.f32 %v819, %v820
    %v948 = vadd.f32 %v947, %v821
    %v949 = vadd.f32 %v948, %v822
    %950 = vadd.xlane.f32.xlu0 %v949
    %v951 = vpop.xlane.xlu0 %950
    %v952 = vadd.f32 %v823, %v824
    %v953 = vadd.f32 %v952, %v825
    %v954 = vadd.f32 %v953, %v826
    %955 = vadd.xlane.f32.xlu0 %v954
    %v956 = vpop.xlane.xlu0 %955
    %v957 = vadd.f32 %v827, %v828
    %v958 = vadd.f32 %v957, %v829
    %v959 = vadd.f32 %v958, %v830
    %960 = vadd.xlane.f32.xlu0 %v959
    %v961 = vpop.xlane.xlu0 %960
    %v962 = vadd.f32 %v831, %v832
    %v963 = vadd.f32 %v962, %v833
    %v964 = vadd.f32 %v963, %v834
    %965 = vadd.xlane.f32.xlu0 %v964
    %v966 = vpop.xlane.xlu0 %965
    %v967 = vadd.f32 %v835, %v836
    %v968 = vadd.f32 %v967, %v837
    %v969 = vadd.f32 %v968, %v838
    %970 = vadd.xlane.f32.xlu0 %v969
    %v971 = vpop.xlane.xlu0 %970
    %v972 = vadd.f32 %v839, %v840
    %v973 = vadd.f32 %v972, %v841
    %v974 = vadd.f32 %v973, %v842
    %975 = vadd.xlane.f32.xlu0 %v974
    %v976 = vpop.xlane.xlu0 %975
    %v977 = vadd.f32 %v843, %v844
    %v978 = vadd.f32 %v977, %v845
    %v979 = vadd.f32 %v978, %v846
    %980 = vadd.xlane.f32.xlu0 %v979
    %v981 = vpop.xlane.xlu0 %980
    %v982 = vadd.f32 %v847, %v848
    %v983 = vadd.f32 %v982, %v849
    %v984 = vadd.f32 %v983, %v850
    %985 = vadd.xlane.f32.xlu0 %v984
    %v986 = vpop.xlane.xlu0 %985
    %v987 = vadd.f32 %v851, %v852
    %v988 = vadd.f32 %v987, %v853
    %v989 = vadd.f32 %v988, %v854
    %990 = vadd.xlane.f32.xlu0 %v989
    %v991 = vpop.xlane.xlu0 %990
    %v992 = vadd.f32 %v855, %v856
    %v993 = vadd.f32 %v992, %v857
    %v994 = vadd.f32 %v993, %v858
    %995 = vadd.xlane.f32.xlu0 %v994
    %v996 = vpop.xlane.xlu0 %995
    %v997 = vadd.f32 %v859, %v860
    %v998 = vadd.f32 %v997, %v861
    %v999 = vadd.f32 %v998, %v862
    %1000 = vadd.xlane.f32.xlu0 %v999
    %v1001 = vpop.xlane.xlu0 %1000
    %v1002 = vadd.f32 %v863, %v864
    %v1003 = vadd.f32 %v1002, %v865
    %v1004 = vadd.f32 %v1003, %v866
    %1005 = vadd.xlane.f32.xlu0 %v1004
    %v1006 = vpop.xlane.xlu0 %1005
    %v1007 = vadd.f32 %v867, %v868
    %v1008 = vadd.f32 %v1007, %v869
    %v1009 = vadd.f32 %v1008, %v870
    %1010 = vadd.xlane.f32.xlu0 %v1009
    %v1011 = vpop.xlane.xlu0 %1010
    %v1012 = vadd.f32 %v871, %v872
    %v1013 = vadd.f32 %v1012, %v873
    %v1014 = vadd.f32 %v1013, %v874
    %1015 = vadd.xlane.f32.xlu0 %v1014
    %v1016 = vpop.xlane.xlu0 %1015
    %v1017 = vadd.f32 %v875, %v876
    %v1018 = vadd.f32 %v1017, %v877
    %v1019 = vadd.f32 %v1018, %v878
    %1020 = vadd.xlane.f32.xlu0 %v1019
    %v1021 = vpop.xlane.xlu0 %1020
    %v1022 = vadd.f32 %v879, %v880
    %v1023 = vadd.f32 %v1022, %v881
    %v1024 = vadd.f32 %v1023, %v882
    %1025 = vadd.xlane.f32.xlu0 %v1024
    %v1026 = vpop.xlane.xlu0 %1025
    %v1027 = vadd.f32 %v883, %v884
    %v1028 = vadd.f32 %v1027, %v885
    %v1029 = vadd.f32 %v1028, %v886
    %1030 = vadd.xlane.f32.xlu0 %v1029
    %v1031 = vpop.xlane.xlu0 %1030
    %v1032 = vadd.f32 %v887, %v888
    %v1033 = vadd.f32 %v1032, %v889
    %v1034 = vadd.f32 %v1033, %v890
    %1035 = vadd.xlane.f32.xlu0 %v1034
    %v1036 = vpop.xlane.xlu0 %1035
    %v1037 = vadd.f32 %v891, %v892
    %v1038 = vadd.f32 %v1037, %v893
    %v1039 = vadd.f32 %v1038, %v894
    %1040 = vadd.xlane.f32.xlu0 %v1039
    %v1041 = vpop.xlane.xlu0 %1040
    %v1042 = vadd.f32 %v895, %v896
    %v1043 = vadd.f32 %v1042, %v897
    %v1044 = vadd.f32 %v1043, %v898
    %1045 = vadd.xlane.f32.xlu0 %v1044
    %v1046 = vpop.xlane.xlu0 %1045
    %v1047 = vadd.f32 %v899, %v900
    %v1048 = vadd.f32 %v1047, %v901
    %v1049 = vadd.f32 %v1048, %v902
    %1050 = vadd.xlane.f32.xlu0 %v1049
    %v1051 = vpop.xlane.xlu0 %1050
    %v1052 = vadd.f32 %v903, %v904
    %v1053 = vadd.f32 %v1052, %v905
    %v1054 = vadd.f32 %v1053, %v906
    %1055 = vadd.xlane.f32.xlu0 %v1054
    %v1056 = vpop.xlane.xlu0 %1055
    %v1057 = vadd.f32 %v907, %v908
    %v1058 = vadd.f32 %v1057, %v909
    %v1059 = vadd.f32 %v1058, %v910
    %1060 = vadd.xlane.f32.xlu0 %v1059
    %v1061 = vpop.xlane.xlu0 %1060
    %v1062 = vadd.f32 %v911, %v912
    %v1063 = vadd.f32 %v1062, %v913
    %v1064 = vadd.f32 %v1063, %v914
    %1065 = vadd.xlane.f32.xlu0 %v1064
    %v1066 = vpop.xlane.xlu0 %1065
    %v1067 = vadd.f32 %v915, %v916
    %v1068 = vadd.f32 %v1067, %v917
    %v1069 = vadd.f32 %v1068, %v918
    %1070 = vadd.xlane.f32.xlu0 %v1069
    %v1071 = vpop.xlane.xlu0 %1070
    %v1072 = vadd.f32 %v919, %v920
    %v1073 = vadd.f32 %v1072, %v921
    %v1074 = vadd.f32 %v1073, %v922
    %1075 = vadd.xlane.f32.xlu0 %v1074
    %v1076 = vpop.xlane.xlu0 %1075
    %v1077 = vadd.f32 %v923, %v924
    %v1078 = vadd.f32 %v1077, %v925
    %v1079 = vadd.f32 %v1078, %v926
    %1080 = vadd.xlane.f32.xlu0 %v1079
    %v1081 = vpop.xlane.xlu0 %1080
    %v1082 = vadd.f32 %v927, %v928
    %v1083 = vadd.f32 %v1082, %v929
    %v1084 = vadd.f32 %v1083, %v930
    %1085 = vadd.xlane.f32.xlu0 %v1084
    %v1086 = vpop.xlane.xlu0 %1085
    %v1087 = vadd.f32 %v931, %v932
    %v1088 = vadd.f32 %v1087, %v933
    %v1089 = vadd.f32 %v1088, %v934
    %1090 = vadd.xlane.f32.xlu0 %v1089
    %v1091 = vpop.xlane.xlu0 %1090
    %v1092 = vadd.f32 %v935, %v936
    %v1093 = vadd.f32 %v1092, %v937
    %v1094 = vadd.f32 %v1093, %v938
    %1095 = vadd.xlane.f32.xlu0 %v1094
    %v1096 = vpop.xlane.xlu0 %1095
    %v1097 = vadd.f32 %v939, %v940
    %v1098 = vadd.f32 %v1097, %v941
    %v1099 = vadd.f32 %v1098, %v942
    %1100 = vadd.xlane.f32.xlu0 %v1099
    %v1101 = vpop.xlane.xlu0 %1100
    %v1102 = vadd.f32 %v943, %v944
    %v1103 = vadd.f32 %v1102, %v945
    %v1104 = vadd.f32 %v1103, %v946
    %1105 = vadd.xlane.f32.xlu0 %v1104
    %v1106 = vpop.xlane.xlu0 %1105
    %v1139 = vlaneseq
    %v1140 = vand.u32 %v1139, 127
    %v1141 = vlaneseq
    %v1142 = vshrl.u32 %v1141, 7
    %v1143 = vsub.s32 %v1140, %v1142
    %v1144 = vrot.slane %v951, %v1143
    %v1145 = vadd.s32 %v1140, 4294967288
    %v1146 = vlaneseq
    %v1147 = vshrl.u32 %v1146, 7
    %v1148 = vsub.s32 %v1145, %v1147
    %v1149 = vrot.slane %v956, %v1148
    %vm1150 = vcmask 130112
    %v1151 = vsel %vm1150, %v1149, %v1144
    %v1152 = vlaneseq
    %v1153 = vshrl.u32 %v1152, 7
    %v1154 = vsub.s32 %v1140, %v1153
    %v1155 = vrot.slane %v961, %v1154
    %v1156 = vlaneseq
    %v1157 = vshrl.u32 %v1156, 7
    %v1158 = vsub.s32 %v1145, %v1157
    %v1159 = vrot.slane %v966, %v1158
    %v1160 = vsel %vm1150, %v1159, %v1155
    %v1161 = vlaneseq
    %v1162 = vshrl.u32 %v1161, 7
    %v1163 = vsub.s32 %v1140, %v1162
    %v1164 = vrot.slane %v971, %v1163
    %v1165 = vlaneseq
    %v1166 = vshrl.u32 %v1165, 7
    %v1167 = vsub.s32 %v1145, %v1166
    %v1168 = vrot.slane %v976, %v1167
    %v1169 = vsel %vm1150, %v1168, %v1164
    %v1170 = vlaneseq
    %v1171 = vshrl.u32 %v1170, 7
    %v1172 = vsub.s32 %v1140, %v1171
    %v1173 = vrot.slane %v981, %v1172
    %v1174 = vlaneseq
    %v1175 = vshrl.u32 %v1174, 7
    %v1176 = vsub.s32 %v1145, %v1175
    %v1177 = vrot.slane %v986, %v1176
    %v1178 = vsel %vm1150, %v1177, %v1173
    %v1179 = vlaneseq
    %v1180 = vshrl.u32 %v1179, 7
    %v1181 = vsub.s32 %v1140, %v1180
    %v1182 = vrot.slane %v991, %v1181
    %v1183 = vlaneseq
    %v1184 = vshrl.u32 %v1183, 7
    %v1185 = vsub.s32 %v1145, %v1184
    %v1186 = vrot.slane %v996, %v1185
    %v1187 = vsel %vm1150, %v1186, %v1182
    %v1188 = vlaneseq
    %v1189 = vshrl.u32 %v1188, 7
    %v1190 = vsub.s32 %v1140, %v1189
    %v1191 = vrot.slane %v1001, %v1190
    %v1192 = vlaneseq
    %v1193 = vshrl.u32 %v1192, 7
    %v1194 = vsub.s32 %v1145, %v1193
    %v1195 = vrot.slane %v1006, %v1194
    %v1196 = vsel %vm1150, %v1195, %v1191
    %v1197 = vlaneseq
    %v1198 = vshrl.u32 %v1197, 7
    %v1199 = vsub.s32 %v1140, %v1198
    %v1200 = vrot.slane %v1011, %v1199
    %v1201 = vlaneseq
    %v1202 = vshrl.u32 %v1201, 7
    %v1203 = vsub.s32 %v1145, %v1202
    %v1204 = vrot.slane %v1016, %v1203
    %v1205 = vsel %vm1150, %v1204, %v1200
    %v1206 = vlaneseq
    %v1207 = vshrl.u32 %v1206, 7
    %v1208 = vsub.s32 %v1140, %v1207
    %v1209 = vrot.slane %v1021, %v1208
    %v1210 = vlaneseq
    %v1211 = vshrl.u32 %v1210, 7
    %v1212 = vsub.s32 %v1145, %v1211
    %v1213 = vrot.slane %v1026, %v1212
    %v1214 = vsel %vm1150, %v1213, %v1209
    %v1215 = vlaneseq
    %v1216 = vshrl.u32 %v1215, 7
    %v1217 = vsub.s32 %v1140, %v1216
    %v1218 = vrot.slane %v1031, %v1217
    %v1219 = vlaneseq
    %v1220 = vshrl.u32 %v1219, 7
    %v1221 = vsub.s32 %v1145, %v1220
    %v1222 = vrot.slane %v1036, %v1221
    %v1223 = vsel %vm1150, %v1222, %v1218
    %v1224 = vlaneseq
    %v1225 = vshrl.u32 %v1224, 7
    %v1226 = vsub.s32 %v1140, %v1225
    %v1227 = vrot.slane %v1041, %v1226
    %v1228 = vlaneseq
    %v1229 = vshrl.u32 %v1228, 7
    %v1230 = vsub.s32 %v1145, %v1229
    %v1231 = vrot.slane %v1046, %v1230
    %v1232 = vsel %vm1150, %v1231, %v1227
    %v1233 = vlaneseq
    %v1234 = vshrl.u32 %v1233, 7
    %v1235 = vsub.s32 %v1140, %v1234
    %v1236 = vrot.slane %v1051, %v1235
    %v1237 = vlaneseq
    %v1238 = vshrl.u32 %v1237, 7
    %v1239 = vsub.s32 %v1145, %v1238
    %v1240 = vrot.slane %v1056, %v1239
    %v1241 = vsel %vm1150, %v1240, %v1236
    %v1242 = vlaneseq
    %v1243 = vshrl.u32 %v1242, 7
    %v1244 = vsub.s32 %v1140, %v1243
    %v1245 = vrot.slane %v1061, %v1244
    %v1246 = vlaneseq
    %v1247 = vshrl.u32 %v1246, 7
    %v1248 = vsub.s32 %v1145, %v1247
    %v1249 = vrot.slane %v1066, %v1248
    %v1250 = vsel %vm1150, %v1249, %v1245
    %v1251 = vlaneseq
    %v1252 = vshrl.u32 %v1251, 7
    %v1253 = vsub.s32 %v1140, %v1252
    %v1254 = vrot.slane %v1071, %v1253
    %v1255 = vlaneseq
    %v1256 = vshrl.u32 %v1255, 7
    %v1257 = vsub.s32 %v1145, %v1256
    %v1258 = vrot.slane %v1076, %v1257
    %v1259 = vsel %vm1150, %v1258, %v1254
    %v1260 = vlaneseq
    %v1261 = vshrl.u32 %v1260, 7
    %v1262 = vsub.s32 %v1140, %v1261
    %v1263 = vrot.slane %v1081, %v1262
    %v1264 = vlaneseq
    %v1265 = vshrl.u32 %v1264, 7
    %v1266 = vsub.s32 %v1145, %v1265
    %v1267 = vrot.slane %v1086, %v1266
    %v1268 = vsel %vm1150, %v1267, %v1263
    %v1269 = vlaneseq
    %v1270 = vshrl.u32 %v1269, 7
    %v1271 = vsub.s32 %v1140, %v1270
    %v1272 = vrot.slane %v1091, %v1271
    %v1273 = vlaneseq
    %v1274 = vshrl.u32 %v1273, 7
    %v1275 = vsub.s32 %v1145, %v1274
    %v1276 = vrot.slane %v1096, %v1275
    %v1277 = vsel %vm1150, %v1276, %v1272
    %v1278 = vlaneseq
    %v1279 = vshrl.u32 %v1278, 7
    %v1280 = vsub.s32 %v1140, %v1279
    %v1281 = vrot.slane %v1101, %v1280
    %v1282 = vlaneseq
    %v1283 = vshrl.u32 %v1282, 7
    %v1284 = vsub.s32 %v1145, %v1283
    %v1285 = vrot.slane %v1106, %v1284
    %v1286 = vsel %vm1150, %v1285, %v1281
    %vm1287 = vcmask 1041409
    %v1288 = vsel %vm1287, %v1160, %v1151
    %vm1289 = vcmask 1042434
    %v1290 = vsel %vm1289, %v1169, %v1288
    %vm1291 = vcmask 1043459
    %v1292 = vsel %vm1291, %v1178, %v1290
    %vm1293 = vcmask 1044484
    %v1294 = vsel %vm1293, %v1187, %v1292
    %vm1295 = vcmask 1045509
    %v1296 = vsel %vm1295, %v1196, %v1294
    %vm1297 = vcmask 1046534
    %v1298 = vsel %vm1297, %v1205, %v1296
    %vm1299 = vcmask 1047559
    %v1300 = vsel %vm1299, %v1214, %v1298
    %v1301 = vsel %vm1287, %v1232, %v1223
    %v1302 = vsel %vm1289, %v1241, %v1301
    %v1303 = vsel %vm1291, %v1250, %v1302
    %v1304 = vsel %vm1293, %v1259, %v1303
    %v1305 = vsel %vm1295, %v1268, %v1304
    %v1306 = vsel %vm1297, %v1277, %v1305
    %v1307 = vsel %vm1299, %v1286, %v1306
    %vm1310 = vcmask 130048
    %v1311 = vsel %vm1310, %v1300, -inf
    %1312 = vmax.xlane.f32.xlu0 %v1311
    %v1313 = vpop.xlane.xlu0 %1312
    %v1314 = vsel %vm1310, %v1307, -inf
    %1315 = vmax.xlane.f32.xlu0 %v1314
    %v1316 = vpop.xlane.xlu0 %1315
    %v1319 = vlaneseq
    %v1320 = vshrl.u32 %v1319, 7
    %v1321 = vsub.s32 0, %v1320
    %v1322 = vrot.slane %v1313, %v1321
    %v1323 = vlaneseq
    %v1324 = vshrl.u32 %v1323, 7
    %v1325 = vsub.s32 1, %v1324
    %v1326 = vrot.slane %v1313, %v1325
    %v1327 = vlaneseq
    %v1328 = vshrl.u32 %v1327, 7
    %v1329 = vsub.s32 2, %v1328
    %v1330 = vrot.slane %v1313, %v1329
    %v1331 = vlaneseq
    %v1332 = vshrl.u32 %v1331, 7
    %v1333 = vsub.s32 3, %v1332
    %v1334 = vrot.slane %v1313, %v1333
    %v1335 = vlaneseq
    %v1336 = vshrl.u32 %v1335, 7
    %v1337 = vsub.s32 4, %v1336
    %v1338 = vrot.slane %v1313, %v1337
    %v1339 = vlaneseq
    %v1340 = vshrl.u32 %v1339, 7
    %v1341 = vsub.s32 5, %v1340
    %v1342 = vrot.slane %v1313, %v1341
    %v1343 = vlaneseq
    %v1344 = vshrl.u32 %v1343, 7
    %v1345 = vsub.s32 6, %v1344
    %v1346 = vrot.slane %v1313, %v1345
    %v1347 = vlaneseq
    %v1348 = vshrl.u32 %v1347, 7
    %v1349 = vsub.s32 7, %v1348
    %v1350 = vrot.slane %v1313, %v1349
    %v1351 = vlaneseq
    %v1352 = vshrl.u32 %v1351, 7
    %v1353 = vsub.s32 0, %v1352
    %v1354 = vrot.slane %v1316, %v1353
    %v1355 = vlaneseq
    %v1356 = vshrl.u32 %v1355, 7
    %v1357 = vsub.s32 1, %v1356
    %v1358 = vrot.slane %v1316, %v1357
    %v1359 = vlaneseq
    %v1360 = vshrl.u32 %v1359, 7
    %v1361 = vsub.s32 2, %v1360
    %v1362 = vrot.slane %v1316, %v1361
    %v1363 = vlaneseq
    %v1364 = vshrl.u32 %v1363, 7
    %v1365 = vsub.s32 3, %v1364
    %v1366 = vrot.slane %v1316, %v1365
    %v1367 = vlaneseq
    %v1368 = vshrl.u32 %v1367, 7
    %v1369 = vsub.s32 4, %v1368
    %v1370 = vrot.slane %v1316, %v1369
    %v1371 = vlaneseq
    %v1372 = vshrl.u32 %v1371, 7
    %v1373 = vsub.s32 5, %v1372
    %v1374 = vrot.slane %v1316, %v1373
    %v1375 = vlaneseq
    %v1376 = vshrl.u32 %v1375, 7
    %v1377 = vsub.s32 6, %v1376
    %v1378 = vrot.slane %v1316, %v1377
    %v1379 = vlaneseq
    %v1380 = vshrl.u32 %v1379, 7
    %v1381 = vsub.s32 7, %v1380
    %v1382 = vrot.slane %v1316, %v1381
    %v1399 = vsub.f32 %v951, %v1322
    %v1400 = vsub.f32 %v956, %v1322
    %v1401 = vsub.f32 %v961, %v1326
    %v1402 = vsub.f32 %v966, %v1326
    %v1403 = vsub.f32 %v971, %v1330
    %v1404 = vsub.f32 %v976, %v1330
    %v1405 = vsub.f32 %v981, %v1334
    %v1406 = vsub.f32 %v986, %v1334
    %v1407 = vsub.f32 %v991, %v1338
    %v1408 = vsub.f32 %v996, %v1338
    %v1409 = vsub.f32 %v1001, %v1342
    %v1410 = vsub.f32 %v1006, %v1342
    %v1411 = vsub.f32 %v1011, %v1346
    %v1412 = vsub.f32 %v1016, %v1346
    %v1413 = vsub.f32 %v1021, %v1350
    %v1414 = vsub.f32 %v1026, %v1350
    %v1415 = vsub.f32 %v1031, %v1354
    %v1416 = vsub.f32 %v1036, %v1354
    %v1417 = vsub.f32 %v1041, %v1358
    %v1418 = vsub.f32 %v1046, %v1358
    %v1419 = vsub.f32 %v1051, %v1362
    %v1420 = vsub.f32 %v1056, %v1362
    %v1421 = vsub.f32 %v1061, %v1366
    %v1422 = vsub.f32 %v1066, %v1366
    %v1423 = vsub.f32 %v1071, %v1370
    %v1424 = vsub.f32 %v1076, %v1370
    %v1425 = vsub.f32 %v1081, %v1374
    %v1426 = vsub.f32 %v1086, %v1374
    %v1427 = vsub.f32 %v1091, %v1378
    %v1428 = vsub.f32 %v1096, %v1378
    %v1429 = vsub.f32 %v1101, %v1382
    %v1430 = vsub.f32 %v1106, %v1382
    %v1431 = vmul.f32 %v1399, 1.442695
    %v1432 = vpow.pop %v1431
    %v1433 = vmul.f32 %v1400, 1.442695
    %v1434 = vpow.pop %v1433
    %v1435 = vmul.f32 %v1401, 1.442695
    %v1436 = vpow.pop %v1435
    %v1437 = vmul.f32 %v1402, 1.442695
    %v1438 = vpow.pop %v1437
    %v1439 = vmul.f32 %v1403, 1.442695
    %v1440 = vpow.pop %v1439
    %v1441 = vmul.f32 %v1404, 1.442695
    %v1442 = vpow.pop %v1441
    %v1443 = vmul.f32 %v1405, 1.442695
    %v1444 = vpow.pop %v1443
    %v1445 = vmul.f32 %v1406, 1.442695
    %v1446 = vpow.pop %v1445
    %v1447 = vmul.f32 %v1407, 1.442695
    %v1448 = vpow.pop %v1447
    %v1449 = vmul.f32 %v1408, 1.442695
    %v1450 = vpow.pop %v1449
    %v1451 = vmul.f32 %v1409, 1.442695
    %v1452 = vpow.pop %v1451
    %v1453 = vmul.f32 %v1410, 1.442695
    %v1454 = vpow.pop %v1453
    %v1455 = vmul.f32 %v1411, 1.442695
    %v1456 = vpow.pop %v1455
    %v1457 = vmul.f32 %v1412, 1.442695
    %v1458 = vpow.pop %v1457
    %v1459 = vmul.f32 %v1413, 1.442695
    %v1460 = vpow.pop %v1459
    %v1461 = vmul.f32 %v1414, 1.442695
    %v1462 = vpow.pop %v1461
    %v1463 = vmul.f32 %v1415, 1.442695
    %v1464 = vpow.pop %v1463
    %v1465 = vmul.f32 %v1416, 1.442695
    %v1466 = vpow.pop %v1465
    %v1467 = vmul.f32 %v1417, 1.442695
    %v1468 = vpow.pop %v1467
    %v1469 = vmul.f32 %v1418, 1.442695
    %v1470 = vpow.pop %v1469
    %v1471 = vmul.f32 %v1419, 1.442695
    %v1472 = vpow.pop %v1471
    %v1473 = vmul.f32 %v1420, 1.442695
    %v1474 = vpow.pop %v1473
    %v1475 = vmul.f32 %v1421, 1.442695
    %v1476 = vpow.pop %v1475
    %v1477 = vmul.f32 %v1422, 1.442695
    %v1478 = vpow.pop %v1477
    %v1479 = vmul.f32 %v1423, 1.442695
    %v1480 = vpow.pop %v1479
    %v1481 = vmul.f32 %v1424, 1.442695
    %v1482 = vpow.pop %v1481
    %v1483 = vmul.f32 %v1425, 1.442695
    %v1484 = vpow.pop %v1483
    %v1485 = vmul.f32 %v1426, 1.442695
    %v1486 = vpow.pop %v1485
    %v1487 = vmul.f32 %v1427, 1.442695
    %v1488 = vpow.pop %v1487
    %v1489 = vmul.f32 %v1428, 1.442695
    %v1490 = vpow.pop %v1489
    %v1491 = vmul.f32 %v1429, 1.442695
    %v1492 = vpow.pop %v1491
    %v1493 = vmul.f32 %v1430, 1.442695
    %v1494 = vpow.pop %v1493
    %1527 = vset.pattern.permute.xlu0 0
    %1528 = vperm.xlu0 %1527, %v1432
    %v1529 = vpop.permute.xlu0 %1528
    %1530 = vset.pattern.permute.xlu0 0
    %1531 = vperm.xlu0 %1530, %v1434
    %v1532 = vpop.permute.xlu0 %1531
    %1533 = vset.pattern.permute.xlu0 0
    %1534 = vperm.xlu0 %1533, %v1436
    %v1535 = vpop.permute.xlu0 %1534
    %1536 = vset.pattern.permute.xlu0 0
    %1537 = vperm.xlu0 %1536, %v1438
    %v1538 = vpop.permute.xlu0 %1537
    %1539 = vset.pattern.permute.xlu0 0
    %1540 = vperm.xlu0 %1539, %v1440
    %v1541 = vpop.permute.xlu0 %1540
    %1542 = vset.pattern.permute.xlu0 0
    %1543 = vperm.xlu0 %1542, %v1442
    %v1544 = vpop.permute.xlu0 %1543
    %1545 = vset.pattern.permute.xlu0 0
    %1546 = vperm.xlu0 %1545, %v1444
    %v1547 = vpop.permute.xlu0 %1546
    %1548 = vset.pattern.permute.xlu0 0
    %1549 = vperm.xlu0 %1548, %v1446
    %v1550 = vpop.permute.xlu0 %1549
    %1551 = vset.pattern.permute.xlu0 0
    %1552 = vperm.xlu0 %1551, %v1448
    %v1553 = vpop.permute.xlu0 %1552
    %1554 = vset.pattern.permute.xlu0 0
    %1555 = vperm.xlu0 %1554, %v1450
    %v1556 = vpop.permute.xlu0 %1555
    %1557 = vset.pattern.permute.xlu0 0
    %1558 = vperm.xlu0 %1557, %v1452
    %v1559 = vpop.permute.xlu0 %1558
    %1560 = vset.pattern.permute.xlu0 0
    %1561 = vperm.xlu0 %1560, %v1454
    %v1562 = vpop.permute.xlu0 %1561
    %1563 = vset.pattern.permute.xlu0 0
    %1564 = vperm.xlu0 %1563, %v1456
    %v1565 = vpop.permute.xlu0 %1564
    %1566 = vset.pattern.permute.xlu0 0
    %1567 = vperm.xlu0 %1566, %v1458
    %v1568 = vpop.permute.xlu0 %1567
    %1569 = vset.pattern.permute.xlu0 0
    %1570 = vperm.xlu0 %1569, %v1460
    %v1571 = vpop.permute.xlu0 %1570
    %1572 = vset.pattern.permute.xlu0 0
    %1573 = vperm.xlu0 %1572, %v1462
    %v1574 = vpop.permute.xlu0 %1573
    %1575 = vset.pattern.permute.xlu0 0
    %1576 = vperm.xlu0 %1575, %v1464
    %v1577 = vpop.permute.xlu0 %1576
    %1578 = vset.pattern.permute.xlu0 0
    %1579 = vperm.xlu0 %1578, %v1466
    %v1580 = vpop.permute.xlu0 %1579
    %1581 = vset.pattern.permute.xlu0 0
    %1582 = vperm.xlu0 %1581, %v1468
    %v1583 = vpop.permute.xlu0 %1582
    %1584 = vset.pattern.permute.xlu0 0
    %1585 = vperm.xlu0 %1584, %v1470
    %v1586 = vpop.permute.xlu0 %1585
    %1587 = vset.pattern.permute.xlu0 0
    %1588 = vperm.xlu0 %1587, %v1472
    %v1589 = vpop.permute.xlu0 %1588
    %1590 = vset.pattern.permute.xlu0 0
    %1591 = vperm.xlu0 %1590, %v1474
    %v1592 = vpop.permute.xlu0 %1591
    %1593 = vset.pattern.permute.xlu0 0
    %1594 = vperm.xlu0 %1593, %v1476
    %v1595 = vpop.permute.xlu0 %1594
    %1596 = vset.pattern.permute.xlu0 0
    %1597 = vperm.xlu0 %1596, %v1478
    %v1598 = vpop.permute.xlu0 %1597
    %1599 = vset.pattern.permute.xlu0 0
    %1600 = vperm.xlu0 %1599, %v1480
    %v1601 = vpop.permute.xlu0 %1600
    %1602 = vset.pattern.permute.xlu0 0
    %1603 = vperm.xlu0 %1602, %v1482
    %v1604 = vpop.permute.xlu0 %1603
    %1605 = vset.pattern.permute.xlu0 0
    %1606 = vperm.xlu0 %1605, %v1484
    %v1607 = vpop.permute.xlu0 %1606
    %1608 = vset.pattern.permute.xlu0 0
    %1609 = vperm.xlu0 %1608, %v1486
    %v1610 = vpop.permute.xlu0 %1609
    %1611 = vset.pattern.permute.xlu0 0
    %1612 = vperm.xlu0 %1611, %v1488
    %v1613 = vpop.permute.xlu0 %1612
    %1614 = vset.pattern.permute.xlu0 0
    %1615 = vperm.xlu0 %1614, %v1490
    %v1616 = vpop.permute.xlu0 %1615
    %1617 = vset.pattern.permute.xlu0 0
    %1618 = vperm.xlu0 %1617, %v1492
    %v1619 = vpop.permute.xlu0 %1618
    %1620 = vset.pattern.permute.xlu0 0
    %1621 = vperm.xlu0 %1620, %v1494
    %v1622 = vpop.permute.xlu0 %1621
    %v1623 = vlaneseq
    %v1624 = vshrl.u32 %v1623, 7
    %v1625 = vsub.s32 %v1140, %v1624
    %v1626 = vrot.slane %v1529, %v1625
    %v1627 = vlaneseq
    %v1628 = vshrl.u32 %v1627, 7
    %v1629 = vsub.s32 %v1145, %v1628
    %v1630 = vrot.slane %v1532, %v1629
    %v1631 = vsel %vm1150, %v1630, %v1626
    %v1632 = vlaneseq
    %v1633 = vshrl.u32 %v1632, 7
    %v1634 = vsub.s32 %v1140, %v1633
    %v1635 = vrot.slane %v1535, %v1634
    %v1636 = vlaneseq
    %v1637 = vshrl.u32 %v1636, 7
    %v1638 = vsub.s32 %v1145, %v1637
    %v1639 = vrot.slane %v1538, %v1638
    %v1640 = vsel %vm1150, %v1639, %v1635
    %v1641 = vlaneseq
    %v1642 = vshrl.u32 %v1641, 7
    %v1643 = vsub.s32 %v1140, %v1642
    %v1644 = vrot.slane %v1541, %v1643
    %v1645 = vlaneseq
    %v1646 = vshrl.u32 %v1645, 7
    %v1647 = vsub.s32 %v1145, %v1646
    %v1648 = vrot.slane %v1544, %v1647
    %v1649 = vsel %vm1150, %v1648, %v1644
    %v1650 = vlaneseq
    %v1651 = vshrl.u32 %v1650, 7
    %v1652 = vsub.s32 %v1140, %v1651
    %v1653 = vrot.slane %v1547, %v1652
    %v1654 = vlaneseq
    %v1655 = vshrl.u32 %v1654, 7
    %v1656 = vsub.s32 %v1145, %v1655
    %v1657 = vrot.slane %v1550, %v1656
    %v1658 = vsel %vm1150, %v1657, %v1653
    %v1659 = vlaneseq
    %v1660 = vshrl.u32 %v1659, 7
    %v1661 = vsub.s32 %v1140, %v1660
    %v1662 = vrot.slane %v1553, %v1661
    %v1663 = vlaneseq
    %v1664 = vshrl.u32 %v1663, 7
    %v1665 = vsub.s32 %v1145, %v1664
    %v1666 = vrot.slane %v1556, %v1665
    %v1667 = vsel %vm1150, %v1666, %v1662
    %v1668 = vlaneseq
    %v1669 = vshrl.u32 %v1668, 7
    %v1670 = vsub.s32 %v1140, %v1669
    %v1671 = vrot.slane %v1559, %v1670
    %v1672 = vlaneseq
    %v1673 = vshrl.u32 %v1672, 7
    %v1674 = vsub.s32 %v1145, %v1673
    %v1675 = vrot.slane %v1562, %v1674
    %v1676 = vsel %vm1150, %v1675, %v1671
    %v1677 = vlaneseq
    %v1678 = vshrl.u32 %v1677, 7
    %v1679 = vsub.s32 %v1140, %v1678
    %v1680 = vrot.slane %v1565, %v1679
    %v1681 = vlaneseq
    %v1682 = vshrl.u32 %v1681, 7
    %v1683 = vsub.s32 %v1145, %v1682
    %v1684 = vrot.slane %v1568, %v1683
    %v1685 = vsel %vm1150, %v1684, %v1680
    %v1686 = vlaneseq
    %v1687 = vshrl.u32 %v1686, 7
    %v1688 = vsub.s32 %v1140, %v1687
    %v1689 = vrot.slane %v1571, %v1688
    %v1690 = vlaneseq
    %v1691 = vshrl.u32 %v1690, 7
    %v1692 = vsub.s32 %v1145, %v1691
    %v1693 = vrot.slane %v1574, %v1692
    %v1694 = vsel %vm1150, %v1693, %v1689
    %v1695 = vlaneseq
    %v1696 = vshrl.u32 %v1695, 7
    %v1697 = vsub.s32 %v1140, %v1696
    %v1698 = vrot.slane %v1577, %v1697
    %v1699 = vlaneseq
    %v1700 = vshrl.u32 %v1699, 7
    %v1701 = vsub.s32 %v1145, %v1700
    %v1702 = vrot.slane %v1580, %v1701
    %v1703 = vsel %vm1150, %v1702, %v1698
    %v1704 = vlaneseq
    %v1705 = vshrl.u32 %v1704, 7
    %v1706 = vsub.s32 %v1140, %v1705
    %v1707 = vrot.slane %v1583, %v1706
    %v1708 = vlaneseq
    %v1709 = vshrl.u32 %v1708, 7
    %v1710 = vsub.s32 %v1145, %v1709
    %v1711 = vrot.slane %v1586, %v1710
    %v1712 = vsel %vm1150, %v1711, %v1707
    %v1713 = vlaneseq
    %v1714 = vshrl.u32 %v1713, 7
    %v1715 = vsub.s32 %v1140, %v1714
    %v1716 = vrot.slane %v1589, %v1715
    %v1717 = vlaneseq
    %v1718 = vshrl.u32 %v1717, 7
    %v1719 = vsub.s32 %v1145, %v1718
    %v1720 = vrot.slane %v1592, %v1719
    %v1721 = vsel %vm1150, %v1720, %v1716
    %v1722 = vlaneseq
    %v1723 = vshrl.u32 %v1722, 7
    %v1724 = vsub.s32 %v1140, %v1723
    %v1725 = vrot.slane %v1595, %v1724
    %v1726 = vlaneseq
    %v1727 = vshrl.u32 %v1726, 7
    %v1728 = vsub.s32 %v1145, %v1727
    %v1729 = vrot.slane %v1598, %v1728
    %v1730 = vsel %vm1150, %v1729, %v1725
    %v1731 = vlaneseq
    %v1732 = vshrl.u32 %v1731, 7
    %v1733 = vsub.s32 %v1140, %v1732
    %v1734 = vrot.slane %v1601, %v1733
    %v1735 = vlaneseq
    %v1736 = vshrl.u32 %v1735, 7
    %v1737 = vsub.s32 %v1145, %v1736
    %v1738 = vrot.slane %v1604, %v1737
    %v1739 = vsel %vm1150, %v1738, %v1734
    %v1740 = vlaneseq
    %v1741 = vshrl.u32 %v1740, 7
    %v1742 = vsub.s32 %v1140, %v1741
    %v1743 = vrot.slane %v1607, %v1742
    %v1744 = vlaneseq
    %v1745 = vshrl.u32 %v1744, 7
    %v1746 = vsub.s32 %v1145, %v1745
    %v1747 = vrot.slane %v1610, %v1746
    %v1748 = vsel %vm1150, %v1747, %v1743
    %v1749 = vlaneseq
    %v1750 = vshrl.u32 %v1749, 7
    %v1751 = vsub.s32 %v1140, %v1750
    %v1752 = vrot.slane %v1613, %v1751
    %v1753 = vlaneseq
    %v1754 = vshrl.u32 %v1753, 7
    %v1755 = vsub.s32 %v1145, %v1754
    %v1756 = vrot.slane %v1616, %v1755
    %v1757 = vsel %vm1150, %v1756, %v1752
    %v1758 = vlaneseq
    %v1759 = vshrl.u32 %v1758, 7
    %v1760 = vsub.s32 %v1140, %v1759
    %v1761 = vrot.slane %v1619, %v1760
    %v1762 = vlaneseq
    %v1763 = vshrl.u32 %v1762, 7
    %v1764 = vsub.s32 %v1145, %v1763
    %v1765 = vrot.slane %v1622, %v1764
    %v1766 = vsel %vm1150, %v1765, %v1761
    %v1767 = vsel %vm1287, %v1640, %v1631
    %v1768 = vsel %vm1289, %v1649, %v1767
    %v1769 = vsel %vm1291, %v1658, %v1768
    %v1770 = vsel %vm1293, %v1667, %v1769
    %v1771 = vsel %vm1295, %v1676, %v1770
    %v1772 = vsel %vm1297, %v1685, %v1771
    %v1773 = vsel %vm1299, %v1694, %v1772
    %v1774 = vsel %vm1287, %v1712, %v1703
    %v1775 = vsel %vm1289, %v1721, %v1774
    %v1776 = vsel %vm1291, %v1730, %v1775
    %v1777 = vsel %vm1293, %v1739, %v1776
    %v1778 = vsel %vm1295, %v1748, %v1777
    %v1779 = vsel %vm1297, %v1757, %v1778
    %v1780 = vsel %vm1299, %v1766, %v1779
    %v1783 = vsel %vm1310, %v1773, 0.0
    %1784 = vadd.xlane.f32.xlu0 %v1783
    %v1785 = vpop.xlane.xlu0 %1784
    %v1786 = vsel %vm1310, %v1780, 0.0
    %1787 = vadd.xlane.f32.xlu0 %v1786
    %v1788 = vpop.xlane.xlu0 %1787
    %v1791 = vlaneseq
    %v1792 = vshrl.u32 %v1791, 7
    %v1793 = vsub.s32 0, %v1792
    %v1794 = vrot.slane %v1785, %v1793
    %v1795 = vlaneseq
    %v1796 = vshrl.u32 %v1795, 7
    %v1797 = vsub.s32 1, %v1796
    %v1798 = vrot.slane %v1785, %v1797
    %v1799 = vlaneseq
    %v1800 = vshrl.u32 %v1799, 7
    %v1801 = vsub.s32 2, %v1800
    %v1802 = vrot.slane %v1785, %v1801
    %v1803 = vlaneseq
    %v1804 = vshrl.u32 %v1803, 7
    %v1805 = vsub.s32 3, %v1804
    %v1806 = vrot.slane %v1785, %v1805
    %v1807 = vlaneseq
    %v1808 = vshrl.u32 %v1807, 7
    %v1809 = vsub.s32 4, %v1808
    %v1810 = vrot.slane %v1785, %v1809
    %v1811 = vlaneseq
    %v1812 = vshrl.u32 %v1811, 7
    %v1813 = vsub.s32 5, %v1812
    %v1814 = vrot.slane %v1785, %v1813
    %v1815 = vlaneseq
    %v1816 = vshrl.u32 %v1815, 7
    %v1817 = vsub.s32 6, %v1816
    %v1818 = vrot.slane %v1785, %v1817
    %v1819 = vlaneseq
    %v1820 = vshrl.u32 %v1819, 7
    %v1821 = vsub.s32 7, %v1820
    %v1822 = vrot.slane %v1785, %v1821
    %v1823 = vlaneseq
    %v1824 = vshrl.u32 %v1823, 7
    %v1825 = vsub.s32 0, %v1824
    %v1826 = vrot.slane %v1788, %v1825
    %v1827 = vlaneseq
    %v1828 = vshrl.u32 %v1827, 7
    %v1829 = vsub.s32 1, %v1828
    %v1830 = vrot.slane %v1788, %v1829
    %v1831 = vlaneseq
    %v1832 = vshrl.u32 %v1831, 7
    %v1833 = vsub.s32 2, %v1832
    %v1834 = vrot.slane %v1788, %v1833
    %v1835 = vlaneseq
    %v1836 = vshrl.u32 %v1835, 7
    %v1837 = vsub.s32 3, %v1836
    %v1838 = vrot.slane %v1788, %v1837
    %v1839 = vlaneseq
    %v1840 = vshrl.u32 %v1839, 7
    %v1841 = vsub.s32 4, %v1840
    %v1842 = vrot.slane %v1788, %v1841
    %v1843 = vlaneseq
    %v1844 = vshrl.u32 %v1843, 7
    %v1845 = vsub.s32 5, %v1844
    %v1846 = vrot.slane %v1788, %v1845
    %v1847 = vlaneseq
    %v1848 = vshrl.u32 %v1847, 7
    %v1849 = vsub.s32 6, %v1848
    %v1850 = vrot.slane %v1788, %v1849
    %v1851 = vlaneseq
    %v1852 = vshrl.u32 %v1851, 7
    %v1853 = vsub.s32 7, %v1852
    %v1854 = vrot.slane %v1788, %v1853
    %v1871 = vrcp.pop %v1794
    %v1872 = vmul.f32 %v1432, %v1871
    %v1873 = vmul.f32 %v1434, %v1871
    %v1874 = vrcp.pop %v1798
    %v1875 = vmul.f32 %v1436, %v1874
    %v1876 = vmul.f32 %v1438, %v1874
    %v1877 = vrcp.pop %v1802
    %v1878 = vmul.f32 %v1440, %v1877
    %v1879 = vmul.f32 %v1442, %v1877
    %v1880 = vrcp.pop %v1806
    %v1881 = vmul.f32 %v1444, %v1880
    %v1882 = vmul.f32 %v1446, %v1880
    %v1883 = vrcp.pop %v1810
    %v1884 = vmul.f32 %v1448, %v1883
    %v1885 = vmul.f32 %v1450, %v1883
    %v1886 = vrcp.pop %v1814
    %v1887 = vmul.f32 %v1452, %v1886
    %v1888 = vmul.f32 %v1454, %v1886
    %v1889 = vrcp.pop %v1818
    %v1890 = vmul.f32 %v1456, %v1889
    %v1891 = vmul.f32 %v1458, %v1889
    %v1892 = vrcp.pop %v1822
    %v1893 = vmul.f32 %v1460, %v1892
    %v1894 = vmul.f32 %v1462, %v1892
    %v1895 = vrcp.pop %v1826
    %v1896 = vmul.f32 %v1464, %v1895
    %v1897 = vmul.f32 %v1466, %v1895
    %v1898 = vrcp.pop %v1830
    %v1899 = vmul.f32 %v1468, %v1898
    %v1900 = vmul.f32 %v1470, %v1898
    %v1901 = vrcp.pop %v1834
    %v1902 = vmul.f32 %v1472, %v1901
    %v1903 = vmul.f32 %v1474, %v1901
    %v1904 = vrcp.pop %v1838
    %v1905 = vmul.f32 %v1476, %v1904
    %v1906 = vmul.f32 %v1478, %v1904
    %v1907 = vrcp.pop %v1842
    %v1908 = vmul.f32 %v1480, %v1907
    %v1909 = vmul.f32 %v1482, %v1907
    %v1910 = vrcp.pop %v1846
    %v1911 = vmul.f32 %v1484, %v1910
    %v1912 = vmul.f32 %v1486, %v1910
    %v1913 = vrcp.pop %v1850
    %v1914 = vmul.f32 %v1488, %v1913
    %v1915 = vmul.f32 %v1490, %v1913
    %v1916 = vrcp.pop %v1854
    %v1917 = vmul.f32 %v1492, %v1916
    %v1918 = vmul.f32 %v1494, %v1916
    %v1919 = vpack.c.bf16 %v1873, %v1872
    %v1920 = vpack.c.bf16 %v1876, %v1875
    %v1921 = vpack.c.bf16 %v1879, %v1878
    %v1922 = vpack.c.bf16 %v1882, %v1881
    %v1923 = vpack.c.bf16 %v1885, %v1884
    %v1924 = vpack.c.bf16 %v1888, %v1887
    %v1925 = vpack.c.bf16 %v1891, %v1890
    %v1926 = vpack.c.bf16 %v1894, %v1893
    %v1927 = vpack.c.bf16 %v1897, %v1896
    %v1928 = vpack.c.bf16 %v1900, %v1899
    %v1929 = vpack.c.bf16 %v1903, %v1902
    %v1930 = vpack.c.bf16 %v1906, %v1905
    %v1931 = vpack.c.bf16 %v1909, %v1908
    %v1932 = vpack.c.bf16 %v1912, %v1911
    %v1933 = vpack.c.bf16 %v1915, %v1914
    %v1934 = vpack.c.bf16 %v1918, %v1917
    %v1936 = vunpack.c.l.b16 %v1919
    %v1937 = vunpack.c.h.b16 %v1919
    %1938 = vset.pattern.permute.xlu0 0
    %1939 = vperm.xlu0 %1938, %v1936
    %v1940 = vpop.permute.xlu0 %1939
    %1941 = vset.pattern.permute.xlu0 0
    %1942 = vperm.xlu0 %1941, %v1937
    %v1943 = vpop.permute.xlu0 %1942
    %v1944 = vlaneseq
    %v1945 = vshrl.u32 %v1944, 7
    %v1946 = vsub.s32 %v1140, %v1945
    %v1947 = vrot.slane %v1940, %v1946
    %v1948 = vlaneseq
    %v1949 = vshrl.u32 %v1948, 7
    %v1950 = vsub.s32 %v1145, %v1949
    %v1951 = vrot.slane %v1943, %v1950
    %v1952 = vsel %vm1150, %v1951, %v1947
    %v1953 = vpack.c.b16 %v1952, %v1952
    %v1955 = vsel %vm1310, %v1953, 0
    %1957 = vmatprep.subr.bf16.mxu0 0
    %1958 = vmatpush1.bf16.msra.mxu0 %v118
    %1959 = vmatprep.subr.bf16.mxu0 0
    %1960 = vmatpush1.bf16.msra.mxu0 0
    %1961 = vmatprep.subr.bf16.mxu0 0
    %1962 = vmatpush1.bf16.msra.mxu0 0
    %1963 = vmatprep.subr.bf16.mxu0 0
    %1964 = vmatpush1.bf16.msra.mxu0 0
    %1965 = vmatprep.subr.bf16.mxu0 0
    %1966 = vmatpush1.bf16.msra.mxu0 0
    %1967 = vmatprep.subr.bf16.mxu0 0
    %1968 = vmatpush1.bf16.msra.mxu0 0
    %1969 = vmatprep.subr.bf16.mxu0 0
    %1970 = vmatpush1.bf16.msra.mxu0 0
    %1971 = vmatprep.subr.bf16.mxu0 0
    %1972 = vmatpush1.bf16.msra.mxu0 0
    %1973 = vmatprep.subr.bf16.mxu0 0
    %1974 = vmatpush1.bf16.msra.mxu0 0
    %1975 = vmatprep.subr.bf16.mxu0 0
    %1976 = vmatpush1.bf16.msra.mxu0 0
    %1977 = vmatprep.subr.bf16.mxu0 0
    %1978 = vmatpush1.bf16.msra.mxu0 0
    %1979 = vmatprep.subr.bf16.mxu0 0
    %1980 = vmatpush1.bf16.msra.mxu0 0
    %1981 = vmatprep.subr.bf16.mxu0 0
    %1982 = vmatpush1.bf16.msra.mxu0 0
    %1983 = vmatprep.subr.bf16.mxu0 0
    %1984 = vmatpush1.bf16.msra.mxu0 0
    %1985 = vmatprep.subr.bf16.mxu0 0
    %1986 = vmatpush1.bf16.msra.mxu0 0
    %1987 = vmatprep.subr.bf16.mxu0 0
    %1988 = vmatpush1.bf16.msra.mxu0 0
    %1989 = vmatprep.mubr.bf16.mxu0 0
    %1990 = vmatmul.mubr.bf16.gmra.mrb[0].mxu0 %v1955
    %v1991 = vpop.f32.mrb[0].mxu0
    %v1992 = vadd.f32 0.0, %v1991
    %v1993 = vpop.f32.mrb[0].mxu0
    %v1994 = vpop.f32.mrb[0].mxu0
    %v1995 = vpop.f32.mrb[0].mxu0
    %1996 = vdwg.mxu0
    %v1998 = vunpack.c.l.b16 %v1920
    %v1999 = vunpack.c.h.b16 %v1920
    %2000 = vset.pattern.permute.xlu0 0
    %2001 = vperm.xlu0 %2000, %v1998
    %v2002 = vpop.permute.xlu0 %2001
    %2003 = vset.pattern.permute.xlu0 0
    %2004 = vperm.xlu0 %2003, %v1999
    %v2005 = vpop.permute.xlu0 %2004
    %v2006 = vlaneseq
    %v2007 = vshrl.u32 %v2006, 7
    %v2008 = vsub.s32 %v1140, %v2007
    %v2009 = vrot.slane %v2002, %v2008
    %v2010 = vlaneseq
    %v2011 = vshrl.u32 %v2010, 7
    %v2012 = vsub.s32 %v1145, %v2011
    %v2013 = vrot.slane %v2005, %v2012
    %v2014 = vsel %vm1150, %v2013, %v2009
    %v2015 = vpack.c.b16 %v2014, %v2014
    %v2017 = vsel %vm1310, %v2015, 0
    %2019 = vmatprep.subr.bf16.mxu0 0
    %2020 = vmatpush1.bf16.msra.mxu0 %v119
    %2021 = vmatprep.subr.bf16.mxu0 0
    %2022 = vmatpush1.bf16.msra.mxu0 0
    %2023 = vmatprep.subr.bf16.mxu0 0
    %2024 = vmatpush1.bf16.msra.mxu0 0
    %2025 = vmatprep.subr.bf16.mxu0 0
    %2026 = vmatpush1.bf16.msra.mxu0 0
    %2027 = vmatprep.subr.bf16.mxu0 0
    %2028 = vmatpush1.bf16.msra.mxu0 0
    %2029 = vmatprep.subr.bf16.mxu0 0
    %2030 = vmatpush1.bf16.msra.mxu0 0
    %2031 = vmatprep.subr.bf16.mxu0 0
    %2032 = vmatpush1.bf16.msra.mxu0 0
    %2033 = vmatprep.subr.bf16.mxu0 0
    %2034 = vmatpush1.bf16.msra.mxu0 0
    %2035 = vmatprep.subr.bf16.mxu0 0
    %2036 = vmatpush1.bf16.msra.mxu0 0
    %2037 = vmatprep.subr.bf16.mxu0 0
    %2038 = vmatpush1.bf16.msra.mxu0 0
    %2039 = vmatprep.subr.bf16.mxu0 0
    %2040 = vmatpush1.bf16.msra.mxu0 0
    %2041 = vmatprep.subr.bf16.mxu0 0
    %2042 = vmatpush1.bf16.msra.mxu0 0
    %2043 = vmatprep.subr.bf16.mxu0 0
    %2044 = vmatpush1.bf16.msra.mxu0 0
    %2045 = vmatprep.subr.bf16.mxu0 0
    %2046 = vmatpush1.bf16.msra.mxu0 0
    %2047 = vmatprep.subr.bf16.mxu0 0
    %2048 = vmatpush1.bf16.msra.mxu0 0
    %2049 = vmatprep.subr.bf16.mxu0 0
    %2050 = vmatpush1.bf16.msra.mxu0 0
    %2051 = vmatprep.mubr.bf16.mxu0 0
    %2052 = vmatmul.mubr.bf16.gmra.mrb[0].mxu0 %v2017
    %v2053 = vpop.f32.mrb[0].mxu0
    %v2054 = vadd.f32 0.0, %v2053
    %v2055 = vpop.f32.mrb[0].mxu0
    %v2056 = vpop.f32.mrb[0].mxu0
    %v2057 = vpop.f32.mrb[0].mxu0
    %2058 = vdwg.mxu0
    %v2060 = vunpack.c.l.b16 %v1921
    %v2061 = vunpack.c.h.b16 %v1921
    %2062 = vset.pattern.permute.xlu0 0
    %2063 = vperm.xlu0 %2062, %v2060
    %v2064 = vpop.permute.xlu0 %2063
    %2065 = vset.pattern.permute.xlu0 0
    %2066 = vperm.xlu0 %2065, %v2061
    %v2067 = vpop.permute.xlu0 %2066
    %v2068 = vlaneseq
    %v2069 = vshrl.u32 %v2068, 7
    %v2070 = vsub.s32 %v1140, %v2069
    %v2071 = vrot.slane %v2064, %v2070
    %v2072 = vlaneseq
    %v2073 = vshrl.u32 %v2072, 7
    %v2074 = vsub.s32 %v1145, %v2073
    %v2075 = vrot.slane %v2067, %v2074
    %v2076 = vsel %vm1150, %v2075, %v2071
    %v2077 = vpack.c.b16 %v2076, %v2076
    %v2079 = vsel %vm1310, %v2077, 0
    %2081 = vmatprep.subr.bf16.mxu0 0
    %2082 = vmatpush1.bf16.msra.mxu0 %v120
    %2083 = vmatprep.subr.bf16.mxu0 0
    %2084 = vmatpush1.bf16.msra.mxu0 0
    %2085 = vmatprep.subr.bf16.mxu0 0
    %2086 = vmatpush1.bf16.msra.mxu0 0
    %2087 = vmatprep.subr.bf16.mxu0 0
    %2088 = vmatpush1.bf16.msra.mxu0 0
    %2089 = vmatprep.subr.bf16.mxu0 0
    %2090 = vmatpush1.bf16.msra.mxu0 0
    %2091 = vmatprep.subr.bf16.mxu0 0
    %2092 = vmatpush1.bf16.msra.mxu0 0
    %2093 = vmatprep.subr.bf16.mxu0 0
    %2094 = vmatpush1.bf16.msra.mxu0 0
    %2095 = vmatprep.subr.bf16.mxu0 0
    %2096 = vmatpush1.bf16.msra.mxu0 0
    %2097 = vmatprep.subr.bf16.mxu0 0
    %2098 = vmatpush1.bf16.msra.mxu0 0
    %2099 = vmatprep.subr.bf16.mxu0 0
    %2100 = vmatpush1.bf16.msra.mxu0 0
    %2101 = vmatprep.subr.bf16.mxu0 0
    %2102 = vmatpush1.bf16.msra.mxu0 0
    %2103 = vmatprep.subr.bf16.mxu0 0
    %2104 = vmatpush1.bf16.msra.mxu0 0
    %2105 = vmatprep.subr.bf16.mxu0 0
    %2106 = vmatpush1.bf16.msra.mxu0 0
    %2107 = vmatprep.subr.bf16.mxu0 0
    %2108 = vmatpush1.bf16.msra.mxu0 0
    %2109 = vmatprep.subr.bf16.mxu0 0
    %2110 = vmatpush1.bf16.msra.mxu0 0
    %2111 = vmatprep.subr.bf16.mxu0 0
    %2112 = vmatpush1.bf16.msra.mxu0 0
    %2113 = vmatprep.mubr.bf16.mxu0 0
    %2114 = vmatmul.mubr.bf16.gmra.mrb[0].mxu0 %v2079
    %v2115 = vpop.f32.mrb[0].mxu0
    %v2116 = vadd.f32 0.0, %v2115
    %v2117 = vpop.f32.mrb[0].mxu0
    %v2118 = vpop.f32.mrb[0].mxu0
    %v2119 = vpop.f32.mrb[0].mxu0
    %2120 = vdwg.mxu0
    %v2122 = vunpack.c.l.b16 %v1922
    %v2123 = vunpack.c.h.b16 %v1922
    %2124 = vset.pattern.permute.xlu0 0
    %2125 = vperm.xlu0 %2124, %v2122
    %v2126 = vpop.permute.xlu0 %2125
    %2127 = vset.pattern.permute.xlu0 0
    %2128 = vperm.xlu0 %2127, %v2123
    %v2129 = vpop.permute.xlu0 %2128
    %v2130 = vlaneseq
    %v2131 = vshrl.u32 %v2130, 7
    %v2132 = vsub.s32 %v1140, %v2131
    %v2133 = vrot.slane %v2126, %v2132
    %v2134 = vlaneseq
    %v2135 = vshrl.u32 %v2134, 7
    %v2136 = vsub.s32 %v1145, %v2135
    %v2137 = vrot.slane %v2129, %v2136
    %v2138 = vsel %vm1150, %v2137, %v2133
    %v2139 = vpack.c.b16 %v2138, %v2138
    %v2141 = vsel %vm1310, %v2139, 0
    %2143 = vmatprep.subr.bf16.mxu0 0
    %2144 = vmatpush1.bf16.msra.mxu0 %v121
    %2145 = vmatprep.subr.bf16.mxu0 0
    %2146 = vmatpush1.bf16.msra.mxu0 0
    %2147 = vmatprep.subr.bf16.mxu0 0
    %2148 = vmatpush1.bf16.msra.mxu0 0
    %2149 = vmatprep.subr.bf16.mxu0 0
    %2150 = vmatpush1.bf16.msra.mxu0 0
    %2151 = vmatprep.subr.bf16.mxu0 0
    %2152 = vmatpush1.bf16.msra.mxu0 0
    %2153 = vmatprep.subr.bf16.mxu0 0
    %2154 = vmatpush1.bf16.msra.mxu0 0
    %2155 = vmatprep.subr.bf16.mxu0 0
    %2156 = vmatpush1.bf16.msra.mxu0 0
    %2157 = vmatprep.subr.bf16.mxu0 0
    %2158 = vmatpush1.bf16.msra.mxu0 0
    %2159 = vmatprep.subr.bf16.mxu0 0
    %2160 = vmatpush1.bf16.msra.mxu0 0
    %2161 = vmatprep.subr.bf16.mxu0 0
    %2162 = vmatpush1.bf16.msra.mxu0 0
    %2163 = vmatprep.subr.bf16.mxu0 0
    %2164 = vmatpush1.bf16.msra.mxu0 0
    %2165 = vmatprep.subr.bf16.mxu0 0
    %2166 = vmatpush1.bf16.msra.mxu0 0
    %2167 = vmatprep.subr.bf16.mxu0 0
    %2168 = vmatpush1.bf16.msra.mxu0 0
    %2169 = vmatprep.subr.bf16.mxu0 0
    %2170 = vmatpush1.bf16.msra.mxu0 0
    %2171 = vmatprep.subr.bf16.mxu0 0
    %2172 = vmatpush1.bf16.msra.mxu0 0
    %2173 = vmatprep.subr.bf16.mxu0 0
    %2174 = vmatpush1.bf16.msra.mxu0 0
    %2175 = vmatprep.mubr.bf16.mxu0 0
    %2176 = vmatmul.mubr.bf16.gmra.mrb[0].mxu0 %v2141
    %v2177 = vpop.f32.mrb[0].mxu0
    %v2178 = vadd.f32 0.0, %v2177
    %v2179 = vpop.f32.mrb[0].mxu0
    %v2180 = vpop.f32.mrb[0].mxu0
    %v2181 = vpop.f32.mrb[0].mxu0
    %2182 = vdwg.mxu0
    %v2184 = vunpack.c.l.b16 %v1923
    %v2185 = vunpack.c.h.b16 %v1923
    %2186 = vset.pattern.permute.xlu0 0
    %2187 = vperm.xlu0 %2186, %v2184
    %v2188 = vpop.permute.xlu0 %2187
    %2189 = vset.pattern.permute.xlu0 0
    %2190 = vperm.xlu0 %2189, %v2185
    %v2191 = vpop.permute.xlu0 %2190
    %v2192 = vlaneseq
    %v2193 = vshrl.u32 %v2192, 7
    %v2194 = vsub.s32 %v1140, %v2193
    %v2195 = vrot.slane %v2188, %v2194
    %v2196 = vlaneseq
    %v2197 = vshrl.u32 %v2196, 7
    %v2198 = vsub.s32 %v1145, %v2197
    %v2199 = vrot.slane %v2191, %v2198
    %v2200 = vsel %vm1150, %v2199, %v2195
    %v2201 = vpack.c.b16 %v2200, %v2200
    %v2203 = vsel %vm1310, %v2201, 0
    %2205 = vmatprep.subr.bf16.mxu0 0
    %2206 = vmatpush1.bf16.msra.mxu0 %v122
    %2207 = vmatprep.subr.bf16.mxu0 0
    %2208 = vmatpush1.bf16.msra.mxu0 0
    %2209 = vmatprep.subr.bf16.mxu0 0
    %2210 = vmatpush1.bf16.msra.mxu0 0
    %2211 = vmatprep.subr.bf16.mxu0 0
    %2212 = vmatpush1.bf16.msra.mxu0 0
    %2213 = vmatprep.subr.bf16.mxu0 0
    %2214 = vmatpush1.bf16.msra.mxu0 0
    %2215 = vmatprep.subr.bf16.mxu0 0
    %2216 = vmatpush1.bf16.msra.mxu0 0
    %2217 = vmatprep.subr.bf16.mxu0 0
    %2218 = vmatpush1.bf16.msra.mxu0 0
    %2219 = vmatprep.subr.bf16.mxu0 0
    %2220 = vmatpush1.bf16.msra.mxu0 0
    %2221 = vmatprep.subr.bf16.mxu0 0
    %2222 = vmatpush1.bf16.msra.mxu0 0
    %2223 = vmatprep.subr.bf16.mxu0 0
    %2224 = vmatpush1.bf16.msra.mxu0 0
    %2225 = vmatprep.subr.bf16.mxu0 0
    %2226 = vmatpush1.bf16.msra.mxu0 0
    %2227 = vmatprep.subr.bf16.mxu0 0
    %2228 = vmatpush1.bf16.msra.mxu0 0
    %2229 = vmatprep.subr.bf16.mxu0 0
    %2230 = vmatpush1.bf16.msra.mxu0 0
    %2231 = vmatprep.subr.bf16.mxu0 0
    %2232 = vmatpush1.bf16.msra.mxu0 0
    %2233 = vmatprep.subr.bf16.mxu0 0
    %2234 = vmatpush1.bf16.msra.mxu0 0
    %2235 = vmatprep.subr.bf16.mxu0 0
    %2236 = vmatpush1.bf16.msra.mxu0 0
    %2237 = vmatprep.mubr.bf16.mxu0 0
    %2238 = vmatmul.mubr.bf16.gmra.mrb[0].mxu0 %v2203
    %v2239 = vpop.f32.mrb[0].mxu0
    %v2240 = vadd.f32 0.0, %v2239
    %v2241 = vpop.f32.mrb[0].mxu0
    %v2242 = vpop.f32.mrb[0].mxu0
    %v2243 = vpop.f32.mrb[0].mxu0
    %2244 = vdwg.mxu0
    %v2246 = vunpack.c.l.b16 %v1924
    %v2247 = vunpack.c.h.b16 %v1924
    %2248 = vset.pattern.permute.xlu0 0
    %2249 = vperm.xlu0 %2248, %v2246
    %v2250 = vpop.permute.xlu0 %2249
    %2251 = vset.pattern.permute.xlu0 0
    %2252 = vperm.xlu0 %2251, %v2247
    %v2253 = vpop.permute.xlu0 %2252
    %v2254 = vlaneseq
    %v2255 = vshrl.u32 %v2254, 7
    %v2256 = vsub.s32 %v1140, %v2255
    %v2257 = vrot.slane %v2250, %v2256
    %v2258 = vlaneseq
    %v2259 = vshrl.u32 %v2258, 7
    %v2260 = vsub.s32 %v1145, %v2259
    %v2261 = vrot.slane %v2253, %v2260
    %v2262 = vsel %vm1150, %v2261, %v2257
    %v2263 = vpack.c.b16 %v2262, %v2262
    %v2265 = vsel %vm1310, %v2263, 0
    %2267 = vmatprep.subr.bf16.mxu0 0
    %2268 = vmatpush1.bf16.msra.mxu0 %v123
    %2269 = vmatprep.subr.bf16.mxu0 0
    %2270 = vmatpush1.bf16.msra.mxu0 0
    %2271 = vmatprep.subr.bf16.mxu0 0
    %2272 = vmatpush1.bf16.msra.mxu0 0
    %2273 = vmatprep.subr.bf16.mxu0 0
    %2274 = vmatpush1.bf16.msra.mxu0 0
    %2275 = vmatprep.subr.bf16.mxu0 0
    %2276 = vmatpush1.bf16.msra.mxu0 0
    %2277 = vmatprep.subr.bf16.mxu0 0
    %2278 = vmatpush1.bf16.msra.mxu0 0
    %2279 = vmatprep.subr.bf16.mxu0 0
    %2280 = vmatpush1.bf16.msra.mxu0 0
    %2281 = vmatprep.subr.bf16.mxu0 0
    %2282 = vmatpush1.bf16.msra.mxu0 0
    %2283 = vmatprep.subr.bf16.mxu0 0
    %2284 = vmatpush1.bf16.msra.mxu0 0
    %2285 = vmatprep.subr.bf16.mxu0 0
    %2286 = vmatpush1.bf16.msra.mxu0 0
    %2287 = vmatprep.subr.bf16.mxu0 0
    %2288 = vmatpush1.bf16.msra.mxu0 0
    %2289 = vmatprep.subr.bf16.mxu0 0
    %2290 = vmatpush1.bf16.msra.mxu0 0
    %2291 = vmatprep.subr.bf16.mxu0 0
    %2292 = vmatpush1.bf16.msra.mxu0 0
    %2293 = vmatprep.subr.bf16.mxu0 0
    %2294 = vmatpush1.bf16.msra.mxu0 0
    %2295 = vmatprep.subr.bf16.mxu0 0
    %2296 = vmatpush1.bf16.msra.mxu0 0
    %2297 = vmatprep.subr.bf16.mxu0 0
    %2298 = vmatpush1.bf16.msra.mxu0 0
    %2299 = vmatprep.mubr.bf16.mxu0 0
    %2300 = vmatmul.mubr.bf16.gmra.mrb[0].mxu0 %v2265
    %v2301 = vpop.f32.mrb[0].mxu0
    %v2302 = vadd.f32 0.0, %v2301
    %v2303 = vpop.f32.mrb[0].mxu0
    %v2304 = vpop.f32.mrb[0].mxu0
    %v2305 = vpop.f32.mrb[0].mxu0
    %2306 = vdwg.mxu0
    %v2308 = vunpack.c.l.b16 %v1925
    %v2309 = vunpack.c.h.b16 %v1925
    %2310 = vset.pattern.permute.xlu0 0
    %2311 = vperm.xlu0 %2310, %v2308
    %v2312 = vpop.permute.xlu0 %2311
    %2313 = vset.pattern.permute.xlu0 0
    %2314 = vperm.xlu0 %2313, %v2309
    %v2315 = vpop.permute.xlu0 %2314
    %v2316 = vlaneseq
    %v2317 = vshrl.u32 %v2316, 7
    %v2318 = vsub.s32 %v1140, %v2317
    %v2319 = vrot.slane %v2312, %v2318
    %v2320 = vlaneseq
    %v2321 = vshrl.u32 %v2320, 7
    %v2322 = vsub.s32 %v1145, %v2321
    %v2323 = vrot.slane %v2315, %v2322
    %v2324 = vsel %vm1150, %v2323, %v2319
    %v2325 = vpack.c.b16 %v2324, %v2324
    %v2327 = vsel %vm1310, %v2325, 0
    %2329 = vmatprep.subr.bf16.mxu0 0
    %2330 = vmatpush1.bf16.msra.mxu0 %v124
    %2331 = vmatprep.subr.bf16.mxu0 0
    %2332 = vmatpush1.bf16.msra.mxu0 0
    %2333 = vmatprep.subr.bf16.mxu0 0
    %2334 = vmatpush1.bf16.msra.mxu0 0
    %2335 = vmatprep.subr.bf16.mxu0 0
    %2336 = vmatpush1.bf16.msra.mxu0 0
    %2337 = vmatprep.subr.bf16.mxu0 0
    %2338 = vmatpush1.bf16.msra.mxu0 0
    %2339 = vmatprep.subr.bf16.mxu0 0
    %2340 = vmatpush1.bf16.msra.mxu0 0
    %2341 = vmatprep.subr.bf16.mxu0 0
    %2342 = vmatpush1.bf16.msra.mxu0 0
    %2343 = vmatprep.subr.bf16.mxu0 0
    %2344 = vmatpush1.bf16.msra.mxu0 0
    %2345 = vmatprep.subr.bf16.mxu0 0
    %2346 = vmatpush1.bf16.msra.mxu0 0
    %2347 = vmatprep.subr.bf16.mxu0 0
    %2348 = vmatpush1.bf16.msra.mxu0 0
    %2349 = vmatprep.subr.bf16.mxu0 0
    %2350 = vmatpush1.bf16.msra.mxu0 0
    %2351 = vmatprep.subr.bf16.mxu0 0
    %2352 = vmatpush1.bf16.msra.mxu0 0
    %2353 = vmatprep.subr.bf16.mxu0 0
    %2354 = vmatpush1.bf16.msra.mxu0 0
    %2355 = vmatprep.subr.bf16.mxu0 0
    %2356 = vmatpush1.bf16.msra.mxu0 0
    %2357 = vmatprep.subr.bf16.mxu0 0
    %2358 = vmatpush1.bf16.msra.mxu0 0
    %2359 = vmatprep.subr.bf16.mxu0 0
    %2360 = vmatpush1.bf16.msra.mxu0 0
    %2361 = vmatprep.mubr.bf16.mxu0 0
    %2362 = vmatmul.mubr.bf16.gmra.mrb[0].mxu0 %v2327
    %v2363 = vpop.f32.mrb[0].mxu0
    %v2364 = vadd.f32 0.0, %v2363
    %v2365 = vpop.f32.mrb[0].mxu0
    %v2366 = vpop.f32.mrb[0].mxu0
    %v2367 = vpop.f32.mrb[0].mxu0
    %2368 = vdwg.mxu0
    %v2370 = vunpack.c.l.b16 %v1926
    %v2371 = vunpack.c.h.b16 %v1926
    %2372 = vset.pattern.permute.xlu0 0
    %2373 = vperm.xlu0 %2372, %v2370
    %v2374 = vpop.permute.xlu0 %2373
    %2375 = vset.pattern.permute.xlu0 0
    %2376 = vperm.xlu0 %2375, %v2371
    %v2377 = vpop.permute.xlu0 %2376
    %v2378 = vlaneseq
    %v2379 = vshrl.u32 %v2378, 7
    %v2380 = vsub.s32 %v1140, %v2379
    %v2381 = vrot.slane %v2374, %v2380
    %v2382 = vlaneseq
    %v2383 = vshrl.u32 %v2382, 7
    %v2384 = vsub.s32 %v1145, %v2383
    %v2385 = vrot.slane %v2377, %v2384
    %v2386 = vsel %vm1150, %v2385, %v2381
    %v2387 = vpack.c.b16 %v2386, %v2386
    %v2389 = vsel %vm1310, %v2387, 0
    %2391 = vmatprep.subr.bf16.mxu0 0
    %2392 = vmatpush1.bf16.msra.mxu0 %v125
    %2393 = vmatprep.subr.bf16.mxu0 0
    %2394 = vmatpush1.bf16.msra.mxu0 0
    %2395 = vmatprep.subr.bf16.mxu0 0
    %2396 = vmatpush1.bf16.msra.mxu0 0
    %2397 = vmatprep.subr.bf16.mxu0 0
    %2398 = vmatpush1.bf16.msra.mxu0 0
    %2399 = vmatprep.subr.bf16.mxu0 0
    %2400 = vmatpush1.bf16.msra.mxu0 0
    %2401 = vmatprep.subr.bf16.mxu0 0
    %2402 = vmatpush1.bf16.msra.mxu0 0
    %2403 = vmatprep.subr.bf16.mxu0 0
    %2404 = vmatpush1.bf16.msra.mxu0 0
    %2405 = vmatprep.subr.bf16.mxu0 0
    %2406 = vmatpush1.bf16.msra.mxu0 0
    %2407 = vmatprep.subr.bf16.mxu0 0
    %2408 = vmatpush1.bf16.msra.mxu0 0
    %2409 = vmatprep.subr.bf16.mxu0 0
    %2410 = vmatpush1.bf16.msra.mxu0 0
    %2411 = vmatprep.subr.bf16.mxu0 0
    %2412 = vmatpush1.bf16.msra.mxu0 0
    %2413 = vmatprep.subr.bf16.mxu0 0
    %2414 = vmatpush1.bf16.msra.mxu0 0
    %2415 = vmatprep.subr.bf16.mxu0 0
    %2416 = vmatpush1.bf16.msra.mxu0 0
    %2417 = vmatprep.subr.bf16.mxu0 0
    %2418 = vmatpush1.bf16.msra.mxu0 0
    %2419 = vmatprep.subr.bf16.mxu0 0
    %2420 = vmatpush1.bf16.msra.mxu0 0
    %2421 = vmatprep.subr.bf16.mxu0 0
    %2422 = vmatpush1.bf16.msra.mxu0 0
    %2423 = vmatprep.mubr.bf16.mxu0 0
    %2424 = vmatmul.mubr.bf16.gmra.mrb[0].mxu0 %v2389
    %v2425 = vpop.f32.mrb[0].mxu0
    %v2426 = vadd.f32 0.0, %v2425
    %v2427 = vpop.f32.mrb[0].mxu0
    %v2428 = vpop.f32.mrb[0].mxu0
    %v2429 = vpop.f32.mrb[0].mxu0
    %2430 = vdwg.mxu0
    %v2432 = vunpack.c.l.b16 %v1927
    %v2433 = vunpack.c.h.b16 %v1927
    %2434 = vset.pattern.permute.xlu0 0
    %2435 = vperm.xlu0 %2434, %v2432
    %v2436 = vpop.permute.xlu0 %2435
    %2437 = vset.pattern.permute.xlu0 0
    %2438 = vperm.xlu0 %2437, %v2433
    %v2439 = vpop.permute.xlu0 %2438
    %v2440 = vlaneseq
    %v2441 = vshrl.u32 %v2440, 7
    %v2442 = vsub.s32 %v1140, %v2441
    %v2443 = vrot.slane %v2436, %v2442
    %v2444 = vlaneseq
    %v2445 = vshrl.u32 %v2444, 7
    %v2446 = vsub.s32 %v1145, %v2445
    %v2447 = vrot.slane %v2439, %v2446
    %v2448 = vsel %vm1150, %v2447, %v2443
    %v2449 = vpack.c.b16 %v2448, %v2448
    %v2451 = vsel %vm1310, %v2449, 0
    %2453 = vmatprep.subr.bf16.mxu0 0
    %2454 = vmatpush1.bf16.msra.mxu0 %v126
    %2455 = vmatprep.subr.bf16.mxu0 0
    %2456 = vmatpush1.bf16.msra.mxu0 0
    %2457 = vmatprep.subr.bf16.mxu0 0
    %2458 = vmatpush1.bf16.msra.mxu0 0
    %2459 = vmatprep.subr.bf16.mxu0 0
    %2460 = vmatpush1.bf16.msra.mxu0 0
    %2461 = vmatprep.subr.bf16.mxu0 0
    %2462 = vmatpush1.bf16.msra.mxu0 0
    %2463 = vmatprep.subr.bf16.mxu0 0
    %2464 = vmatpush1.bf16.msra.mxu0 0
    %2465 = vmatprep.subr.bf16.mxu0 0
    %2466 = vmatpush1.bf16.msra.mxu0 0
    %2467 = vmatprep.subr.bf16.mxu0 0
    %2468 = vmatpush1.bf16.msra.mxu0 0
    %2469 = vmatprep.subr.bf16.mxu0 0
    %2470 = vmatpush1.bf16.msra.mxu0 0
    %2471 = vmatprep.subr.bf16.mxu0 0
    %2472 = vmatpush1.bf16.msra.mxu0 0
    %2473 = vmatprep.subr.bf16.mxu0 0
    %2474 = vmatpush1.bf16.msra.mxu0 0
    %2475 = vmatprep.subr.bf16.mxu0 0
    %2476 = vmatpush1.bf16.msra.mxu0 0
    %2477 = vmatprep.subr.bf16.mxu0 0
    %2478 = vmatpush1.bf16.msra.mxu0 0
    %2479 = vmatprep.subr.bf16.mxu0 0
    %2480 = vmatpush1.bf16.msra.mxu0 0
    %2481 = vmatprep.subr.bf16.mxu0 0
    %2482 = vmatpush1.bf16.msra.mxu0 0
    %2483 = vmatprep.subr.bf16.mxu0 0
    %2484 = vmatpush1.bf16.msra.mxu0 0
    %2485 = vmatprep.mubr.bf16.mxu0 0
    %2486 = vmatmul.mubr.bf16.gmra.mrb[0].mxu0 %v2451
    %v2487 = vpop.f32.mrb[0].mxu0
    %v2488 = vadd.f32 0.0, %v2487
    %v2489 = vpop.f32.mrb[0].mxu0
    %v2490 = vpop.f32.mrb[0].mxu0
    %v2491 = vpop.f32.mrb[0].mxu0
    %2492 = vdwg.mxu0
    %v2494 = vunpack.c.l.b16 %v1928
    %v2495 = vunpack.c.h.b16 %v1928
    %2496 = vset.pattern.permute.xlu0 0
    %2497 = vperm.xlu0 %2496, %v2494
    %v2498 = vpop.permute.xlu0 %2497
    %2499 = vset.pattern.permute.xlu0 0
    %2500 = vperm.xlu0 %2499, %v2495
    %v2501 = vpop.permute.xlu0 %2500
    %v2502 = vlaneseq
    %v2503 = vshrl.u32 %v2502, 7
    %v2504 = vsub.s32 %v1140, %v2503
    %v2505 = vrot.slane %v2498, %v2504
    %v2506 = vlaneseq
    %v2507 = vshrl.u32 %v2506, 7
    %v2508 = vsub.s32 %v1145, %v2507
    %v2509 = vrot.slane %v2501, %v2508
    %v2510 = vsel %vm1150, %v2509, %v2505
    %v2511 = vpack.c.b16 %v2510, %v2510
    %v2513 = vsel %vm1310, %v2511, 0
    %2515 = vmatprep.subr.bf16.mxu0 0
    %2516 = vmatpush1.bf16.msra.mxu0 %v127
    %2517 = vmatprep.subr.bf16.mxu0 0
    %2518 = vmatpush1.bf16.msra.mxu0 0
    %2519 = vmatprep.subr.bf16.mxu0 0
    %2520 = vmatpush1.bf16.msra.mxu0 0
    %2521 = vmatprep.subr.bf16.mxu0 0
    %2522 = vmatpush1.bf16.msra.mxu0 0
    %2523 = vmatprep.subr.bf16.mxu0 0
    %2524 = vmatpush1.bf16.msra.mxu0 0
    %2525 = vmatprep.subr.bf16.mxu0 0
    %2526 = vmatpush1.bf16.msra.mxu0 0
    %2527 = vmatprep.subr.bf16.mxu0 0
    %2528 = vmatpush1.bf16.msra.mxu0 0
    %2529 = vmatprep.subr.bf16.mxu0 0
    %2530 = vmatpush1.bf16.msra.mxu0 0
    %2531 = vmatprep.subr.bf16.mxu0 0
    %2532 = vmatpush1.bf16.msra.mxu0 0
    %2533 = vmatprep.subr.bf16.mxu0 0
    %2534 = vmatpush1.bf16.msra.mxu0 0
    %2535 = vmatprep.subr.bf16.mxu0 0
    %2536 = vmatpush1.bf16.msra.mxu0 0
    %2537 = vmatprep.subr.bf16.mxu0 0
    %2538 = vmatpush1.bf16.msra.mxu0 0
    %2539 = vmatprep.subr.bf16.mxu0 0
    %2540 = vmatpush1.bf16.msra.mxu0 0
    %2541 = vmatprep.subr.bf16.mxu0 0
    %2542 = vmatpush1.bf16.msra.mxu0 0
    %2543 = vmatprep.subr.bf16.mxu0 0
    %2544 = vmatpush1.bf16.msra.mxu0 0
    %2545 = vmatprep.subr.bf16.mxu0 0
    %2546 = vmatpush1.bf16.msra.mxu0 0
    %2547 = vmatprep.mubr.bf16.mxu0 0
    %2548 = vmatmul.mubr.bf16.gmra.mrb[0].mxu0 %v2513
    %v2549 = vpop.f32.mrb[0].mxu0
    %v2550 = vadd.f32 0.0, %v2549
    %v2551 = vpop.f32.mrb[0].mxu0
    %v2552 = vpop.f32.mrb[0].mxu0
    %v2553 = vpop.f32.mrb[0].mxu0
    %2554 = vdwg.mxu0
    %v2556 = vunpack.c.l.b16 %v1929
    %v2557 = vunpack.c.h.b16 %v1929
    %2558 = vset.pattern.permute.xlu0 0
    %2559 = vperm.xlu0 %2558, %v2556
    %v2560 = vpop.permute.xlu0 %2559
    %2561 = vset.pattern.permute.xlu0 0
    %2562 = vperm.xlu0 %2561, %v2557
    %v2563 = vpop.permute.xlu0 %2562
    %v2564 = vlaneseq
    %v2565 = vshrl.u32 %v2564, 7
    %v2566 = vsub.s32 %v1140, %v2565
    %v2567 = vrot.slane %v2560, %v2566
    %v2568 = vlaneseq
    %v2569 = vshrl.u32 %v2568, 7
    %v2570 = vsub.s32 %v1145, %v2569
    %v2571 = vrot.slane %v2563, %v2570
    %v2572 = vsel %vm1150, %v2571, %v2567
    %v2573 = vpack.c.b16 %v2572, %v2572
    %v2575 = vsel %vm1310, %v2573, 0
    %2577 = vmatprep.subr.bf16.mxu0 0
    %2578 = vmatpush1.bf16.msra.mxu0 %v128
    %2579 = vmatprep.subr.bf16.mxu0 0
    %2580 = vmatpush1.bf16.msra.mxu0 0
    %2581 = vmatprep.subr.bf16.mxu0 0
    %2582 = vmatpush1.bf16.msra.mxu0 0
    %2583 = vmatprep.subr.bf16.mxu0 0
    %2584 = vmatpush1.bf16.msra.mxu0 0
    %2585 = vmatprep.subr.bf16.mxu0 0
    %2586 = vmatpush1.bf16.msra.mxu0 0
    %2587 = vmatprep.subr.bf16.mxu0 0
    %2588 = vmatpush1.bf16.msra.mxu0 0
    %2589 = vmatprep.subr.bf16.mxu0 0
    %2590 = vmatpush1.bf16.msra.mxu0 0
    %2591 = vmatprep.subr.bf16.mxu0 0
    %2592 = vmatpush1.bf16.msra.mxu0 0
    %2593 = vmatprep.subr.bf16.mxu0 0
    %2594 = vmatpush1.bf16.msra.mxu0 0
    %2595 = vmatprep.subr.bf16.mxu0 0
    %2596 = vmatpush1.bf16.msra.mxu0 0
    %2597 = vmatprep.subr.bf16.mxu0 0
    %2598 = vmatpush1.bf16.msra.mxu0 0
    %2599 = vmatprep.subr.bf16.mxu0 0
    %2600 = vmatpush1.bf16.msra.mxu0 0
    %2601 = vmatprep.subr.bf16.mxu0 0
    %2602 = vmatpush1.bf16.msra.mxu0 0
    %2603 = vmatprep.subr.bf16.mxu0 0
    %2604 = vmatpush1.bf16.msra.mxu0 0
    %2605 = vmatprep.subr.bf16.mxu0 0
    %2606 = vmatpush1.bf16.msra.mxu0 0
    %2607 = vmatprep.subr.bf16.mxu0 0
    %2608 = vmatpush1.bf16.msra.mxu0 0
    %2609 = vmatprep.mubr.bf16.mxu0 0
    %2610 = vmatmul.mubr.bf16.gmra.mrb[0].mxu0 %v2575
    %v2611 = vpop.f32.mrb[0].mxu0
    %v2612 = vadd.f32 0.0, %v2611
    %v2613 = vpop.f32.mrb[0].mxu0
    %v2614 = vpop.f32.mrb[0].mxu0
    %v2615 = vpop.f32.mrb[0].mxu0
    %2616 = vdwg.mxu0
    %v2618 = vunpack.c.l.b16 %v1930
    %v2619 = vunpack.c.h.b16 %v1930
    %2620 = vset.pattern.permute.xlu0 0
    %2621 = vperm.xlu0 %2620, %v2618
    %v2622 = vpop.permute.xlu0 %2621
    %2623 = vset.pattern.permute.xlu0 0
    %2624 = vperm.xlu0 %2623, %v2619
    %v2625 = vpop.permute.xlu0 %2624
    %v2626 = vlaneseq
    %v2627 = vshrl.u32 %v2626, 7
    %v2628 = vsub.s32 %v1140, %v2627
    %v2629 = vrot.slane %v2622, %v2628
    %v2630 = vlaneseq
    %v2631 = vshrl.u32 %v2630, 7
    %v2632 = vsub.s32 %v1145, %v2631
    %v2633 = vrot.slane %v2625, %v2632
    %v2634 = vsel %vm1150, %v2633, %v2629
    %v2635 = vpack.c.b16 %v2634, %v2634
    %v2637 = vsel %vm1310, %v2635, 0
    %2639 = vmatprep.subr.bf16.mxu0 0
    %2640 = vmatpush1.bf16.msra.mxu0 %v129
    %2641 = vmatprep.subr.bf16.mxu0 0
    %2642 = vmatpush1.bf16.msra.mxu0 0
    %2643 = vmatprep.subr.bf16.mxu0 0
    %2644 = vmatpush1.bf16.msra.mxu0 0
    %2645 = vmatprep.subr.bf16.mxu0 0
    %2646 = vmatpush1.bf16.msra.mxu0 0
    %2647 = vmatprep.subr.bf16.mxu0 0
    %2648 = vmatpush1.bf16.msra.mxu0 0
    %2649 = vmatprep.subr.bf16.mxu0 0
    %2650 = vmatpush1.bf16.msra.mxu0 0
    %2651 = vmatprep.subr.bf16.mxu0 0
    %2652 = vmatpush1.bf16.msra.mxu0 0
    %2653 = vmatprep.subr.bf16.mxu0 0
    %2654 = vmatpush1.bf16.msra.mxu0 0
    %2655 = vmatprep.subr.bf16.mxu0 0
    %2656 = vmatpush1.bf16.msra.mxu0 0
    %2657 = vmatprep.subr.bf16.mxu0 0
    %2658 = vmatpush1.bf16.msra.mxu0 0
    %2659 = vmatprep.subr.bf16.mxu0 0
    %2660 = vmatpush1.bf16.msra.mxu0 0
    %2661 = vmatprep.subr.bf16.mxu0 0
    %2662 = vmatpush1.bf16.msra.mxu0 0
    %2663 = vmatprep.subr.bf16.mxu0 0
    %2664 = vmatpush1.bf16.msra.mxu0 0
    %2665 = vmatprep.subr.bf16.mxu0 0
    %2666 = vmatpush1.bf16.msra.mxu0 0
    %2667 = vmatprep.subr.bf16.mxu0 0
    %2668 = vmatpush1.bf16.msra.mxu0 0
    %2669 = vmatprep.subr.bf16.mxu0 0
    %2670 = vmatpush1.bf16.msra.mxu0 0
    %2671 = vmatprep.mubr.bf16.mxu0 0
    %2672 = vmatmul.mubr.bf16.gmra.mrb[0].mxu0 %v2637
    %v2673 = vpop.f32.mrb[0].mxu0
    %v2674 = vadd.f32 0.0, %v2673
    %v2675 = vpop.f32.mrb[0].mxu0
    %v2676 = vpop.f32.mrb[0].mxu0
    %v2677 = vpop.f32.mrb[0].mxu0
    %2678 = vdwg.mxu0
    %v2680 = vunpack.c.l.b16 %v1931
    %v2681 = vunpack.c.h.b16 %v1931
    %2682 = vset.pattern.permute.xlu0 0
    %2683 = vperm.xlu0 %2682, %v2680
    %v2684 = vpop.permute.xlu0 %2683
    %2685 = vset.pattern.permute.xlu0 0
    %2686 = vperm.xlu0 %2685, %v2681
    %v2687 = vpop.permute.xlu0 %2686
    %v2688 = vlaneseq
    %v2689 = vshrl.u32 %v2688, 7
    %v2690 = vsub.s32 %v1140, %v2689
    %v2691 = vrot.slane %v2684, %v2690
    %v2692 = vlaneseq
    %v2693 = vshrl.u32 %v2692, 7
    %v2694 = vsub.s32 %v1145, %v2693
    %v2695 = vrot.slane %v2687, %v2694
    %v2696 = vsel %vm1150, %v2695, %v2691
    %v2697 = vpack.c.b16 %v2696, %v2696
    %v2699 = vsel %vm1310, %v2697, 0
    %2701 = vmatprep.subr.bf16.mxu0 0
    %2702 = vmatpush1.bf16.msra.mxu0 %v130
    %2703 = vmatprep.subr.bf16.mxu0 0
    %2704 = vmatpush1.bf16.msra.mxu0 0
    %2705 = vmatprep.subr.bf16.mxu0 0
    %2706 = vmatpush1.bf16.msra.mxu0 0
    %2707 = vmatprep.subr.bf16.mxu0 0
    %2708 = vmatpush1.bf16.msra.mxu0 0
    %2709 = vmatprep.subr.bf16.mxu0 0
    %2710 = vmatpush1.bf16.msra.mxu0 0
    %2711 = vmatprep.subr.bf16.mxu0 0
    %2712 = vmatpush1.bf16.msra.mxu0 0
    %2713 = vmatprep.subr.bf16.mxu0 0
    %2714 = vmatpush1.bf16.msra.mxu0 0
    %2715 = vmatprep.subr.bf16.mxu0 0
    %2716 = vmatpush1.bf16.msra.mxu0 0
    %2717 = vmatprep.subr.bf16.mxu0 0
    %2718 = vmatpush1.bf16.msra.mxu0 0
    %2719 = vmatprep.subr.bf16.mxu0 0
    %2720 = vmatpush1.bf16.msra.mxu0 0
    %2721 = vmatprep.subr.bf16.mxu0 0
    %2722 = vmatpush1.bf16.msra.mxu0 0
    %2723 = vmatprep.subr.bf16.mxu0 0
    %2724 = vmatpush1.bf16.msra.mxu0 0
    %2725 = vmatprep.subr.bf16.mxu0 0
    %2726 = vmatpush1.bf16.msra.mxu0 0
    %2727 = vmatprep.subr.bf16.mxu0 0
    %2728 = vmatpush1.bf16.msra.mxu0 0
    %2729 = vmatprep.subr.bf16.mxu0 0
    %2730 = vmatpush1.bf16.msra.mxu0 0
    %2731 = vmatprep.subr.bf16.mxu0 0
    %2732 = vmatpush1.bf16.msra.mxu0 0
    %2733 = vmatprep.mubr.bf16.mxu0 0
    %2734 = vmatmul.mubr.bf16.gmra.mrb[0].mxu0 %v2699
    %v2735 = vpop.f32.mrb[0].mxu0
    %v2736 = vadd.f32 0.0, %v2735
    %v2737 = vpop.f32.mrb[0].mxu0
    %v2738 = vpop.f32.mrb[0].mxu0
    %v2739 = vpop.f32.mrb[0].mxu0
    %2740 = vdwg.mxu0
    %v2742 = vunpack.c.l.b16 %v1932
    %v2743 = vunpack.c.h.b16 %v1932
    %2744 = vset.pattern.permute.xlu0 0
    %2745 = vperm.xlu0 %2744, %v2742
    %v2746 = vpop.permute.xlu0 %2745
    %2747 = vset.pattern.permute.xlu0 0
    %2748 = vperm.xlu0 %2747, %v2743
    %v2749 = vpop.permute.xlu0 %2748
    %v2750 = vlaneseq
    %v2751 = vshrl.u32 %v2750, 7
    %v2752 = vsub.s32 %v1140, %v2751
    %v2753 = vrot.slane %v2746, %v2752
    %v2754 = vlaneseq
    %v2755 = vshrl.u32 %v2754, 7
    %v2756 = vsub.s32 %v1145, %v2755
    %v2757 = vrot.slane %v2749, %v2756
    %v2758 = vsel %vm1150, %v2757, %v2753
    %v2759 = vpack.c.b16 %v2758, %v2758
    %v2761 = vsel %vm1310, %v2759, 0
    %2763 = vmatprep.subr.bf16.mxu0 0
    %2764 = vmatpush1.bf16.msra.mxu0 %v131
    %2765 = vmatprep.subr.bf16.mxu0 0
    %2766 = vmatpush1.bf16.msra.mxu0 0
    %2767 = vmatprep.subr.bf16.mxu0 0
    %2768 = vmatpush1.bf16.msra.mxu0 0
    %2769 = vmatprep.subr.bf16.mxu0 0
    %2770 = vmatpush1.bf16.msra.mxu0 0
    %2771 = vmatprep.subr.bf16.mxu0 0
    %2772 = vmatpush1.bf16.msra.mxu0 0
    %2773 = vmatprep.subr.bf16.mxu0 0
    %2774 = vmatpush1.bf16.msra.mxu0 0
    %2775 = vmatprep.subr.bf16.mxu0 0
    %2776 = vmatpush1.bf16.msra.mxu0 0
    %2777 = vmatprep.subr.bf16.mxu0 0
    %2778 = vmatpush1.bf16.msra.mxu0 0
    %2779 = vmatprep.subr.bf16.mxu0 0
    %2780 = vmatpush1.bf16.msra.mxu0 0
    %2781 = vmatprep.subr.bf16.mxu0 0
    %2782 = vmatpush1.bf16.msra.mxu0 0
    %2783 = vmatprep.subr.bf16.mxu0 0
    %2784 = vmatpush1.bf16.msra.mxu0 0
    %2785 = vmatprep.subr.bf16.mxu0 0
    %2786 = vmatpush1.bf16.msra.mxu0 0
    %2787 = vmatprep.subr.bf16.mxu0 0
    %2788 = vmatpush1.bf16.msra.mxu0 0
    %2789 = vmatprep.subr.bf16.mxu0 0
    %2790 = vmatpush1.bf16.msra.mxu0 0
    %2791 = vmatprep.subr.bf16.mxu0 0
    %2792 = vmatpush1.bf16.msra.mxu0 0
    %2793 = vmatprep.subr.bf16.mxu0 0
    %2794 = vmatpush1.bf16.msra.mxu0 0
    %2795 = vmatprep.mubr.bf16.mxu0 0
    %2796 = vmatmul.mubr.bf16.gmra.mrb[0].mxu0 %v2761
    %v2797 = vpop.f32.mrb[0].mxu0
    %v2798 = vadd.f32 0.0, %v2797
    %v2799 = vpop.f32.mrb[0].mxu0
    %v2800 = vpop.f32.mrb[0].mxu0
    %v2801 = vpop.f32.mrb[0].mxu0
    %2802 = vdwg.mxu0
    %v2804 = vunpack.c.l.b16 %v1933
    %v2805 = vunpack.c.h.b16 %v1933
    %2806 = vset.pattern.permute.xlu0 0
    %2807 = vperm.xlu0 %2806, %v2804
    %v2808 = vpop.permute.xlu0 %2807
    %2809 = vset.pattern.permute.xlu0 0
    %2810 = vperm.xlu0 %2809, %v2805
    %v2811 = vpop.permute.xlu0 %2810
    %v2812 = vlaneseq
    %v2813 = vshrl.u32 %v2812, 7
    %v2814 = vsub.s32 %v1140, %v2813
    %v2815 = vrot.slane %v2808, %v2814
    %v2816 = vlaneseq
    %v2817 = vshrl.u32 %v2816, 7
    %v2818 = vsub.s32 %v1145, %v2817
    %v2819 = vrot.slane %v2811, %v2818
    %v2820 = vsel %vm1150, %v2819, %v2815
    %v2821 = vpack.c.b16 %v2820, %v2820
    %v2823 = vsel %vm1310, %v2821, 0
    %2825 = vmatprep.subr.bf16.mxu0 0
    %2826 = vmatpush1.bf16.msra.mxu0 %v132
    %2827 = vmatprep.subr.bf16.mxu0 0
    %2828 = vmatpush1.bf16.msra.mxu0 0
    %2829 = vmatprep.subr.bf16.mxu0 0
    %2830 = vmatpush1.bf16.msra.mxu0 0
    %2831 = vmatprep.subr.bf16.mxu0 0
    %2832 = vmatpush1.bf16.msra.mxu0 0
    %2833 = vmatprep.subr.bf16.mxu0 0
    %2834 = vmatpush1.bf16.msra.mxu0 0
    %2835 = vmatprep.subr.bf16.mxu0 0
    %2836 = vmatpush1.bf16.msra.mxu0 0
    %2837 = vmatprep.subr.bf16.mxu0 0
    %2838 = vmatpush1.bf16.msra.mxu0 0
    %2839 = vmatprep.subr.bf16.mxu0 0
    %2840 = vmatpush1.bf16.msra.mxu0 0
    %2841 = vmatprep.subr.bf16.mxu0 0
    %2842 = vmatpush1.bf16.msra.mxu0 0
    %2843 = vmatprep.subr.bf16.mxu0 0
    %2844 = vmatpush1.bf16.msra.mxu0 0
    %2845 = vmatprep.subr.bf16.mxu0 0
    %2846 = vmatpush1.bf16.msra.mxu0 0
    %2847 = vmatprep.subr.bf16.mxu0 0
    %2848 = vmatpush1.bf16.msra.mxu0 0
    %2849 = vmatprep.subr.bf16.mxu0 0
    %2850 = vmatpush1.bf16.msra.mxu0 0
    %2851 = vmatprep.subr.bf16.mxu0 0
    %2852 = vmatpush1.bf16.msra.mxu0 0
    %2853 = vmatprep.subr.bf16.mxu0 0
    %2854 = vmatpush1.bf16.msra.mxu0 0
    %2855 = vmatprep.subr.bf16.mxu0 0
    %2856 = vmatpush1.bf16.msra.mxu0 0
    %2857 = vmatprep.mubr.bf16.mxu0 0
    %2858 = vmatmul.mubr.bf16.gmra.mrb[0].mxu0 %v2823
    %v2859 = vpop.f32.mrb[0].mxu0
    %v2860 = vadd.f32 0.0, %v2859
    %v2861 = vpop.f32.mrb[0].mxu0
    %v2862 = vpop.f32.mrb[0].mxu0
    %v2863 = vpop.f32.mrb[0].mxu0
    %2864 = vdwg.mxu0
    %v2866 = vunpack.c.l.b16 %v1934
    %v2867 = vunpack.c.h.b16 %v1934
    %2868 = vset.pattern.permute.xlu0 0
    %2869 = vperm.xlu0 %2868, %v2866
    %v2870 = vpop.permute.xlu0 %2869
    %2871 = vset.pattern.permute.xlu0 0
    %2872 = vperm.xlu0 %2871, %v2867
    %v2873 = vpop.permute.xlu0 %2872
    %v2874 = vlaneseq
    %v2875 = vshrl.u32 %v2874, 7
    %v2876 = vsub.s32 %v1140, %v2875
    %v2877 = vrot.slane %v2870, %v2876
    %v2878 = vlaneseq
    %v2879 = vshrl.u32 %v2878, 7
    %v2880 = vsub.s32 %v1145, %v2879
    %v2881 = vrot.slane %v2873, %v2880
    %v2882 = vsel %vm1150, %v2881, %v2877
    %v2883 = vpack.c.b16 %v2882, %v2882
    %v2885 = vsel %vm1310, %v2883, 0
    %2887 = vmatprep.subr.bf16.mxu0 0
    %2888 = vmatpush1.bf16.msra.mxu0 %v133
    %2889 = vmatprep.subr.bf16.mxu0 0
    %2890 = vmatpush1.bf16.msra.mxu0 0
    %2891 = vmatprep.subr.bf16.mxu0 0
    %2892 = vmatpush1.bf16.msra.mxu0 0
    %2893 = vmatprep.subr.bf16.mxu0 0
    %2894 = vmatpush1.bf16.msra.mxu0 0
    %2895 = vmatprep.subr.bf16.mxu0 0
    %2896 = vmatpush1.bf16.msra.mxu0 0
    %2897 = vmatprep.subr.bf16.mxu0 0
    %2898 = vmatpush1.bf16.msra.mxu0 0
    %2899 = vmatprep.subr.bf16.mxu0 0
    %2900 = vmatpush1.bf16.msra.mxu0 0
    %2901 = vmatprep.subr.bf16.mxu0 0
    %2902 = vmatpush1.bf16.msra.mxu0 0
    %2903 = vmatprep.subr.bf16.mxu0 0
    %2904 = vmatpush1.bf16.msra.mxu0 0
    %2905 = vmatprep.subr.bf16.mxu0 0
    %2906 = vmatpush1.bf16.msra.mxu0 0
    %2907 = vmatprep.subr.bf16.mxu0 0
    %2908 = vmatpush1.bf16.msra.mxu0 0
    %2909 = vmatprep.subr.bf16.mxu0 0
    %2910 = vmatpush1.bf16.msra.mxu0 0
    %2911 = vmatprep.subr.bf16.mxu0 0
    %2912 = vmatpush1.bf16.msra.mxu0 0
    %2913 = vmatprep.subr.bf16.mxu0 0
    %2914 = vmatpush1.bf16.msra.mxu0 0
    %2915 = vmatprep.subr.bf16.mxu0 0
    %2916 = vmatpush1.bf16.msra.mxu0 0
    %2917 = vmatprep.subr.bf16.mxu0 0
    %2918 = vmatpush1.bf16.msra.mxu0 0
    %2919 = vmatprep.mubr.bf16.mxu0 0
    %2920 = vmatmul.mubr.bf16.gmra.mrb[0].mxu0 %v2885
    %v2921 = vpop.f32.mrb[0].mxu0
    %v2922 = vadd.f32 0.0, %v2921
    %v2923 = vpop.f32.mrb[0].mxu0
    %v2924 = vpop.f32.mrb[0].mxu0
    %v2925 = vpop.f32.mrb[0].mxu0
    %2926 = vdwg.mxu0
    %v2927 = vld [vmem:[#allocation4] sm:$0xff]
    %v2928 = vld [vmem:[#allocation4 + $0x8] sm:$0xff]
    %v2929 = vld [vmem:[#allocation4 + $0x10] sm:$0xff]
    %v2930 = vld [vmem:[#allocation4 + $0x18] sm:$0xff]
    %v2931 = vld [vmem:[#allocation4 + $0x20] sm:$0xff]
    %v2932 = vld [vmem:[#allocation4 + $0x28] sm:$0xff]
    %v2933 = vld [vmem:[#allocation4 + $0x30] sm:$0xff]
    %v2934 = vld [vmem:[#allocation4 + $0x38] sm:$0xff]
    %v2935 = vld [vmem:[#allocation4 + $0x40] sm:$0xff]
    %v2936 = vld [vmem:[#allocation4 + $0x48] sm:$0xff]
    %v2937 = vld [vmem:[#allocation4 + $0x50] sm:$0xff]
    %v2938 = vld [vmem:[#allocation4 + $0x58] sm:$0xff]
    %v2939 = vld [vmem:[#allocation4 + $0x60] sm:$0xff]
    %v2940 = vld [vmem:[#allocation4 + $0x68] sm:$0xff]
    %v2941 = vld [vmem:[#allocation4 + $0x70] sm:$0xff]
    %v2942 = vld [vmem:[#allocation4 + $0x78] sm:$0xff]
    %v2943 = vld [vmem:[#allocation4 + $0x80] sm:$0xff]
    %v2944 = vld [vmem:[#allocation4 + $0x88] sm:$0xff]
    %v2945 = vld [vmem:[#allocation4 + $0x90] sm:$0xff]
    %v2946 = vld [vmem:[#allocation4 + $0x98] sm:$0xff]
    %v2947 = vld [vmem:[#allocation4 + $0xa0] sm:$0xff]
    %v2948 = vld [vmem:[#allocation4 + $0xa8] sm:$0xff]
    %v2949 = vld [vmem:[#allocation4 + $0xb0] sm:$0xff]
    %v2950 = vld [vmem:[#allocation4 + $0xb8] sm:$0xff]
    %v2951 = vld [vmem:[#allocation4 + $0xc0] sm:$0xff]
    %v2952 = vld [vmem:[#allocation4 + $0xc8] sm:$0xff]
    %v2953 = vld [vmem:[#allocation4 + $0xd0] sm:$0xff]
    %v2954 = vld [vmem:[#allocation4 + $0xd8] sm:$0xff]
    %v2955 = vld [vmem:[#allocation4 + $0xe0] sm:$0xff]
    %v2956 = vld [vmem:[#allocation4 + $0xe8] sm:$0xff]
    %v2957 = vld [vmem:[#allocation4 + $0xf0] sm:$0xff]
    %v2958 = vld [vmem:[#allocation4 + $0xf8] sm:$0xff]
    %v2959 = vpack.c.bf16 %v2928, %v2927
    %v2960 = vpack.c.bf16 %v2930, %v2929
    %v2961 = vpack.c.bf16 %v2932, %v2931
    %v2962 = vpack.c.bf16 %v2934, %v2933
    %v2963 = vpack.c.bf16 %v2936, %v2935
    %v2964 = vpack.c.bf16 %v2938, %v2937
    %v2965 = vpack.c.bf16 %v2940, %v2939
    %v2966 = vpack.c.bf16 %v2942, %v2941
    %v2967 = vpack.c.bf16 %v2944, %v2943
    %v2968 = vpack.c.bf16 %v2946, %v2945
    %v2969 = vpack.c.bf16 %v2948, %v2947
    %v2970 = vpack.c.bf16 %v2950, %v2949
    %v2971 = vpack.c.bf16 %v2952, %v2951
    %v2972 = vpack.c.bf16 %v2954, %v2953
    %v2973 = vpack.c.bf16 %v2956, %v2955
    %v2974 = vpack.c.bf16 %v2958, %v2957
    %v2976 = vsel %vm235, %v2959, 0
    %v2979 = vsel %vm235, %v2960, 0
    %v2982 = vsel %vm235, %v2961, 0
    %v2985 = vsel %vm235, %v2962, 0
    %v2988 = vsel %vm235, %v2963, 0
    %v2991 = vsel %vm235, %v2964, 0
    %v2994 = vsel %vm235, %v2965, 0
    %v2997 = vsel %vm235, %v2966, 0
    %v3000 = vsel %vm235, %v2967, 0
    %v3003 = vsel %vm235, %v2968, 0
    %v3006 = vsel %vm235, %v2969, 0
    %v3009 = vsel %vm235, %v2970, 0
    %v3012 = vsel %vm235, %v2971, 0
    %v3015 = vsel %vm235, %v2972, 0
    %v3018 = vsel %vm235, %v2973, 0
    %v3021 = vsel %vm235, %v2974, 0
    %3023 = vmatprep.subr.bf16.mxu0 %v204
    %3024 = vmatpush1.bf16.msra.mxu0 %v203
    %3025 = vmatprep.subr.bf16.mxu0 %v208
    %3026 = vmatpush1.bf16.msra.mxu0 %v207
    %3027 = vmatprep.subr.bf16.mxu0 %v212
    %3028 = vmatpush1.bf16.msra.mxu0 %v211
    %3029 = vmatprep.subr.bf16.mxu0 %v216
    %3030 = vmatpush1.bf16.msra.mxu0 %v215
    %3031 = vmatprep.subr.bf16.mxu0 0
    %3032 = vmatpush1.bf16.msra.mxu0 0
    %3033 = vmatprep.subr.bf16.mxu0 0
    %3034 = vmatpush1.bf16.msra.mxu0 0
    %3035 = vmatprep.subr.bf16.mxu0 0
    %3036 = vmatpush1.bf16.msra.mxu0 0
    %3037 = vmatprep.subr.bf16.mxu0 0
    %3038 = vmatpush1.bf16.msra.mxu0 0
    %3039 = vmatprep.subr.bf16.mxu0 0
    %3040 = vmatpush1.bf16.msra.mxu0 0
    %3041 = vmatprep.subr.bf16.mxu0 0
    %3042 = vmatpush1.bf16.msra.mxu0 0
    %3043 = vmatprep.subr.bf16.mxu0 0
    %3044 = vmatpush1.bf16.msra.mxu0 0
    %3045 = vmatprep.subr.bf16.mxu0 0
    %3046 = vmatpush1.bf16.msra.mxu0 0
    %3047 = vmatprep.subr.bf16.mxu0 0
    %3048 = vmatpush1.bf16.msra.mxu0 0
    %3049 = vmatprep.subr.bf16.mxu0 0
    %3050 = vmatpush1.bf16.msra.mxu0 0
    %3051 = vmatprep.subr.bf16.mxu0 0
    %3052 = vmatpush1.bf16.msra.mxu0 0
    %3053 = vmatprep.subr.bf16.mxu0 0
    %3054 = vmatpush1.bf16.msra.mxu0 0
    %3055 = vmatprep.mubr.bf16.mxu0 0
    %3056 = vmatmul.mubr.bf16.gmra.mrb[0].mxu0 %v2976
    %v3057 = vpop.f32.mrb[0].mxu0
    %v3058 = vadd.f32 %v138, %v3057
    %v3059 = vpop.f32.mrb[0].mxu0
    %v3060 = vadd.f32 %v142, %v3059
    %v3061 = vpop.f32.mrb[0].mxu0
    %v3062 = vadd.f32 %v138, %v3061
    %v3063 = vpop.f32.mrb[0].mxu0
    %v3064 = vadd.f32 %v142, %v3063
    %3065 = vmatprep.mubr.bf16.mxu0 0
    %3066 = vmatmul.mubr.bf16.gmra.mrb[0].mxu0 %v2979
    %v3067 = vpop.f32.mrb[0].mxu0
    %v3068 = vadd.f32 %v138, %v3067
    %v3069 = vpop.f32.mrb[0].mxu0
    %v3070 = vadd.f32 %v142, %v3069
    %v3071 = vpop.f32.mrb[0].mxu0
    %v3072 = vadd.f32 %v138, %v3071
    %v3073 = vpop.f32.mrb[0].mxu0
    %v3074 = vadd.f32 %v142, %v3073
    %3075 = vmatprep.mubr.bf16.mxu0 0
    %3076 = vmatmul.mubr.bf16.gmra.mrb[0].mxu0 %v2982
    %v3077 = vpop.f32.mrb[0].mxu0
    %v3078 = vadd.f32 %v138, %v3077
    %v3079 = vpop.f32.mrb[0].mxu0
    %v3080 = vadd.f32 %v142, %v3079
    %v3081 = vpop.f32.mrb[0].mxu0
    %v3082 = vadd.f32 %v138, %v3081
    %v3083 = vpop.f32.mrb[0].mxu0
    %v3084 = vadd.f32 %v142, %v3083
    %3085 = vmatprep.mubr.bf16.mxu0 0
    %3086 = vmatmul.mubr.bf16.gmra.mrb[0].mxu0 %v2985
    %v3087 = vpop.f32.mrb[0].mxu0
    %v3088 = vadd.f32 %v138, %v3087
    %v3089 = vpop.f32.mrb[0].mxu0
    %v3090 = vadd.f32 %v142, %v3089
    %v3091 = vpop.f32.mrb[0].mxu0
    %v3092 = vadd.f32 %v138, %v3091
    %v3093 = vpop.f32.mrb[0].mxu0
    %v3094 = vadd.f32 %v142, %v3093
    %3095 = vmatprep.mubr.bf16.mxu0 0
    %3096 = vmatmul.mubr.bf16.gmra.mrb[0].mxu0 %v2988
    %v3097 = vpop.f32.mrb[0].mxu0
    %v3098 = vadd.f32 %v138, %v3097
    %v3099 = vpop.f32.mrb[0].mxu0
    %v3100 = vadd.f32 %v142, %v3099
    %v3101 = vpop.f32.mrb[0].mxu0
    %v3102 = vadd.f32 %v138, %v3101
    %v3103 = vpop.f32.mrb[0].mxu0
    %v3104 = vadd.f32 %v142, %v3103
    %3105 = vmatprep.mubr.bf16.mxu0 0
    %3106 = vmatmul.mubr.bf16.gmra.mrb[0].mxu0 %v2991
    %v3107 = vpop.f32.mrb[0].mxu0
    %v3108 = vadd.f32 %v138, %v3107
    %v3109 = vpop.f32.mrb[0].mxu0
    %v3110 = vadd.f32 %v142, %v3109
    %v3111 = vpop.f32.mrb[0].mxu0
    %v3112 = vadd.f32 %v138, %v3111
    %v3113 = vpop.f32.mrb[0].mxu0
    %v3114 = vadd.f32 %v142, %v3113
    %3115 = vmatprep.mubr.bf16.mxu0 0
    %3116 = vmatmul.mubr.bf16.gmra.mrb[0].mxu0 %v2994
    %v3117 = vpop.f32.mrb[0].mxu0
    %v3118 = vadd.f32 %v138, %v3117
    %v3119 = vpop.f32.mrb[0].mxu0
    %v3120 = vadd.f32 %v142, %v3119
    %v3121 = vpop.f32.mrb[0].mxu0
    %v3122 = vadd.f32 %v138, %v3121
    %v3123 = vpop.f32.mrb[0].mxu0
    %v3124 = vadd.f32 %v142, %v3123
    %3125 = vmatprep.mubr.bf16.mxu0 0
    %3126 = vmatmul.mubr.bf16.gmra.mrb[0].mxu0 %v2997
    %v3127 = vpop.f32.mrb[0].mxu0
    %v3128 = vadd.f32 %v138, %v3127
    %v3129 = vpop.f32.mrb[0].mxu0
    %v3130 = vadd.f32 %v142, %v3129
    %v3131 = vpop.f32.mrb[0].mxu0
    %v3132 = vadd.f32 %v138, %v3131
    %v3133 = vpop.f32.mrb[0].mxu0
    %v3134 = vadd.f32 %v142, %v3133
    %3135 = vmatprep.mubr.bf16.mxu0 0
    %3136 = vmatmul.mubr.bf16.gmra.mrb[0].mxu0 %v3000
    %v3137 = vpop.f32.mrb[0].mxu0
    %v3138 = vadd.f32 %v138, %v3137
    %v3139 = vpop.f32.mrb[0].mxu0
    %v3140 = vadd.f32 %v142, %v3139
    %v3141 = vpop.f32.mrb[0].mxu0
    %v3142 = vadd.f32 %v138, %v3141
    %v3143 = vpop.f32.mrb[0].mxu0
    %v3144 = vadd.f32 %v142, %v3143
    %3145 = vmatprep.mubr.bf16.mxu0 0
    %3146 = vmatmul.mubr.bf16.gmra.mrb[0].mxu0 %v3003
    %v3147 = vpop.f32.mrb[0].mxu0
    %v3148 = vadd.f32 %v138, %v3147
    %v3149 = vpop.f32.mrb[0].mxu0
    %v3150 = vadd.f32 %v142, %v3149
    %v3151 = vpop.f32.mrb[0].mxu0
    %v3152 = vadd.f32 %v138, %v3151
    %v3153 = vpop.f32.mrb[0].mxu0
    %v3154 = vadd.f32 %v142, %v3153
    %3155 = vmatprep.mubr.bf16.mxu0 0
    %3156 = vmatmul.mubr.bf16.gmra.mrb[0].mxu0 %v3006
    %v3157 = vpop.f32.mrb[0].mxu0
    %v3158 = vadd.f32 %v138, %v3157
    %v3159 = vpop.f32.mrb[0].mxu0
    %v3160 = vadd.f32 %v142, %v3159
    %v3161 = vpop.f32.mrb[0].mxu0
    %v3162 = vadd.f32 %v138, %v3161
    %v3163 = vpop.f32.mrb[0].mxu0
    %v3164 = vadd.f32 %v142, %v3163
    %3165 = vmatprep.mubr.bf16.mxu0 0
    %3166 = vmatmul.mubr.bf16.gmra.mrb[0].mxu0 %v3009
    %v3167 = vpop.f32.mrb[0].mxu0
    %v3168 = vadd.f32 %v138, %v3167
    %v3169 = vpop.f32.mrb[0].mxu0
    %v3170 = vadd.f32 %v142, %v3169
    %v3171 = vpop.f32.mrb[0].mxu0
    %v3172 = vadd.f32 %v138, %v3171
    %v3173 = vpop.f32.mrb[0].mxu0
    %v3174 = vadd.f32 %v142, %v3173
    %3175 = vmatprep.mubr.bf16.mxu0 0
    %3176 = vmatmul.mubr.bf16.gmra.mrb[0].mxu0 %v3012
    %v3177 = vpop.f32.mrb[0].mxu0
    %v3178 = vadd.f32 %v138, %v3177
    %v3179 = vpop.f32.mrb[0].mxu0
    %v3180 = vadd.f32 %v142, %v3179
    %v3181 = vpop.f32.mrb[0].mxu0
    %v3182 = vadd.f32 %v138, %v3181
    %v3183 = vpop.f32.mrb[0].mxu0
    %v3184 = vadd.f32 %v142, %v3183
    %3185 = vmatprep.mubr.bf16.mxu0 0
    %3186 = vmatmul.mubr.bf16.gmra.mrb[0].mxu0 %v3015
    %v3187 = vpop.f32.mrb[0].mxu0
    %v3188 = vadd.f32 %v138, %v3187
    %v3189 = vpop.f32.mrb[0].mxu0
    %v3190 = vadd.f32 %v142, %v3189
    %v3191 = vpop.f32.mrb[0].mxu0
    %v3192 = vadd.f32 %v138, %v3191
    %v3193 = vpop.f32.mrb[0].mxu0
    %v3194 = vadd.f32 %v142, %v3193
    %3195 = vmatprep.mubr.bf16.mxu0 0
    %3196 = vmatmul.mubr.bf16.gmra.mrb[0].mxu0 %v3018
    %v3197 = vpop.f32.mrb[0].mxu0
    %v3198 = vadd.f32 %v138, %v3197
    %v3199 = vpop.f32.mrb[0].mxu0
    %v3200 = vadd.f32 %v142, %v3199
    %v3201 = vpop.f32.mrb[0].mxu0
    %v3202 = vadd.f32 %v138, %v3201
    %v3203 = vpop.f32.mrb[0].mxu0
    %v3204 = vadd.f32 %v142, %v3203
    %3205 = vmatprep.mubr.bf16.mxu0 0
    %3206 = vmatmul.mubr.bf16.gmra.mrb[0].mxu0 %v3021
    %v3207 = vpop.f32.mrb[0].mxu0
    %v3208 = vadd.f32 %v138, %v3207
    %v3209 = vpop.f32.mrb[0].mxu0
    %v3210 = vadd.f32 %v142, %v3209
    %v3211 = vpop.f32.mrb[0].mxu0
    %v3212 = vadd.f32 %v138, %v3211
    %v3213 = vpop.f32.mrb[0].mxu0
    %v3214 = vadd.f32 %v142, %v3213
    %3215 = vdwg.mxu0
    %3216 = vmatprep.subr.bf16.mxu0 %v206
    %3217 = vmatpush1.bf16.msra.mxu0 %v205
    %3218 = vmatprep.subr.bf16.mxu0 %v210
    %3219 = vmatpush1.bf16.msra.mxu0 %v209
    %3220 = vmatprep.subr.bf16.mxu0 %v214
    %3221 = vmatpush1.bf16.msra.mxu0 %v213
    %3222 = vmatprep.subr.bf16.mxu0 %v218
    %3223 = vmatpush1.bf16.msra.mxu0 %v217
    %3224 = vmatprep.subr.bf16.mxu0 0
    %3225 = vmatpush1.bf16.msra.mxu0 0
    %3226 = vmatprep.subr.bf16.mxu0 0
    %3227 = vmatpush1.bf16.msra.mxu0 0
    %3228 = vmatprep.subr.bf16.mxu0 0
    %3229 = vmatpush1.bf16.msra.mxu0 0
    %3230 = vmatprep.subr.bf16.mxu0 0
    %3231 = vmatpush1.bf16.msra.mxu0 0
    %3232 = vmatprep.subr.bf16.mxu0 0
    %3233 = vmatpush1.bf16.msra.mxu0 0
    %3234 = vmatprep.subr.bf16.mxu0 0
    %3235 = vmatpush1.bf16.msra.mxu0 0
    %3236 = vmatprep.subr.bf16.mxu0 0
    %3237 = vmatpush1.bf16.msra.mxu0 0
    %3238 = vmatprep.subr.bf16.mxu0 0
    %3239 = vmatpush1.bf16.msra.mxu0 0
    %3240 = vmatprep.subr.bf16.mxu0 0
    %3241 = vmatpush1.bf16.msra.mxu0 0
    %3242 = vmatprep.subr.bf16.mxu0 0
    %3243 = vmatpush1.bf16.msra.mxu0 0
    %3244 = vmatprep.subr.bf16.mxu0 0
    %3245 = vmatpush1.bf16.msra.mxu0 0
    %3246 = vmatprep.subr.bf16.mxu0 0
    %3247 = vmatpush1.bf16.msra.mxu0 0
    %3248 = vmatprep.mubr.bf16.mxu0 0
    %3249 = vmatmul.mubr.bf16.gmra.mrb[0].mxu0 %v2976
    %v3250 = vpop.f32.mrb[0].mxu0
    %v3251 = vadd.f32 %v146, %v3250
    %v3252 = vpop.f32.mrb[0].mxu0
    %v3253 = vadd.f32 %v150, %v3252
    %v3254 = vpop.f32.mrb[0].mxu0
    %v3255 = vadd.f32 %v146, %v3254
    %v3256 = vpop.f32.mrb[0].mxu0
    %v3257 = vadd.f32 %v150, %v3256
    %3258 = vmatprep.mubr.bf16.mxu0 0
    %3259 = vmatmul.mubr.bf16.gmra.mrb[0].mxu0 %v2979
    %v3260 = vpop.f32.mrb[0].mxu0
    %v3261 = vadd.f32 %v146, %v3260
    %v3262 = vpop.f32.mrb[0].mxu0
    %v3263 = vadd.f32 %v150, %v3262
    %v3264 = vpop.f32.mrb[0].mxu0
    %v3265 = vadd.f32 %v146, %v3264
    %v3266 = vpop.f32.mrb[0].mxu0
    %v3267 = vadd.f32 %v150, %v3266
    %3268 = vmatprep.mubr.bf16.mxu0 0
    %3269 = vmatmul.mubr.bf16.gmra.mrb[0].mxu0 %v2982
    %v3270 = vpop.f32.mrb[0].mxu0
    %v3271 = vadd.f32 %v146, %v3270
    %v3272 = vpop.f32.mrb[0].mxu0
    %v3273 = vadd.f32 %v150, %v3272
    %v3274 = vpop.f32.mrb[0].mxu0
    %v3275 = vadd.f32 %v146, %v3274
    %v3276 = vpop.f32.mrb[0].mxu0
    %v3277 = vadd.f32 %v150, %v3276
    %3278 = vmatprep.mubr.bf16.mxu0 0
    %3279 = vmatmul.mubr.bf16.gmra.mrb[0].mxu0 %v2985
    %v3280 = vpop.f32.mrb[0].mxu0
    %v3281 = vadd.f32 %v146, %v3280
    %v3282 = vpop.f32.mrb[0].mxu0
    %v3283 = vadd.f32 %v150, %v3282
    %v3284 = vpop.f32.mrb[0].mxu0
    %v3285 = vadd.f32 %v146, %v3284
    %v3286 = vpop.f32.mrb[0].mxu0
    %v3287 = vadd.f32 %v150, %v3286
    %3288 = vmatprep.mubr.bf16.mxu0 0
    %3289 = vmatmul.mubr.bf16.gmra.mrb[0].mxu0 %v2988
    %v3290 = vpop.f32.mrb[0].mxu0
    %v3291 = vadd.f32 %v146, %v3290
    %v3292 = vpop.f32.mrb[0].mxu0
    %v3293 = vadd.f32 %v150, %v3292
    %v3294 = vpop.f32.mrb[0].mxu0
    %v3295 = vadd.f32 %v146, %v3294
    %v3296 = vpop.f32.mrb[0].mxu0
    %v3297 = vadd.f32 %v150, %v3296
    %3298 = vmatprep.mubr.bf16.mxu0 0
    %3299 = vmatmul.mubr.bf16.gmra.mrb[0].mxu0 %v2991
    %v3300 = vpop.f32.mrb[0].mxu0
    %v3301 = vadd.f32 %v146, %v3300
    %v3302 = vpop.f32.mrb[0].mxu0
    %v3303 = vadd.f32 %v150, %v3302
    %v3304 = vpop.f32.mrb[0].mxu0
    %v3305 = vadd.f32 %v146, %v3304
    %v3306 = vpop.f32.mrb[0].mxu0
    %v3307 = vadd.f32 %v150, %v3306
    %3308 = vmatprep.mubr.bf16.mxu0 0
    %3309 = vmatmul.mubr.bf16.gmra.mrb[0].mxu0 %v2994
    %v3310 = vpop.f32.mrb[0].mxu0
    %v3311 = vadd.f32 %v146, %v3310
    %v3312 = vpop.f32.mrb[0].mxu0
    %v3313 = vadd.f32 %v150, %v3312
    %v3314 = vpop.f32.mrb[0].mxu0
    %v3315 = vadd.f32 %v146, %v3314
    %v3316 = vpop.f32.mrb[0].mxu0
    %v3317 = vadd.f32 %v150, %v3316
    %3318 = vmatprep.mubr.bf16.mxu0 0
    %3319 = vmatmul.mubr.bf16.gmra.mrb[0].mxu0 %v2997
    %v3320 = vpop.f32.mrb[0].mxu0
    %v3321 = vadd.f32 %v146, %v3320
    %v3322 = vpop.f32.mrb[0].mxu0
    %v3323 = vadd.f32 %v150, %v3322
    %v3324 = vpop.f32.mrb[0].mxu0
    %v3325 = vadd.f32 %v146, %v3324
    %v3326 = vpop.f32.mrb[0].mxu0
    %v3327 = vadd.f32 %v150, %v3326
    %3328 = vmatprep.mubr.bf16.mxu0 0
    %3329 = vmatmul.mubr.bf16.gmra.mrb[0].mxu0 %v3000
    %v3330 = vpop.f32.mrb[0].mxu0
    %v3331 = vadd.f32 %v146, %v3330
    %v3332 = vpop.f32.mrb[0].mxu0
    %v3333 = vadd.f32 %v150, %v3332
    %v3334 = vpop.f32.mrb[0].mxu0
    %v3335 = vadd.f32 %v146, %v3334
    %v3336 = vpop.f32.mrb[0].mxu0
    %v3337 = vadd.f32 %v150, %v3336
    %3338 = vmatprep.mubr.bf16.mxu0 0
    %3339 = vmatmul.mubr.bf16.gmra.mrb[0].mxu0 %v3003
    %v3340 = vpop.f32.mrb[0].mxu0
    %v3341 = vadd.f32 %v146, %v3340
    %v3342 = vpop.f32.mrb[0].mxu0
    %v3343 = vadd.f32 %v150, %v3342
    %v3344 = vpop.f32.mrb[0].mxu0
    %v3345 = vadd.f32 %v146, %v3344
    %v3346 = vpop.f32.mrb[0].mxu0
    %v3347 = vadd.f32 %v150, %v3346
    %3348 = vmatprep.mubr.bf16.mxu0 0
    %3349 = vmatmul.mubr.bf16.gmra.mrb[0].mxu0 %v3006
    %v3350 = vpop.f32.mrb[0].mxu0
    %v3351 = vadd.f32 %v146, %v3350
    %v3352 = vpop.f32.mrb[0].mxu0
    %v3353 = vadd.f32 %v150, %v3352
    %v3354 = vpop.f32.mrb[0].mxu0
    %v3355 = vadd.f32 %v146, %v3354
    %v3356 = vpop.f32.mrb[0].mxu0
    %v3357 = vadd.f32 %v150, %v3356
    %3358 = vmatprep.mubr.bf16.mxu0 0
    %3359 = vmatmul.mubr.bf16.gmra.mrb[0].mxu0 %v3009
    %v3360 = vpop.f32.mrb[0].mxu0
    %v3361 = vadd.f32 %v146, %v3360
    %v3362 = vpop.f32.mrb[0].mxu0
    %v3363 = vadd.f32 %v150, %v3362
    %v3364 = vpop.f32.mrb[0].mxu0
    %v3365 = vadd.f32 %v146, %v3364
    %v3366 = vpop.f32.mrb[0].mxu0
    %v3367 = vadd.f32 %v150, %v3366
    %3368 = vmatprep.mubr.bf16.mxu0 0
    %3369 = vmatmul.mubr.bf16.gmra.mrb[0].mxu0 %v3012
    %v3370 = vpop.f32.mrb[0].mxu0
    %v3371 = vadd.f32 %v146, %v3370
    %v3372 = vpop.f32.mrb[0].mxu0
    %v3373 = vadd.f32 %v150, %v3372
    %v3374 = vpop.f32.mrb[0].mxu0
    %v3375 = vadd.f32 %v146, %v3374
    %v3376 = vpop.f32.mrb[0].mxu0
    %v3377 = vadd.f32 %v150, %v3376
    %3378 = vmatprep.mubr.bf16.mxu0 0
    %3379 = vmatmul.mubr.bf16.gmra.mrb[0].mxu0 %v3015
    %v3380 = vpop.f32.mrb[0].mxu0
    %v3381 = vadd.f32 %v146, %v3380
    %v3382 = vpop.f32.mrb[0].mxu0
    %v3383 = vadd.f32 %v150, %v3382
    %v3384 = vpop.f32.mrb[0].mxu0
    %v3385 = vadd.f32 %v146, %v3384
    %v3386 = vpop.f32.mrb[0].mxu0
    %v3387 = vadd.f32 %v150, %v3386
    %3388 = vmatprep.mubr.bf16.mxu0 0
    %3389 = vmatmul.mubr.bf16.gmra.mrb[0].mxu0 %v3018
    %v3390 = vpop.f32.mrb[0].mxu0
    %v3391 = vadd.f32 %v146, %v3390
    %v3392 = vpop.f32.mrb[0].mxu0
    %v3393 = vadd.f32 %v150, %v3392
    %v3394 = vpop.f32.mrb[0].mxu0
    %v3395 = vadd.f32 %v146, %v3394
    %v3396 = vpop.f32.mrb[0].mxu0
    %v3397 = vadd.f32 %v150, %v3396
    %3398 = vmatprep.mubr.bf16.mxu0 0
    %3399 = vmatmul.mubr.bf16.gmra.mrb[0].mxu0 %v3021
    %v3400 = vpop.f32.mrb[0].mxu0
    %v3401 = vadd.f32 %v146, %v3400
    %v3402 = vpop.f32.mrb[0].mxu0
    %v3403 = vadd.f32 %v150, %v3402
    %v3404 = vpop.f32.mrb[0].mxu0
    %v3405 = vadd.f32 %v146, %v3404
    %v3406 = vpop.f32.mrb[0].mxu0
    %v3407 = vadd.f32 %v150, %v3406
    %3408 = vdwg.mxu0
    %v3409 = vtanh.pop %v3058
    %v3410 = vtanh.pop %v3060
    %v3411 = vtanh.pop %v3251
    %v3412 = vtanh.pop %v3253
    %v3413 = vtanh.pop %v3062
    %v3414 = vtanh.pop %v3064
    %v3415 = vtanh.pop %v3255
    %v3416 = vtanh.pop %v3257
    %v3417 = vtanh.pop %v3068
    %v3418 = vtanh.pop %v3070
    %v3419 = vtanh.pop %v3261
    %v3420 = vtanh.pop %v3263
    %v3421 = vtanh.pop %v3072
    %v3422 = vtanh.pop %v3074
    %v3423 = vtanh.pop %v3265
    %v3424 = vtanh.pop %v3267
    %v3425 = vtanh.pop %v3078
    %v3426 = vtanh.pop %v3080
    %v3427 = vtanh.pop %v3271
    %v3428 = vtanh.pop %v3273
    %v3429 = vtanh.pop %v3082
    %v3430 = vtanh.pop %v3084
    %v3431 = vtanh.pop %v3275
    %v3432 = vtanh.pop %v3277
    %v3433 = vtanh.pop %v3088
    %v3434 = vtanh.pop %v3090
    %v3435 = vtanh.pop %v3281
    %v3436 = vtanh.pop %v3283
    %v3437 = vtanh.pop %v3092
    %v3438 = vtanh.pop %v3094
    %v3439 = vtanh.pop %v3285
    %v3440 = vtanh.pop %v3287
    %v3441 = vtanh.pop %v3098
    %v3442 = vtanh.pop %v3100
    %v3443 = vtanh.pop %v3291
    %v3444 = vtanh.pop %v3293
    %v3445 = vtanh.pop %v3102
    %v3446 = vtanh.pop %v3104
    %v3447 = vtanh.pop %v3295
    %v3448 = vtanh.pop %v3297
    %v3449 = vtanh.pop %v3108
    %v3450 = vtanh.pop %v3110
    %v3451 = vtanh.pop %v3301
    %v3452 = vtanh.pop %v3303
    %v3453 = vtanh.pop %v3112
    %v3454 = vtanh.pop %v3114
    %v3455 = vtanh.pop %v3305
    %v3456 = vtanh.pop %v3307
    %v3457 = vtanh.pop %v3118
    %v3458 = vtanh.pop %v3120
    %v3459 = vtanh.pop %v3311
    %v3460 = vtanh.pop %v3313
    %v3461 = vtanh.pop %v3122
    %v3462 = vtanh.pop %v3124
    %v3463 = vtanh.pop %v3315
    %v3464 = vtanh.pop %v3317
    %v3465 = vtanh.pop %v3128
    %v3466 = vtanh.pop %v3130
    %v3467 = vtanh.pop %v3321
    %v3468 = vtanh.pop %v3323
    %v3469 = vtanh.pop %v3132
    %v3470 = vtanh.pop %v3134
    %v3471 = vtanh.pop %v3325
    %v3472 = vtanh.pop %v3327
    %v3473 = vtanh.pop %v3138
    %v3474 = vtanh.pop %v3140
    %v3475 = vtanh.pop %v3331
    %v3476 = vtanh.pop %v3333
    %v3477 = vtanh.pop %v3142
    %v3478 = vtanh.pop %v3144
    %v3479 = vtanh.pop %v3335
    %v3480 = vtanh.pop %v3337
    %v3481 = vtanh.pop %v3148
    %v3482 = vtanh.pop %v3150
    %v3483 = vtanh.pop %v3341
    %v3484 = vtanh.pop %v3343
    %v3485 = vtanh.pop %v3152
    %v3486 = vtanh.pop %v3154
    %v3487 = vtanh.pop %v3345
    %v3488 = vtanh.pop %v3347
    %v3489 = vtanh.pop %v3158
    %v3490 = vtanh.pop %v3160
    %v3491 = vtanh.pop %v3351
    %v3492 = vtanh.pop %v3353
    %v3493 = vtanh.pop %v3162
    %v3494 = vtanh.pop %v3164
    %v3495 = vtanh.pop %v3355
    %v3496 = vtanh.pop %v3357
    %v3497 = vtanh.pop %v3168
    %v3498 = vtanh.pop %v3170
    %v3499 = vtanh.pop %v3361
    %v3500 = vtanh.pop %v3363
    %v3501 = vtanh.pop %v3172
    %v3502 = vtanh.pop %v3174
    %v3503 = vtanh.pop %v3365
    %v3504 = vtanh.pop %v3367
    %v3505 = vtanh.pop %v3178
    %v3506 = vtanh.pop %v3180
    %v3507 = vtanh.pop %v3371
    %v3508 = vtanh.pop %v3373
    %v3509 = vtanh.pop %v3182
    %v3510 = vtanh.pop %v3184
    %v3511 = vtanh.pop %v3375
    %v3512 = vtanh.pop %v3377
    %v3513 = vtanh.pop %v3188
    %v3514 = vtanh.pop %v3190
    %v3515 = vtanh.pop %v3381
    %v3516 = vtanh.pop %v3383
    %v3517 = vtanh.pop %v3192
    %v3518 = vtanh.pop %v3194
    %v3519 = vtanh.pop %v3385
    %v3520 = vtanh.pop %v3387
    %v3521 = vtanh.pop %v3198
    %v3522 = vtanh.pop %v3200
    %v3523 = vtanh.pop %v3391
    %v3524 = vtanh.pop %v3393
    %v3525 = vtanh.pop %v3202
    %v3526 = vtanh.pop %v3204
    %v3527 = vtanh.pop %v3395
    %v3528 = vtanh.pop %v3397
    %v3529 = vtanh.pop %v3208
    %v3530 = vtanh.pop %v3210
    %v3531 = vtanh.pop %v3401
    %v3532 = vtanh.pop %v3403
    %v3533 = vtanh.pop %v3212
    %v3534 = vtanh.pop %v3214
    %v3535 = vtanh.pop %v3405
    %v3536 = vtanh.pop %v3407
    %v3537 = vmul.f32 %v3409, %v802
    %v3538 = vmul.f32 %v3410, %v806
    %v3539 = vmul.f32 %v3411, %v810
    %v3540 = vmul.f32 %v3412, %v814
    %v3541 = vmul.f32 %v3413, %v802
    %v3542 = vmul.f32 %v3414, %v806
    %v3543 = vmul.f32 %v3415, %v810
    %v3544 = vmul.f32 %v3416, %v814
    %v3545 = vmul.f32 %v3417, %v802
    %v3546 = vmul.f32 %v3418, %v806
    %v3547 = vmul.f32 %v3419, %v810
    %v3548 = vmul.f32 %v3420, %v814
    %v3549 = vmul.f32 %v3421, %v802
    %v3550 = vmul.f32 %v3422, %v806
    %v3551 = vmul.f32 %v3423, %v810
    %v3552 = vmul.f32 %v3424, %v814
    %v3553 = vmul.f32 %v3425, %v802
    %v3554 = vmul.f32 %v3426, %v806
    %v3555 = vmul.f32 %v3427, %v810
    %v3556 = vmul.f32 %v3428, %v814
    %v3557 = vmul.f32 %v3429, %v802
    %v3558 = vmul.f32 %v3430, %v806
    %v3559 = vmul.f32 %v3431, %v810
    %v3560 = vmul.f32 %v3432, %v814
    %v3561 = vmul.f32 %v3433, %v802
    %v3562 = vmul.f32 %v3434, %v806
    %v3563 = vmul.f32 %v3435, %v810
    %v3564 = vmul.f32 %v3436, %v814
    %v3565 = vmul.f32 %v3437, %v802
    %v3566 = vmul.f32 %v3438, %v806
    %v3567 = vmul.f32 %v3439, %v810
    %v3568 = vmul.f32 %v3440, %v814
    %v3569 = vmul.f32 %v3441, %v802
    %v3570 = vmul.f32 %v3442, %v806
    %v3571 = vmul.f32 %v3443, %v810
    %v3572 = vmul.f32 %v3444, %v814
    %v3573 = vmul.f32 %v3445, %v802
    %v3574 = vmul.f32 %v3446, %v806
    %v3575 = vmul.f32 %v3447, %v810
    %v3576 = vmul.f32 %v3448, %v814
    %v3577 = vmul.f32 %v3449, %v802
    %v3578 = vmul.f32 %v3450, %v806
    %v3579 = vmul.f32 %v3451, %v810
    %v3580 = vmul.f32 %v3452, %v814
    %v3581 = vmul.f32 %v3453, %v802
    %v3582 = vmul.f32 %v3454, %v806
    %v3583 = vmul.f32 %v3455, %v810
    %v3584 = vmul.f32 %v3456, %v814
    %v3585 = vmul.f32 %v3457, %v802
    %v3586 = vmul.f32 %v3458, %v806
    %v3587 = vmul.f32 %v3459, %v810
    %v3588 = vmul.f32 %v3460, %v814
    %v3589 = vmul.f32 %v3461, %v802
    %v3590 = vmul.f32 %v3462, %v806
    %v3591 = vmul.f32 %v3463, %v810
    %v3592 = vmul.f32 %v3464, %v814
    %v3593 = vmul.f32 %v3465, %v802
    %v3594 = vmul.f32 %v3466, %v806
    %v3595 = vmul.f32 %v3467, %v810
    %v3596 = vmul.f32 %v3468, %v814
    %v3597 = vmul.f32 %v3469, %v802
    %v3598 = vmul.f32 %v3470, %v806
    %v3599 = vmul.f32 %v3471, %v810
    %v3600 = vmul.f32 %v3472, %v814
    %v3601 = vmul.f32 %v3473, %v802
    %v3602 = vmul.f32 %v3474, %v806
    %v3603 = vmul.f32 %v3475, %v810
    %v3604 = vmul.f32 %v3476, %v814
    %v3605 = vmul.f32 %v3477, %v802
    %v3606 = vmul.f32 %v3478, %v806
    %v3607 = vmul.f32 %v3479, %v810
    %v3608 = vmul.f32 %v3480, %v814
    %v3609 = vmul.f32 %v3481, %v802
    %v3610 = vmul.f32 %v3482, %v806
    %v3611 = vmul.f32 %v3483, %v810
    %v3612 = vmul.f32 %v3484, %v814
    %v3613 = vmul.f32 %v3485, %v802
    %v3614 = vmul.f32 %v3486, %v806
    %v3615 = vmul.f32 %v3487, %v810
    %v3616 = vmul.f32 %v3488, %v814
    %v3617 = vmul.f32 %v3489, %v802
    %v3618 = vmul.f32 %v3490, %v806
    %v3619 = vmul.f32 %v3491, %v810
    %v3620 = vmul.f32 %v3492, %v814
    %v3621 = vmul.f32 %v3493, %v802
    %v3622 = vmul.f32 %v3494, %v806
    %v3623 = vmul.f32 %v3495, %v810
    %v3624 = vmul.f32 %v3496, %v814
    %v3625 = vmul.f32 %v3497, %v802
    %v3626 = vmul.f32 %v3498, %v806
    %v3627 = vmul.f32 %v3499, %v810
    %v3628 = vmul.f32 %v3500, %v814
    %v3629 = vmul.f32 %v3501, %v802
    %v3630 = vmul.f32 %v3502, %v806
    %v3631 = vmul.f32 %v3503, %v810
    %v3632 = vmul.f32 %v3504, %v814
    %v3633 = vmul.f32 %v3505, %v802
    %v3634 = vmul.f32 %v3506, %v806
    %v3635 = vmul.f32 %v3507, %v810
    %v3636 = vmul.f32 %v3508, %v814
    %v3637 = vmul.f32 %v3509, %v802
    %v3638 = vmul.f32 %v3510, %v806
    %v3639 = vmul.f32 %v3511, %v810
    %v3640 = vmul.f32 %v3512, %v814
    %v3641 = vmul.f32 %v3513, %v802
    %v3642 = vmul.f32 %v3514, %v806
    %v3643 = vmul.f32 %v3515, %v810
    %v3644 = vmul.f32 %v3516, %v814
    %v3645 = vmul.f32 %v3517, %v802
    %v3646 = vmul.f32 %v3518, %v806
    %v3647 = vmul.f32 %v3519, %v810
    %v3648 = vmul.f32 %v3520, %v814
    %v3649 = vmul.f32 %v3521, %v802
    %v3650 = vmul.f32 %v3522, %v806
    %v3651 = vmul.f32 %v3523, %v810
    %v3652 = vmul.f32 %v3524, %v814
    %v3653 = vmul.f32 %v3525, %v802
    %v3654 = vmul.f32 %v3526, %v806
    %v3655 = vmul.f32 %v3527, %v810
    %v3656 = vmul.f32 %v3528, %v814
    %v3657 = vmul.f32 %v3529, %v802
    %v3658 = vmul.f32 %v3530, %v806
    %v3659 = vmul.f32 %v3531, %v810
    %v3660 = vmul.f32 %v3532, %v814
    %v3661 = vmul.f32 %v3533, %v802
    %v3662 = vmul.f32 %v3534, %v806
    %v3663 = vmul.f32 %v3535, %v810
    %v3664 = vmul.f32 %v3536, %v814
    %v3665 = vadd.f32 %v3537, %v3538
    %v3666 = vadd.f32 %v3665, %v3539
    %v3667 = vadd.f32 %v3666, %v3540
    %3668 = vadd.xlane.f32.xlu0 %v3667
    %v3669 = vpop.xlane.xlu0 %3668
    %v3670 = vadd.f32 %v3541, %v3542
    %v3671 = vadd.f32 %v3670, %v3543
    %v3672 = vadd.f32 %v3671, %v3544
    %3673 = vadd.xlane.f32.xlu0 %v3672
    %v3674 = vpop.xlane.xlu0 %3673
    %v3675 = vadd.f32 %v3545, %v3546
    %v3676 = vadd.f32 %v3675, %v3547
    %v3677 = vadd.f32 %v3676, %v3548
    %3678 = vadd.xlane.f32.xlu0 %v3677
    %v3679 = vpop.xlane.xlu0 %3678
    %v3680 = vadd.f32 %v3549, %v3550
    %v3681 = vadd.f32 %v3680, %v3551
    %v3682 = vadd.f32 %v3681, %v3552
    %3683 = vadd.xlane.f32.xlu0 %v3682
    %v3684 = vpop.xlane.xlu0 %3683
    %v3685 = vadd.f32 %v3553, %v3554
    %v3686 = vadd.f32 %v3685, %v3555
    %v3687 = vadd.f32 %v3686, %v3556
    %3688 = vadd.xlane.f32.xlu0 %v3687
    %v3689 = vpop.xlane.xlu0 %3688
    %v3690 = vadd.f32 %v3557, %v3558
    %v3691 = vadd.f32 %v3690, %v3559
    %v3692 = vadd.f32 %v3691, %v3560
    %3693 = vadd.xlane.f32.xlu0 %v3692
    %v3694 = vpop.xlane.xlu0 %3693
    %v3695 = vadd.f32 %v3561, %v3562
    %v3696 = vadd.f32 %v3695, %v3563
    %v3697 = vadd.f32 %v3696, %v3564
    %3698 = vadd.xlane.f32.xlu0 %v3697
    %v3699 = vpop.xlane.xlu0 %3698
    %v3700 = vadd.f32 %v3565, %v3566
    %v3701 = vadd.f32 %v3700, %v3567
    %v3702 = vadd.f32 %v3701, %v3568
    %3703 = vadd.xlane.f32.xlu0 %v3702
    %v3704 = vpop.xlane.xlu0 %3703
    %v3705 = vadd.f32 %v3569, %v3570
    %v3706 = vadd.f32 %v3705, %v3571
    %v3707 = vadd.f32 %v3706, %v3572
    %3708 = vadd.xlane.f32.xlu0 %v3707
    %v3709 = vpop.xlane.xlu0 %3708
    %v3710 = vadd.f32 %v3573, %v3574
    %v3711 = vadd.f32 %v3710, %v3575
    %v3712 = vadd.f32 %v3711, %v3576
    %3713 = vadd.xlane.f32.xlu0 %v3712
    %v3714 = vpop.xlane.xlu0 %3713
    %v3715 = vadd.f32 %v3577, %v3578
    %v3716 = vadd.f32 %v3715, %v3579
    %v3717 = vadd.f32 %v3716, %v3580
    %3718 = vadd.xlane.f32.xlu0 %v3717
    %v3719 = vpop.xlane.xlu0 %3718
    %v3720 = vadd.f32 %v3581, %v3582
    %v3721 = vadd.f32 %v3720, %v3583
    %v3722 = vadd.f32 %v3721, %v3584
    %3723 = vadd.xlane.f32.xlu0 %v3722
    %v3724 = vpop.xlane.xlu0 %3723
    %v3725 = vadd.f32 %v3585, %v3586
    %v3726 = vadd.f32 %v3725, %v3587
    %v3727 = vadd.f32 %v3726, %v3588
    %3728 = vadd.xlane.f32.xlu0 %v3727
    %v3729 = vpop.xlane.xlu0 %3728
    %v3730 = vadd.f32 %v3589, %v3590
    %v3731 = vadd.f32 %v3730, %v3591
    %v3732 = vadd.f32 %v3731, %v3592
    %3733 = vadd.xlane.f32.xlu0 %v3732
    %v3734 = vpop.xlane.xlu0 %3733
    %v3735 = vadd.f32 %v3593, %v3594
    %v3736 = vadd.f32 %v3735, %v3595
    %v3737 = vadd.f32 %v3736, %v3596
    %3738 = vadd.xlane.f32.xlu0 %v3737
    %v3739 = vpop.xlane.xlu0 %3738
    %v3740 = vadd.f32 %v3597, %v3598
    %v3741 = vadd.f32 %v3740, %v3599
    %v3742 = vadd.f32 %v3741, %v3600
    %3743 = vadd.xlane.f32.xlu0 %v3742
    %v3744 = vpop.xlane.xlu0 %3743
    %v3745 = vadd.f32 %v3601, %v3602
    %v3746 = vadd.f32 %v3745, %v3603
    %v3747 = vadd.f32 %v3746, %v3604
    %3748 = vadd.xlane.f32.xlu0 %v3747
    %v3749 = vpop.xlane.xlu0 %3748
    %v3750 = vadd.f32 %v3605, %v3606
    %v3751 = vadd.f32 %v3750, %v3607
    %v3752 = vadd.f32 %v3751, %v3608
    %3753 = vadd.xlane.f32.xlu0 %v3752
    %v3754 = vpop.xlane.xlu0 %3753
    %v3755 = vadd.f32 %v3609, %v3610
    %v3756 = vadd.f32 %v3755, %v3611
    %v3757 = vadd.f32 %v3756, %v3612
    %3758 = vadd.xlane.f32.xlu0 %v3757
    %v3759 = vpop.xlane.xlu0 %3758
    %v3760 = vadd.f32 %v3613, %v3614
    %v3761 = vadd.f32 %v3760, %v3615
    %v3762 = vadd.f32 %v3761, %v3616
    %3763 = vadd.xlane.f32.xlu0 %v3762
    %v3764 = vpop.xlane.xlu0 %3763
    %v3765 = vadd.f32 %v3617, %v3618
    %v3766 = vadd.f32 %v3765, %v3619
    %v3767 = vadd.f32 %v3766, %v3620
    %3768 = vadd.xlane.f32.xlu0 %v3767
    %v3769 = vpop.xlane.xlu0 %3768
    %v3770 = vadd.f32 %v3621, %v3622
    %v3771 = vadd.f32 %v3770, %v3623
    %v3772 = vadd.f32 %v3771, %v3624
    %3773 = vadd.xlane.f32.xlu0 %v3772
    %v3774 = vpop.xlane.xlu0 %3773
    %v3775 = vadd.f32 %v3625, %v3626
    %v3776 = vadd.f32 %v3775, %v3627
    %v3777 = vadd.f32 %v3776, %v3628
    %3778 = vadd.xlane.f32.xlu0 %v3777
    %v3779 = vpop.xlane.xlu0 %3778
    %v3780 = vadd.f32 %v3629, %v3630
    %v3781 = vadd.f32 %v3780, %v3631
    %v3782 = vadd.f32 %v3781, %v3632
    %3783 = vadd.xlane.f32.xlu0 %v3782
    %v3784 = vpop.xlane.xlu0 %3783
    %v3785 = vadd.f32 %v3633, %v3634
    %v3786 = vadd.f32 %v3785, %v3635
    %v3787 = vadd.f32 %v3786, %v3636
    %3788 = vadd.xlane.f32.xlu0 %v3787
    %v3789 = vpop.xlane.xlu0 %3788
    %v3790 = vadd.f32 %v3637, %v3638
    %v3791 = vadd.f32 %v3790, %v3639
    %v3792 = vadd.f32 %v3791, %v3640
    %3793 = vadd.xlane.f32.xlu0 %v3792
    %v3794 = vpop.xlane.xlu0 %3793
    %v3795 = vadd.f32 %v3641, %v3642
    %v3796 = vadd.f32 %v3795, %v3643
    %v3797 = vadd.f32 %v3796, %v3644
    %3798 = vadd.xlane.f32.xlu0 %v3797
    %v3799 = vpop.xlane.xlu0 %3798
    %v3800 = vadd.f32 %v3645, %v3646
    %v3801 = vadd.f32 %v3800, %v3647
    %v3802 = vadd.f32 %v3801, %v3648
    %3803 = vadd.xlane.f32.xlu0 %v3802
    %v3804 = vpop.xlane.xlu0 %3803
    %v3805 = vadd.f32 %v3649, %v3650
    %v3806 = vadd.f32 %v3805, %v3651
    %v3807 = vadd.f32 %v3806, %v3652
    %3808 = vadd.xlane.f32.xlu0 %v3807
    %v3809 = vpop.xlane.xlu0 %3808
    %v3810 = vadd.f32 %v3653, %v3654
    %v3811 = vadd.f32 %v3810, %v3655
    %v3812 = vadd.f32 %v3811, %v3656
    %3813 = vadd.xlane.f32.xlu0 %v3812
    %v3814 = vpop.xlane.xlu0 %3813
    %v3815 = vadd.f32 %v3657, %v3658
    %v3816 = vadd.f32 %v3815, %v3659
    %v3817 = vadd.f32 %v3816, %v3660
    %3818 = vadd.xlane.f32.xlu0 %v3817
    %v3819 = vpop.xlane.xlu0 %3818
    %v3820 = vadd.f32 %v3661, %v3662
    %v3821 = vadd.f32 %v3820, %v3663
    %v3822 = vadd.f32 %v3821, %v3664
    %3823 = vadd.xlane.f32.xlu0 %v3822
    %v3824 = vpop.xlane.xlu0 %3823
    %v3857 = vlaneseq
    %v3858 = vshrl.u32 %v3857, 7
    %v3859 = vsub.s32 %v1140, %v3858
    %v3860 = vrot.slane %v3669, %v3859
    %v3861 = vlaneseq
    %v3862 = vshrl.u32 %v3861, 7
    %v3863 = vsub.s32 %v1145, %v3862
    %v3864 = vrot.slane %v3674, %v3863
    %v3865 = vsel %vm1150, %v3864, %v3860
    %v3866 = vlaneseq
    %v3867 = vshrl.u32 %v3866, 7
    %v3868 = vsub.s32 %v1140, %v3867
    %v3869 = vrot.slane %v3679, %v3868
    %v3870 = vlaneseq
    %v3871 = vshrl.u32 %v3870, 7
    %v3872 = vsub.s32 %v1145, %v3871
    %v3873 = vrot.slane %v3684, %v3872
    %v3874 = vsel %vm1150, %v3873, %v3869
    %v3875 = vlaneseq
    %v3876 = vshrl.u32 %v3875, 7
    %v3877 = vsub.s32 %v1140, %v3876
    %v3878 = vrot.slane %v3689, %v3877
    %v3879 = vlaneseq
    %v3880 = vshrl.u32 %v3879, 7
    %v3881 = vsub.s32 %v1145, %v3880
    %v3882 = vrot.slane %v3694, %v3881
    %v3883 = vsel %vm1150, %v3882, %v3878
    %v3884 = vlaneseq
    %v3885 = vshrl.u32 %v3884, 7
    %v3886 = vsub.s32 %v1140, %v3885
    %v3887 = vrot.slane %v3699, %v3886
    %v3888 = vlaneseq
    %v3889 = vshrl.u32 %v3888, 7
    %v3890 = vsub.s32 %v1145, %v3889
    %v3891 = vrot.slane %v3704, %v3890
    %v3892 = vsel %vm1150, %v3891, %v3887
    %v3893 = vlaneseq
    %v3894 = vshrl.u32 %v3893, 7
    %v3895 = vsub.s32 %v1140, %v3894
    %v3896 = vrot.slane %v3709, %v3895
    %v3897 = vlaneseq
    %v3898 = vshrl.u32 %v3897, 7
    %v3899 = vsub.s32 %v1145, %v3898
    %v3900 = vrot.slane %v3714, %v3899
    %v3901 = vsel %vm1150, %v3900, %v3896
    %v3902 = vlaneseq
    %v3903 = vshrl.u32 %v3902, 7
    %v3904 = vsub.s32 %v1140, %v3903
    %v3905 = vrot.slane %v3719, %v3904
    %v3906 = vlaneseq
    %v3907 = vshrl.u32 %v3906, 7
    %v3908 = vsub.s32 %v1145, %v3907
    %v3909 = vrot.slane %v3724, %v3908
    %v3910 = vsel %vm1150, %v3909, %v3905
    %v3911 = vlaneseq
    %v3912 = vshrl.u32 %v3911, 7
    %v3913 = vsub.s32 %v1140, %v3912
    %v3914 = vrot.slane %v3729, %v3913
    %v3915 = vlaneseq
    %v3916 = vshrl.u32 %v3915, 7
    %v3917 = vsub.s32 %v1145, %v3916
    %v3918 = vrot.slane %v3734, %v3917
    %v3919 = vsel %vm1150, %v3918, %v3914
    %v3920 = vlaneseq
    %v3921 = vshrl.u32 %v3920, 7
    %v3922 = vsub.s32 %v1140, %v3921
    %v3923 = vrot.slane %v3739, %v3922
    %v3924 = vlaneseq
    %v3925 = vshrl.u32 %v3924, 7
    %v3926 = vsub.s32 %v1145, %v3925
    %v3927 = vrot.slane %v3744, %v3926
    %v3928 = vsel %vm1150, %v3927, %v3923
    %v3929 = vlaneseq
    %v3930 = vshrl.u32 %v3929, 7
    %v3931 = vsub.s32 %v1140, %v3930
    %v3932 = vrot.slane %v3749, %v3931
    %v3933 = vlaneseq
    %v3934 = vshrl.u32 %v3933, 7
    %v3935 = vsub.s32 %v1145, %v3934
    %v3936 = vrot.slane %v3754, %v3935
    %v3937 = vsel %vm1150, %v3936, %v3932
    %v3938 = vlaneseq
    %v3939 = vshrl.u32 %v3938, 7
    %v3940 = vsub.s32 %v1140, %v3939
    %v3941 = vrot.slane %v3759, %v3940
    %v3942 = vlaneseq
    %v3943 = vshrl.u32 %v3942, 7
    %v3944 = vsub.s32 %v1145, %v3943
    %v3945 = vrot.slane %v3764, %v3944
    %v3946 = vsel %vm1150, %v3945, %v3941
    %v3947 = vlaneseq
    %v3948 = vshrl.u32 %v3947, 7
    %v3949 = vsub.s32 %v1140, %v3948
    %v3950 = vrot.slane %v3769, %v3949
    %v3951 = vlaneseq
    %v3952 = vshrl.u32 %v3951, 7
    %v3953 = vsub.s32 %v1145, %v3952
    %v3954 = vrot.slane %v3774, %v3953
    %v3955 = vsel %vm1150, %v3954, %v3950
    %v3956 = vlaneseq
    %v3957 = vshrl.u32 %v3956, 7
    %v3958 = vsub.s32 %v1140, %v3957
    %v3959 = vrot.slane %v3779, %v3958
    %v3960 = vlaneseq
    %v3961 = vshrl.u32 %v3960, 7
    %v3962 = vsub.s32 %v1145, %v3961
    %v3963 = vrot.slane %v3784, %v3962
    %v3964 = vsel %vm1150, %v3963, %v3959
    %v3965 = vlaneseq
    %v3966 = vshrl.u32 %v3965, 7
    %v3967 = vsub.s32 %v1140, %v3966
    %v3968 = vrot.slane %v3789, %v3967
    %v3969 = vlaneseq
    %v3970 = vshrl.u32 %v3969, 7
    %v3971 = vsub.s32 %v1145, %v3970
    %v3972 = vrot.slane %v3794, %v3971
    %v3973 = vsel %vm1150, %v3972, %v3968
    %v3974 = vlaneseq
    %v3975 = vshrl.u32 %v3974, 7
    %v3976 = vsub.s32 %v1140, %v3975
    %v3977 = vrot.slane %v3799, %v3976
    %v3978 = vlaneseq
    %v3979 = vshrl.u32 %v3978, 7
    %v3980 = vsub.s32 %v1145, %v3979
    %v3981 = vrot.slane %v3804, %v3980
    %v3982 = vsel %vm1150, %v3981, %v3977
    %v3983 = vlaneseq
    %v3984 = vshrl.u32 %v3983, 7
    %v3985 = vsub.s32 %v1140, %v3984
    %v3986 = vrot.slane %v3809, %v3985
    %v3987 = vlaneseq
    %v3988 = vshrl.u32 %v3987, 7
    %v3989 = vsub.s32 %v1145, %v3988
    %v3990 = vrot.slane %v3814, %v3989
    %v3991 = vsel %vm1150, %v3990, %v3986
    %v3992 = vlaneseq
    %v3993 = vshrl.u32 %v3992, 7
    %v3994 = vsub.s32 %v1140, %v3993
    %v3995 = vrot.slane %v3819, %v3994
    %v3996 = vlaneseq
    %v3997 = vshrl.u32 %v3996, 7
    %v3998 = vsub.s32 %v1145, %v3997
    %v3999 = vrot.slane %v3824, %v3998
    %v4000 = vsel %vm1150, %v3999, %v3995
    %v4001 = vsel %vm1287, %v3874, %v3865
    %v4002 = vsel %vm1289, %v3883, %v4001
    %v4003 = vsel %vm1291, %v3892, %v4002
    %v4004 = vsel %vm1293, %v3901, %v4003
    %v4005 = vsel %vm1295, %v3910, %v4004
    %v4006 = vsel %vm1297, %v3919, %v4005
    %v4007 = vsel %vm1299, %v3928, %v4006
    %v4008 = vsel %vm1287, %v3946, %v3937
    %v4009 = vsel %vm1289, %v3955, %v4008
    %v4010 = vsel %vm1291, %v3964, %v4009
    %v4011 = vsel %vm1293, %v3973, %v4010
    %v4012 = vsel %vm1295, %v3982, %v4011
    %v4013 = vsel %vm1297, %v3991, %v4012
    %v4014 = vsel %vm1299, %v4000, %v4013
    %v4017 = vsel %vm1310, %v4007, -inf
    %4018 = vmax.xlane.f32.xlu0 %v4017
    %v4019 = vpop.xlane.xlu0 %4018
    %v4020 = vsel %vm1310, %v4014, -inf
    %4021 = vmax.xlane.f32.xlu0 %v4020
    %v4022 = vpop.xlane.xlu0 %4021
    %v4025 = vlaneseq
    %v4026 = vshrl.u32 %v4025, 7
    %v4027 = vsub.s32 0, %v4026
    %v4028 = vrot.slane %v4019, %v4027
    %v4029 = vlaneseq
    %v4030 = vshrl.u32 %v4029, 7
    %v4031 = vsub.s32 1, %v4030
    %v4032 = vrot.slane %v4019, %v4031
    %v4033 = vlaneseq
    %v4034 = vshrl.u32 %v4033, 7
    %v4035 = vsub.s32 2, %v4034
    %v4036 = vrot.slane %v4019, %v4035
    %v4037 = vlaneseq
    %v4038 = vshrl.u32 %v4037, 7
    %v4039 = vsub.s32 3, %v4038
    %v4040 = vrot.slane %v4019, %v4039
    %v4041 = vlaneseq
    %v4042 = vshrl.u32 %v4041, 7
    %v4043 = vsub.s32 4, %v4042
    %v4044 = vrot.slane %v4019, %v4043
    %v4045 = vlaneseq
    %v4046 = vshrl.u32 %v4045, 7
    %v4047 = vsub.s32 5, %v4046
    %v4048 = vrot.slane %v4019, %v4047
    %v4049 = vlaneseq
    %v4050 = vshrl.u32 %v4049, 7
    %v4051 = vsub.s32 6, %v4050
    %v4052 = vrot.slane %v4019, %v4051
    %v4053 = vlaneseq
    %v4054 = vshrl.u32 %v4053, 7
    %v4055 = vsub.s32 7, %v4054
    %v4056 = vrot.slane %v4019, %v4055
    %v4057 = vlaneseq
    %v4058 = vshrl.u32 %v4057, 7
    %v4059 = vsub.s32 0, %v4058
    %v4060 = vrot.slane %v4022, %v4059
    %v4061 = vlaneseq
    %v4062 = vshrl.u32 %v4061, 7
    %v4063 = vsub.s32 1, %v4062
    %v4064 = vrot.slane %v4022, %v4063
    %v4065 = vlaneseq
    %v4066 = vshrl.u32 %v4065, 7
    %v4067 = vsub.s32 2, %v4066
    %v4068 = vrot.slane %v4022, %v4067
    %v4069 = vlaneseq
    %v4070 = vshrl.u32 %v4069, 7
    %v4071 = vsub.s32 3, %v4070
    %v4072 = vrot.slane %v4022, %v4071
    %v4073 = vlaneseq
    %v4074 = vshrl.u32 %v4073, 7
    %v4075 = vsub.s32 4, %v4074
    %v4076 = vrot.slane %v4022, %v4075
    %v4077 = vlaneseq
    %v4078 = vshrl.u32 %v4077, 7
    %v4079 = vsub.s32 5, %v4078
    %v4080 = vrot.slane %v4022, %v4079
    %v4081 = vlaneseq
    %v4082 = vshrl.u32 %v4081, 7
    %v4083 = vsub.s32 6, %v4082
    %v4084 = vrot.slane %v4022, %v4083
    %v4085 = vlaneseq
    %v4086 = vshrl.u32 %v4085, 7
    %v4087 = vsub.s32 7, %v4086
    %v4088 = vrot.slane %v4022, %v4087
    %v4105 = vsub.f32 %v3669, %v4028
    %v4106 = vsub.f32 %v3674, %v4028
    %v4107 = vsub.f32 %v3679, %v4032
    %v4108 = vsub.f32 %v3684, %v4032
    %v4109 = vsub.f32 %v3689, %v4036
    %v4110 = vsub.f32 %v3694, %v4036
    %v4111 = vsub.f32 %v3699, %v4040
    %v4112 = vsub.f32 %v3704, %v4040
    %v4113 = vsub.f32 %v3709, %v4044
    %v4114 = vsub.f32 %v3714, %v4044
    %v4115 = vsub.f32 %v3719, %v4048
    %v4116 = vsub.f32 %v3724, %v4048
    %v4117 = vsub.f32 %v3729, %v4052
    %v4118 = vsub.f32 %v3734, %v4052
    %v4119 = vsub.f32 %v3739, %v4056
    %v4120 = vsub.f32 %v3744, %v4056
    %v4121 = vsub.f32 %v3749, %v4060
    %v4122 = vsub.f32 %v3754, %v4060
    %v4123 = vsub.f32 %v3759, %v4064
    %v4124 = vsub.f32 %v3764, %v4064
    %v4125 = vsub.f32 %v3769, %v4068
    %v4126 = vsub.f32 %v3774, %v4068
    %v4127 = vsub.f32 %v3779, %v4072
    %v4128 = vsub.f32 %v3784, %v4072
    %v4129 = vsub.f32 %v3789, %v4076
    %v4130 = vsub.f32 %v3794, %v4076
    %v4131 = vsub.f32 %v3799, %v4080
    %v4132 = vsub.f32 %v3804, %v4080
    %v4133 = vsub.f32 %v3809, %v4084
    %v4134 = vsub.f32 %v3814, %v4084
    %v4135 = vsub.f32 %v3819, %v4088
    %v4136 = vsub.f32 %v3824, %v4088
    %v4137 = vmul.f32 %v4105, 1.442695
    %v4138 = vpow.pop %v4137
    %v4139 = vmul.f32 %v4106, 1.442695
    %v4140 = vpow.pop %v4139
    %v4141 = vmul.f32 %v4107, 1.442695
    %v4142 = vpow.pop %v4141
    %v4143 = vmul.f32 %v4108, 1.442695
    %v4144 = vpow.pop %v4143
    %v4145 = vmul.f32 %v4109, 1.442695
    %v4146 = vpow.pop %v4145
    %v4147 = vmul.f32 %v4110, 1.442695
    %v4148 = vpow.pop %v4147
    %v4149 = vmul.f32 %v4111, 1.442695
    %v4150 = vpow.pop %v4149
    %v4151 = vmul.f32 %v4112, 1.442695
    %v4152 = vpow.pop %v4151
    %v4153 = vmul.f32 %v4113, 1.442695
    %v4154 = vpow.pop %v4153
    %v4155 = vmul.f32 %v4114, 1.442695
    %v4156 = vpow.pop %v4155
    %v4157 = vmul.f32 %v4115, 1.442695
    %v4158 = vpow.pop %v4157
    %v4159 = vmul.f32 %v4116, 1.442695
    %v4160 = vpow.pop %v4159
    %v4161 = vmul.f32 %v4117, 1.442695
    %v4162 = vpow.pop %v4161
    %v4163 = vmul.f32 %v4118, 1.442695
    %v4164 = vpow.pop %v4163
    %v4165 = vmul.f32 %v4119, 1.442695
    %v4166 = vpow.pop %v4165
    %v4167 = vmul.f32 %v4120, 1.442695
    %v4168 = vpow.pop %v4167
    %v4169 = vmul.f32 %v4121, 1.442695
    %v4170 = vpow.pop %v4169
    %v4171 = vmul.f32 %v4122, 1.442695
    %v4172 = vpow.pop %v4171
    %v4173 = vmul.f32 %v4123, 1.442695
    %v4174 = vpow.pop %v4173
    %v4175 = vmul.f32 %v4124, 1.442695
    %v4176 = vpow.pop %v4175
    %v4177 = vmul.f32 %v4125, 1.442695
    %v4178 = vpow.pop %v4177
    %v4179 = vmul.f32 %v4126, 1.442695
    %v4180 = vpow.pop %v4179
    %v4181 = vmul.f32 %v4127, 1.442695
    %v4182 = vpow.pop %v4181
    %v4183 = vmul.f32 %v4128, 1.442695
    %v4184 = vpow.pop %v4183
    %v4185 = vmul.f32 %v4129, 1.442695
    %v4186 = vpow.pop %v4185
    %v4187 = vmul.f32 %v4130, 1.442695
    %v4188 = vpow.pop %v4187
    %v4189 = vmul.f32 %v4131, 1.442695
    %v4190 = vpow.pop %v4189
    %v4191 = vmul.f32 %v4132, 1.442695
    %v4192 = vpow.pop %v4191
    %v4193 = vmul.f32 %v4133, 1.442695
    %v4194 = vpow.pop %v4193
    %v4195 = vmul.f32 %v4134, 1.442695
    %v4196 = vpow.pop %v4195
    %v4197 = vmul.f32 %v4135, 1.442695
    %v4198 = vpow.pop %v4197
    %v4199 = vmul.f32 %v4136, 1.442695
    %v4200 = vpow.pop %v4199
    %4233 = vset.pattern.permute.xlu0 0
    %4234 = vperm.xlu0 %4233, %v4138
    %v4235 = vpop.permute.xlu0 %4234
    %4236 = vset.pattern.permute.xlu0 0
    %4237 = vperm.xlu0 %4236, %v4140
    %v4238 = vpop.permute.xlu0 %4237
    %4239 = vset.pattern.permute.xlu0 0
    %4240 = vperm.xlu0 %4239, %v4142
    %v4241 = vpop.permute.xlu0 %4240
    %4242 = vset.pattern.permute.xlu0 0
    %4243 = vperm.xlu0 %4242, %v4144
    %v4244 = vpop.permute.xlu0 %4243
    %4245 = vset.pattern.permute.xlu0 0
    %4246 = vperm.xlu0 %4245, %v4146
    %v4247 = vpop.permute.xlu0 %4246
    %4248 = vset.pattern.permute.xlu0 0
    %4249 = vperm.xlu0 %4248, %v4148
    %v4250 = vpop.permute.xlu0 %4249
    %4251 = vset.pattern.permute.xlu0 0
    %4252 = vperm.xlu0 %4251, %v4150
    %v4253 = vpop.permute.xlu0 %4252
    %4254 = vset.pattern.permute.xlu0 0
    %4255 = vperm.xlu0 %4254, %v4152
    %v4256 = vpop.permute.xlu0 %4255
    %4257 = vset.pattern.permute.xlu0 0
    %4258 = vperm.xlu0 %4257, %v4154
    %v4259 = vpop.permute.xlu0 %4258
    %4260 = vset.pattern.permute.xlu0 0
    %4261 = vperm.xlu0 %4260, %v4156
    %v4262 = vpop.permute.xlu0 %4261
    %4263 = vset.pattern.permute.xlu0 0
    %4264 = vperm.xlu0 %4263, %v4158
    %v4265 = vpop.permute.xlu0 %4264
    %4266 = vset.pattern.permute.xlu0 0
    %4267 = vperm.xlu0 %4266, %v4160
    %v4268 = vpop.permute.xlu0 %4267
    %4269 = vset.pattern.permute.xlu0 0
    %4270 = vperm.xlu0 %4269, %v4162
    %v4271 = vpop.permute.xlu0 %4270
    %4272 = vset.pattern.permute.xlu0 0
    %4273 = vperm.xlu0 %4272, %v4164
    %v4274 = vpop.permute.xlu0 %4273
    %4275 = vset.pattern.permute.xlu0 0
    %4276 = vperm.xlu0 %4275, %v4166
    %v4277 = vpop.permute.xlu0 %4276
    %4278 = vset.pattern.permute.xlu0 0
    %4279 = vperm.xlu0 %4278, %v4168
    %v4280 = vpop.permute.xlu0 %4279
    %4281 = vset.pattern.permute.xlu0 0
    %4282 = vperm.xlu0 %4281, %v4170
    %v4283 = vpop.permute.xlu0 %4282
    %4284 = vset.pattern.permute.xlu0 0
    %4285 = vperm.xlu0 %4284, %v4172
    %v4286 = vpop.permute.xlu0 %4285
    %4287 = vset.pattern.permute.xlu0 0
    %4288 = vperm.xlu0 %4287, %v4174
    %v4289 = vpop.permute.xlu0 %4288
    %4290 = vset.pattern.permute.xlu0 0
    %4291 = vperm.xlu0 %4290, %v4176
    %v4292 = vpop.permute.xlu0 %4291
    %4293 = vset.pattern.permute.xlu0 0
    %4294 = vperm.xlu0 %4293, %v4178
    %v4295 = vpop.permute.xlu0 %4294
    %4296 = vset.pattern.permute.xlu0 0
    %4297 = vperm.xlu0 %4296, %v4180
    %v4298 = vpop.permute.xlu0 %4297
    %4299 = vset.pattern.permute.xlu0 0
    %4300 = vperm.xlu0 %4299, %v4182
    %v4301 = vpop.permute.xlu0 %4300
    %4302 = vset.pattern.permute.xlu0 0
    %4303 = vperm.xlu0 %4302, %v4184
    %v4304 = vpop.permute.xlu0 %4303
    %4305 = vset.pattern.permute.xlu0 0
    %4306 = vperm.xlu0 %4305, %v4186
    %v4307 = vpop.permute.xlu0 %4306
    %4308 = vset.pattern.permute.xlu0 0
    %4309 = vperm.xlu0 %4308, %v4188
    %v4310 = vpop.permute.xlu0 %4309
    %4311 = vset.pattern.permute.xlu0 0
    %4312 = vperm.xlu0 %4311, %v4190
    %v4313 = vpop.permute.xlu0 %4312
    %4314 = vset.pattern.permute.xlu0 0
    %4315 = vperm.xlu0 %4314, %v4192
    %v4316 = vpop.permute.xlu0 %4315
    %4317 = vset.pattern.permute.xlu0 0
    %4318 = vperm.xlu0 %4317, %v4194
    %v4319 = vpop.permute.xlu0 %4318
    %4320 = vset.pattern.permute.xlu0 0
    %4321 = vperm.xlu0 %4320, %v4196
    %v4322 = vpop.permute.xlu0 %4321
    %4323 = vset.pattern.permute.xlu0 0
    %4324 = vperm.xlu0 %4323, %v4198
    %v4325 = vpop.permute.xlu0 %4324
    %4326 = vset.pattern.permute.xlu0 0
    %4327 = vperm.xlu0 %4326, %v4200
    %v4328 = vpop.permute.xlu0 %4327
    %v4329 = vlaneseq
    %v4330 = vshrl.u32 %v4329, 7
    %v4331 = vsub.s32 %v1140, %v4330
    %v4332 = vrot.slane %v4235, %v4331
    %v4333 = vlaneseq
    %v4334 = vshrl.u32 %v4333, 7
    %v4335 = vsub.s32 %v1145, %v4334
    %v4336 = vrot.slane %v4238, %v4335
    %v4337 = vsel %vm1150, %v4336, %v4332
    %v4338 = vlaneseq
    %v4339 = vshrl.u32 %v4338, 7
    %v4340 = vsub.s32 %v1140, %v4339
    %v4341 = vrot.slane %v4241, %v4340
    %v4342 = vlaneseq
    %v4343 = vshrl.u32 %v4342, 7
    %v4344 = vsub.s32 %v1145, %v4343
    %v4345 = vrot.slane %v4244, %v4344
    %v4346 = vsel %vm1150, %v4345, %v4341
    %v4347 = vlaneseq
    %v4348 = vshrl.u32 %v4347, 7
    %v4349 = vsub.s32 %v1140, %v4348
    %v4350 = vrot.slane %v4247, %v4349
    %v4351 = vlaneseq
    %v4352 = vshrl.u32 %v4351, 7
    %v4353 = vsub.s32 %v1145, %v4352
    %v4354 = vrot.slane %v4250, %v4353
    %v4355 = vsel %vm1150, %v4354, %v4350
    %v4356 = vlaneseq
    %v4357 = vshrl.u32 %v4356, 7
    %v4358 = vsub.s32 %v1140, %v4357
    %v4359 = vrot.slane %v4253, %v4358
    %v4360 = vlaneseq
    %v4361 = vshrl.u32 %v4360, 7
    %v4362 = vsub.s32 %v1145, %v4361
    %v4363 = vrot.slane %v4256, %v4362
    %v4364 = vsel %vm1150, %v4363, %v4359
    %v4365 = vlaneseq
    %v4366 = vshrl.u32 %v4365, 7
    %v4367 = vsub.s32 %v1140, %v4366
    %v4368 = vrot.slane %v4259, %v4367
    %v4369 = vlaneseq
    %v4370 = vshrl.u32 %v4369, 7
    %v4371 = vsub.s32 %v1145, %v4370
    %v4372 = vrot.slane %v4262, %v4371
    %v4373 = vsel %vm1150, %v4372, %v4368
    %v4374 = vlaneseq
    %v4375 = vshrl.u32 %v4374, 7
    %v4376 = vsub.s32 %v1140, %v4375
    %v4377 = vrot.slane %v4265, %v4376
    %v4378 = vlaneseq
    %v4379 = vshrl.u32 %v4378, 7
    %v4380 = vsub.s32 %v1145, %v4379
    %v4381 = vrot.slane %v4268, %v4380
    %v4382 = vsel %vm1150, %v4381, %v4377
    %v4383 = vlaneseq
    %v4384 = vshrl.u32 %v4383, 7
    %v4385 = vsub.s32 %v1140, %v4384
    %v4386 = vrot.slane %v4271, %v4385
    %v4387 = vlaneseq
    %v4388 = vshrl.u32 %v4387, 7
    %v4389 = vsub.s32 %v1145, %v4388
    %v4390 = vrot.slane %v4274, %v4389
    %v4391 = vsel %vm1150, %v4390, %v4386
    %v4392 = vlaneseq
    %v4393 = vshrl.u32 %v4392, 7
    %v4394 = vsub.s32 %v1140, %v4393
    %v4395 = vrot.slane %v4277, %v4394
    %v4396 = vlaneseq
    %v4397 = vshrl.u32 %v4396, 7
    %v4398 = vsub.s32 %v1145, %v4397
    %v4399 = vrot.slane %v4280, %v4398
    %v4400 = vsel %vm1150, %v4399, %v4395
    %v4401 = vlaneseq
    %v4402 = vshrl.u32 %v4401, 7
    %v4403 = vsub.s32 %v1140, %v4402
    %v4404 = vrot.slane %v4283, %v4403
    %v4405 = vlaneseq
    %v4406 = vshrl.u32 %v4405, 7
    %v4407 = vsub.s32 %v1145, %v4406
    %v4408 = vrot.slane %v4286, %v4407
    %v4409 = vsel %vm1150, %v4408, %v4404
    %v4410 = vlaneseq
    %v4411 = vshrl.u32 %v4410, 7
    %v4412 = vsub.s32 %v1140, %v4411
    %v4413 = vrot.slane %v4289, %v4412
    %v4414 = vlaneseq
    %v4415 = vshrl.u32 %v4414, 7
    %v4416 = vsub.s32 %v1145, %v4415
    %v4417 = vrot.slane %v4292, %v4416
    %v4418 = vsel %vm1150, %v4417, %v4413
    %v4419 = vlaneseq
    %v4420 = vshrl.u32 %v4419, 7
    %v4421 = vsub.s32 %v1140, %v4420
    %v4422 = vrot.slane %v4295, %v4421
    %v4423 = vlaneseq
    %v4424 = vshrl.u32 %v4423, 7
    %v4425 = vsub.s32 %v1145, %v4424
    %v4426 = vrot.slane %v4298, %v4425
    %v4427 = vsel %vm1150, %v4426, %v4422
    %v4428 = vlaneseq
    %v4429 = vshrl.u32 %v4428, 7
    %v4430 = vsub.s32 %v1140, %v4429
    %v4431 = vrot.slane %v4301, %v4430
    %v4432 = vlaneseq
    %v4433 = vshrl.u32 %v4432, 7
    %v4434 = vsub.s32 %v1145, %v4433
    %v4435 = vrot.slane %v4304, %v4434
    %v4436 = vsel %vm1150, %v4435, %v4431
    %v4437 = vlaneseq
    %v4438 = vshrl.u32 %v4437, 7
    %v4439 = vsub.s32 %v1140, %v4438
    %v4440 = vrot.slane %v4307, %v4439
    %v4441 = vlaneseq
    %v4442 = vshrl.u32 %v4441, 7
    %v4443 = vsub.s32 %v1145, %v4442
    %v4444 = vrot.slane %v4310, %v4443
    %v4445 = vsel %vm1150, %v4444, %v4440
    %v4446 = vlaneseq
    %v4447 = vshrl.u32 %v4446, 7
    %v4448 = vsub.s32 %v1140, %v4447
    %v4449 = vrot.slane %v4313, %v4448
    %v4450 = vlaneseq
    %v4451 = vshrl.u32 %v4450, 7
    %v4452 = vsub.s32 %v1145, %v4451
    %v4453 = vrot.slane %v4316, %v4452
    %v4454 = vsel %vm1150, %v4453, %v4449
    %v4455 = vlaneseq
    %v4456 = vshrl.u32 %v4455, 7
    %v4457 = vsub.s32 %v1140, %v4456
    %v4458 = vrot.slane %v4319, %v4457
    %v4459 = vlaneseq
    %v4460 = vshrl.u32 %v4459, 7
    %v4461 = vsub.s32 %v1145, %v4460
    %v4462 = vrot.slane %v4322, %v4461
    %v4463 = vsel %vm1150, %v4462, %v4458
    %v4464 = vlaneseq
    %v4465 = vshrl.u32 %v4464, 7
    %v4466 = vsub.s32 %v1140, %v4465
    %v4467 = vrot.slane %v4325, %v4466
    %v4468 = vlaneseq
    %v4469 = vshrl.u32 %v4468, 7
    %v4470 = vsub.s32 %v1145, %v4469
    %v4471 = vrot.slane %v4328, %v4470
    %v4472 = vsel %vm1150, %v4471, %v4467
    %v4473 = vsel %vm1287, %v4346, %v4337
    %v4474 = vsel %vm1289, %v4355, %v4473
    %v4475 = vsel %vm1291, %v4364, %v4474
    %v4476 = vsel %vm1293, %v4373, %v4475
    %v4477 = vsel %vm1295, %v4382, %v4476
    %v4478 = vsel %vm1297, %v4391, %v4477
    %v4479 = vsel %vm1299, %v4400, %v4478
    %v4480 = vsel %vm1287, %v4418, %v4409
    %v4481 = vsel %vm1289, %v4427, %v4480
    %v4482 = vsel %vm1291, %v4436, %v4481
    %v4483 = vsel %vm1293, %v4445, %v4482
    %v4484 = vsel %vm1295, %v4454, %v4483
    %v4485 = vsel %vm1297, %v4463, %v4484
    %v4486 = vsel %vm1299, %v4472, %v4485
    %v4489 = vsel %vm1310, %v4479, 0.0
    %4490 = vadd.xlane.f32.xlu0 %v4489
    %v4491 = vpop.xlane.xlu0 %4490
    %v4492 = vsel %vm1310, %v4486, 0.0
    %4493 = vadd.xlane.f32.xlu0 %v4492
    %v4494 = vpop.xlane.xlu0 %4493
    %v4497 = vlaneseq
    %v4498 = vshrl.u32 %v4497, 7
    %v4499 = vsub.s32 0, %v4498
    %v4500 = vrot.slane %v4491, %v4499
    %v4501 = vlaneseq
    %v4502 = vshrl.u32 %v4501, 7
    %v4503 = vsub.s32 1, %v4502
    %v4504 = vrot.slane %v4491, %v4503
    %v4505 = vlaneseq
    %v4506 = vshrl.u32 %v4505, 7
    %v4507 = vsub.s32 2, %v4506
    %v4508 = vrot.slane %v4491, %v4507
    %v4509 = vlaneseq
    %v4510 = vshrl.u32 %v4509, 7
    %v4511 = vsub.s32 3, %v4510
    %v4512 = vrot.slane %v4491, %v4511
    %v4513 = vlaneseq
    %v4514 = vshrl.u32 %v4513, 7
    %v4515 = vsub.s32 4, %v4514
    %v4516 = vrot.slane %v4491, %v4515
    %v4517 = vlaneseq
    %v4518 = vshrl.u32 %v4517, 7
    %v4519 = vsub.s32 5, %v4518
    %v4520 = vrot.slane %v4491, %v4519
    %v4521 = vlaneseq
    %v4522 = vshrl.u32 %v4521, 7
    %v4523 = vsub.s32 6, %v4522
    %v4524 = vrot.slane %v4491, %v4523
    %v4525 = vlaneseq
    %v4526 = vshrl.u32 %v4525, 7
    %v4527 = vsub.s32 7, %v4526
    %v4528 = vrot.slane %v4491, %v4527
    %v4529 = vlaneseq
    %v4530 = vshrl.u32 %v4529, 7
    %v4531 = vsub.s32 0, %v4530
    %v4532 = vrot.slane %v4494, %v4531
    %v4533 = vlaneseq
    %v4534 = vshrl.u32 %v4533, 7
    %v4535 = vsub.s32 1, %v4534
    %v4536 = vrot.slane %v4494, %v4535
    %v4537 = vlaneseq
    %v4538 = vshrl.u32 %v4537, 7
    %v4539 = vsub.s32 2, %v4538
    %v4540 = vrot.slane %v4494, %v4539
    %v4541 = vlaneseq
    %v4542 = vshrl.u32 %v4541, 7
    %v4543 = vsub.s32 3, %v4542
    %v4544 = vrot.slane %v4494, %v4543
    %v4545 = vlaneseq
    %v4546 = vshrl.u32 %v4545, 7
    %v4547 = vsub.s32 4, %v4546
    %v4548 = vrot.slane %v4494, %v4547
    %v4549 = vlaneseq
    %v4550 = vshrl.u32 %v4549, 7
    %v4551 = vsub.s32 5, %v4550
    %v4552 = vrot.slane %v4494, %v4551
    %v4553 = vlaneseq
    %v4554 = vshrl.u32 %v4553, 7
    %v4555 = vsub.s32 6, %v4554
    %v4556 = vrot.slane %v4494, %v4555
    %v4557 = vlaneseq
    %v4558 = vshrl.u32 %v4557, 7
    %v4559 = vsub.s32 7, %v4558
    %v4560 = vrot.slane %v4494, %v4559
    %v4577 = vrcp.pop %v4500
    %v4578 = vmul.f32 %v4138, %v4577
    %v4579 = vmul.f32 %v4140, %v4577
    %v4580 = vrcp.pop %v4504
    %v4581 = vmul.f32 %v4142, %v4580
    %v4582 = vmul.f32 %v4144, %v4580
    %v4583 = vrcp.pop %v4508
    %v4584 = vmul.f32 %v4146, %v4583
    %v4585 = vmul.f32 %v4148, %v4583
    %v4586 = vrcp.pop %v4512
    %v4587 = vmul.f32 %v4150, %v4586
    %v4588 = vmul.f32 %v4152, %v4586
    %v4589 = vrcp.pop %v4516
    %v4590 = vmul.f32 %v4154, %v4589
    %v4591 = vmul.f32 %v4156, %v4589
    %v4592 = vrcp.pop %v4520
    %v4593 = vmul.f32 %v4158, %v4592
    %v4594 = vmul.f32 %v4160, %v4592
    %v4595 = vrcp.pop %v4524
    %v4596 = vmul.f32 %v4162, %v4595
    %v4597 = vmul.f32 %v4164, %v4595
    %v4598 = vrcp.pop %v4528
    %v4599 = vmul.f32 %v4166, %v4598
    %v4600 = vmul.f32 %v4168, %v4598
    %v4601 = vrcp.pop %v4532
    %v4602 = vmul.f32 %v4170, %v4601
    %v4603 = vmul.f32 %v4172, %v4601
    %v4604 = vrcp.pop %v4536
    %v4605 = vmul.f32 %v4174, %v4604
    %v4606 = vmul.f32 %v4176, %v4604
    %v4607 = vrcp.pop %v4540
    %v4608 = vmul.f32 %v4178, %v4607
    %v4609 = vmul.f32 %v4180, %v4607
    %v4610 = vrcp.pop %v4544
    %v4611 = vmul.f32 %v4182, %v4610
    %v4612 = vmul.f32 %v4184, %v4610
    %v4613 = vrcp.pop %v4548
    %v4614 = vmul.f32 %v4186, %v4613
    %v4615 = vmul.f32 %v4188, %v4613
    %v4616 = vrcp.pop %v4552
    %v4617 = vmul.f32 %v4190, %v4616
    %v4618 = vmul.f32 %v4192, %v4616
    %v4619 = vrcp.pop %v4556
    %v4620 = vmul.f32 %v4194, %v4619
    %v4621 = vmul.f32 %v4196, %v4619
    %v4622 = vrcp.pop %v4560
    %v4623 = vmul.f32 %v4198, %v4622
    %v4624 = vmul.f32 %v4200, %v4622
    %v4625 = vpack.c.bf16 %v4579, %v4578
    %v4626 = vpack.c.bf16 %v4582, %v4581
    %v4627 = vpack.c.bf16 %v4585, %v4584
    %v4628 = vpack.c.bf16 %v4588, %v4587
    %v4629 = vpack.c.bf16 %v4591, %v4590
    %v4630 = vpack.c.bf16 %v4594, %v4593
    %v4631 = vpack.c.bf16 %v4597, %v4596
    %v4632 = vpack.c.bf16 %v4600, %v4599
    %v4633 = vpack.c.bf16 %v4603, %v4602
    %v4634 = vpack.c.bf16 %v4606, %v4605
    %v4635 = vpack.c.bf16 %v4609, %v4608
    %v4636 = vpack.c.bf16 %v4612, %v4611
    %v4637 = vpack.c.bf16 %v4615, %v4614
    %v4638 = vpack.c.bf16 %v4618, %v4617
    %v4639 = vpack.c.bf16 %v4621, %v4620
    %v4640 = vpack.c.bf16 %v4624, %v4623
    %v4642 = vunpack.c.l.b16 %v4625
    %v4643 = vunpack.c.h.b16 %v4625
    %4644 = vset.pattern.permute.xlu0 0
    %4645 = vperm.xlu0 %4644, %v4642
    %v4646 = vpop.permute.xlu0 %4645
    %4647 = vset.pattern.permute.xlu0 0
    %4648 = vperm.xlu0 %4647, %v4643
    %v4649 = vpop.permute.xlu0 %4648
    %v4650 = vlaneseq
    %v4651 = vshrl.u32 %v4650, 7
    %v4652 = vsub.s32 %v1140, %v4651
    %v4653 = vrot.slane %v4646, %v4652
    %v4654 = vlaneseq
    %v4655 = vshrl.u32 %v4654, 7
    %v4656 = vsub.s32 %v1145, %v4655
    %v4657 = vrot.slane %v4649, %v4656
    %v4658 = vsel %vm1150, %v4657, %v4653
    %v4659 = vpack.c.b16 %v4658, %v4658
    %v4661 = vsel %vm1310, %v4659, 0
    %4663 = vmatprep.subr.bf16.mxu0 0
    %4664 = vmatpush1.bf16.msra.mxu0 %v2959
    %4665 = vmatprep.subr.bf16.mxu0 0
    %4666 = vmatpush1.bf16.msra.mxu0 0
    %4667 = vmatprep.subr.bf16.mxu0 0
    %4668 = vmatpush1.bf16.msra.mxu0 0
    %4669 = vmatprep.subr.bf16.mxu0 0
    %4670 = vmatpush1.bf16.msra.mxu0 0
    %4671 = vmatprep.subr.bf16.mxu0 0
    %4672 = vmatpush1.bf16.msra.mxu0 0
    %4673 = vmatprep.subr.bf16.mxu0 0
    %4674 = vmatpush1.bf16.msra.mxu0 0
    %4675 = vmatprep.subr.bf16.mxu0 0
    %4676 = vmatpush1.bf16.msra.mxu0 0
    %4677 = vmatprep.subr.bf16.mxu0 0
    %4678 = vmatpush1.bf16.msra.mxu0 0
    %4679 = vmatprep.subr.bf16.mxu0 0
    %4680 = vmatpush1.bf16.msra.mxu0 0
    %4681 = vmatprep.subr.bf16.mxu0 0
    %4682 = vmatpush1.bf16.msra.mxu0 0
    %4683 = vmatprep.subr.bf16.mxu0 0
    %4684 = vmatpush1.bf16.msra.mxu0 0
    %4685 = vmatprep.subr.bf16.mxu0 0
    %4686 = vmatpush1.bf16.msra.mxu0 0
    %4687 = vmatprep.subr.bf16.mxu0 0
    %4688 = vmatpush1.bf16.msra.mxu0 0
    %4689 = vmatprep.subr.bf16.mxu0 0
    %4690 = vmatpush1.bf16.msra.mxu0 0
    %4691 = vmatprep.subr.bf16.mxu0 0
    %4692 = vmatpush1.bf16.msra.mxu0 0
    %4693 = vmatprep.subr.bf16.mxu0 0
    %4694 = vmatpush1.bf16.msra.mxu0 0
    %4695 = vmatprep.mubr.bf16.mxu0 0
    %4696 = vmatmul.mubr.bf16.gmra.mrb[0].mxu0 %v4661
    %v4697 = vpop.f32.mrb[0].mxu0
    %v4698 = vadd.f32 0.0, %v4697
    %v4699 = vpop.f32.mrb[0].mxu0
    %v4700 = vpop.f32.mrb[0].mxu0
    %v4701 = vpop.f32.mrb[0].mxu0
    %4702 = vdwg.mxu0
    %v4704 = vunpack.c.l.b16 %v4626
    %v4705 = vunpack.c.h.b16 %v4626
    %4706 = vset.pattern.permute.xlu0 0
    %4707 = vperm.xlu0 %4706, %v4704
    %v4708 = vpop.permute.xlu0 %4707
    %4709 = vset.pattern.permute.xlu0 0
    %4710 = vperm.xlu0 %4709, %v4705
    %v4711 = vpop.permute.xlu0 %4710
    %v4712 = vlaneseq
    %v4713 = vshrl.u32 %v4712, 7
    %v4714 = vsub.s32 %v1140, %v4713
    %v4715 = vrot.slane %v4708, %v4714
    %v4716 = vlaneseq
    %v4717 = vshrl.u32 %v4716, 7
    %v4718 = vsub.s32 %v1145, %v4717
    %v4719 = vrot.slane %v4711, %v4718
    %v4720 = vsel %vm1150, %v4719, %v4715
    %v4721 = vpack.c.b16 %v4720, %v4720
    %v4723 = vsel %vm1310, %v4721, 0
    %4725 = vmatprep.subr.bf16.mxu0 0
    %4726 = vmatpush1.bf16.msra.mxu0 %v2960
    %4727 = vmatprep.subr.bf16.mxu0 0
    %4728 = vmatpush1.bf16.msra.mxu0 0
    %4729 = vmatprep.subr.bf16.mxu0 0
    %4730 = vmatpush1.bf16.msra.mxu0 0
    %4731 = vmatprep.subr.bf16.mxu0 0
    %4732 = vmatpush1.bf16.msra.mxu0 0
    %4733 = vmatprep.subr.bf16.mxu0 0
    %4734 = vmatpush1.bf16.msra.mxu0 0
    %4735 = vmatprep.subr.bf16.mxu0 0
    %4736 = vmatpush1.bf16.msra.mxu0 0
    %4737 = vmatprep.subr.bf16.mxu0 0
    %4738 = vmatpush1.bf16.msra.mxu0 0
    %4739 = vmatprep.subr.bf16.mxu0 0
    %4740 = vmatpush1.bf16.msra.mxu0 0
    %4741 = vmatprep.subr.bf16.mxu0 0
    %4742 = vmatpush1.bf16.msra.mxu0 0
    %4743 = vmatprep.subr.bf16.mxu0 0
    %4744 = vmatpush1.bf16.msra.mxu0 0
    %4745 = vmatprep.subr.bf16.mxu0 0
    %4746 = vmatpush1.bf16.msra.mxu0 0
    %4747 = vmatprep.subr.bf16.mxu0 0
    %4748 = vmatpush1.bf16.msra.mxu0 0
    %4749 = vmatprep.subr.bf16.mxu0 0
    %4750 = vmatpush1.bf16.msra.mxu0 0
    %4751 = vmatprep.subr.bf16.mxu0 0
    %4752 = vmatpush1.bf16.msra.mxu0 0
    %4753 = vmatprep.subr.bf16.mxu0 0
    %4754 = vmatpush1.bf16.msra.mxu0 0
    %4755 = vmatprep.subr.bf16.mxu0 0
    %4756 = vmatpush1.bf16.msra.mxu0 0
    %4757 = vmatprep.mubr.bf16.mxu0 0
    %4758 = vmatmul.mubr.bf16.gmra.mrb[0].mxu0 %v4723
    %v4759 = vpop.f32.mrb[0].mxu0
    %v4760 = vadd.f32 0.0, %v4759
    %v4761 = vpop.f32.mrb[0].mxu0
    %v4762 = vpop.f32.mrb[0].mxu0
    %v4763 = vpop.f32.mrb[0].mxu0
    %4764 = vdwg.mxu0
    %v4766 = vunpack.c.l.b16 %v4627
    %v4767 = vunpack.c.h.b16 %v4627
    %4768 = vset.pattern.permute.xlu0 0
    %4769 = vperm.xlu0 %4768, %v4766
    %v4770 = vpop.permute.xlu0 %4769
    %4771 = vset.pattern.permute.xlu0 0
    %4772 = vperm.xlu0 %4771, %v4767
    %v4773 = vpop.permute.xlu0 %4772
    %v4774 = vlaneseq
    %v4775 = vshrl.u32 %v4774, 7
    %v4776 = vsub.s32 %v1140, %v4775
    %v4777 = vrot.slane %v4770, %v4776
    %v4778 = vlaneseq
    %v4779 = vshrl.u32 %v4778, 7
    %v4780 = vsub.s32 %v1145, %v4779
    %v4781 = vrot.slane %v4773, %v4780
    %v4782 = vsel %vm1150, %v4781, %v4777
    %v4783 = vpack.c.b16 %v4782, %v4782
    %v4785 = vsel %vm1310, %v4783, 0
    %4787 = vmatprep.subr.bf16.mxu0 0
    %4788 = vmatpush1.bf16.msra.mxu0 %v2961
    %4789 = vmatprep.subr.bf16.mxu0 0
    %4790 = vmatpush1.bf16.msra.mxu0 0
    %4791 = vmatprep.subr.bf16.mxu0 0
    %4792 = vmatpush1.bf16.msra.mxu0 0
    %4793 = vmatprep.subr.bf16.mxu0 0
    %4794 = vmatpush1.bf16.msra.mxu0 0
    %4795 = vmatprep.subr.bf16.mxu0 0
    %4796 = vmatpush1.bf16.msra.mxu0 0
    %4797 = vmatprep.subr.bf16.mxu0 0
    %4798 = vmatpush1.bf16.msra.mxu0 0
    %4799 = vmatprep.subr.bf16.mxu0 0
    %4800 = vmatpush1.bf16.msra.mxu0 0
    %4801 = vmatprep.subr.bf16.mxu0 0
    %4802 = vmatpush1.bf16.msra.mxu0 0
    %4803 = vmatprep.subr.bf16.mxu0 0
    %4804 = vmatpush1.bf16.msra.mxu0 0
    %4805 = vmatprep.subr.bf16.mxu0 0
    %4806 = vmatpush1.bf16.msra.mxu0 0
    %4807 = vmatprep.subr.bf16.mxu0 0
    %4808 = vmatpush1.bf16.msra.mxu0 0
    %4809 = vmatprep.subr.bf16.mxu0 0
    %4810 = vmatpush1.bf16.msra.mxu0 0
    %4811 = vmatprep.subr.bf16.mxu0 0
    %4812 = vmatpush1.bf16.msra.mxu0 0
    %4813 = vmatprep.subr.bf16.mxu0 0
    %4814 = vmatpush1.bf16.msra.mxu0 0
    %4815 = vmatprep.subr.bf16.mxu0 0
    %4816 = vmatpush1.bf16.msra.mxu0 0
    %4817 = vmatprep.subr.bf16.mxu0 0
    %4818 = vmatpush1.bf16.msra.mxu0 0
    %4819 = vmatprep.mubr.bf16.mxu0 0
    %4820 = vmatmul.mubr.bf16.gmra.mrb[0].mxu0 %v4785
    %v4821 = vpop.f32.mrb[0].mxu0
    %v4822 = vadd.f32 0.0, %v4821
    %v4823 = vpop.f32.mrb[0].mxu0
    %v4824 = vpop.f32.mrb[0].mxu0
    %v4825 = vpop.f32.mrb[0].mxu0
    %4826 = vdwg.mxu0
    %v4828 = vunpack.c.l.b16 %v4628
    %v4829 = vunpack.c.h.b16 %v4628
    %4830 = vset.pattern.permute.xlu0 0
    %4831 = vperm.xlu0 %4830, %v4828
    %v4832 = vpop.permute.xlu0 %4831
    %4833 = vset.pattern.permute.xlu0 0
    %4834 = vperm.xlu0 %4833, %v4829
    %v4835 = vpop.permute.xlu0 %4834
    %v4836 = vlaneseq
    %v4837 = vshrl.u32 %v4836, 7
    %v4838 = vsub.s32 %v1140, %v4837
    %v4839 = vrot.slane %v4832, %v4838
    %v4840 = vlaneseq
    %v4841 = vshrl.u32 %v4840, 7
    %v4842 = vsub.s32 %v1145, %v4841
    %v4843 = vrot.slane %v4835, %v4842
    %v4844 = vsel %vm1150, %v4843, %v4839
    %v4845 = vpack.c.b16 %v4844, %v4844
    %v4847 = vsel %vm1310, %v4845, 0
    %4849 = vmatprep.subr.bf16.mxu0 0
    %4850 = vmatpush1.bf16.msra.mxu0 %v2962
    %4851 = vmatprep.subr.bf16.mxu0 0
    %4852 = vmatpush1.bf16.msra.mxu0 0
    %4853 = vmatprep.subr.bf16.mxu0 0
    %4854 = vmatpush1.bf16.msra.mxu0 0
    %4855 = vmatprep.subr.bf16.mxu0 0
    %4856 = vmatpush1.bf16.msra.mxu0 0
    %4857 = vmatprep.subr.bf16.mxu0 0
    %4858 = vmatpush1.bf16.msra.mxu0 0
    %4859 = vmatprep.subr.bf16.mxu0 0
    %4860 = vmatpush1.bf16.msra.mxu0 0
    %4861 = vmatprep.subr.bf16.mxu0 0
    %4862 = vmatpush1.bf16.msra.mxu0 0
    %4863 = vmatprep.subr.bf16.mxu0 0
    %4864 = vmatpush1.bf16.msra.mxu0 0
    %4865 = vmatprep.subr.bf16.mxu0 0
    %4866 = vmatpush1.bf16.msra.mxu0 0
    %4867 = vmatprep.subr.bf16.mxu0 0
    %4868 = vmatpush1.bf16.msra.mxu0 0
    %4869 = vmatprep.subr.bf16.mxu0 0
    %4870 = vmatpush1.bf16.msra.mxu0 0
    %4871 = vmatprep.subr.bf16.mxu0 0
    %4872 = vmatpush1.bf16.msra.mxu0 0
    %4873 = vmatprep.subr.bf16.mxu0 0
    %4874 = vmatpush1.bf16.msra.mxu0 0
    %4875 = vmatprep.subr.bf16.mxu0 0
    %4876 = vmatpush1.bf16.msra.mxu0 0
    %4877 = vmatprep.subr.bf16.mxu0 0
    %4878 = vmatpush1.bf16.msra.mxu0 0
    %4879 = vmatprep.subr.bf16.mxu0 0
    %4880 = vmatpush1.bf16.msra.mxu0 0
    %4881 = vmatprep.mubr.bf16.mxu0 0
    %4882 = vmatmul.mubr.bf16.gmra.mrb[0].mxu0 %v4847
    %v4883 = vpop.f32.mrb[0].mxu0
    %v4884 = vadd.f32 0.0, %v4883
    %v4885 = vpop.f32.mrb[0].mxu0
    %v4886 = vpop.f32.mrb[0].mxu0
    %v4887 = vpop.f32.mrb[0].mxu0
    %4888 = vdwg.mxu0
    %v4890 = vunpack.c.l.b16 %v4629
    %v4891 = vunpack.c.h.b16 %v4629
    %4892 = vset.pattern.permute.xlu0 0
    %4893 = vperm.xlu0 %4892, %v4890
    %v4894 = vpop.permute.xlu0 %4893
    %4895 = vset.pattern.permute.xlu0 0
    %4896 = vperm.xlu0 %4895, %v4891
    %v4897 = vpop.permute.xlu0 %4896
    %v4898 = vlaneseq
    %v4899 = vshrl.u32 %v4898, 7
    %v4900 = vsub.s32 %v1140, %v4899
    %v4901 = vrot.slane %v4894, %v4900
    %v4902 = vlaneseq
    %v4903 = vshrl.u32 %v4902, 7
    %v4904 = vsub.s32 %v1145, %v4903
    %v4905 = vrot.slane %v4897, %v4904
    %v4906 = vsel %vm1150, %v4905, %v4901
    %v4907 = vpack.c.b16 %v4906, %v4906
    %v4909 = vsel %vm1310, %v4907, 0
    %4911 = vmatprep.subr.bf16.mxu0 0
    %4912 = vmatpush1.bf16.msra.mxu0 %v2963
    %4913 = vmatprep.subr.bf16.mxu0 0
    %4914 = vmatpush1.bf16.msra.mxu0 0
    %4915 = vmatprep.subr.bf16.mxu0 0
    %4916 = vmatpush1.bf16.msra.mxu0 0
    %4917 = vmatprep.subr.bf16.mxu0 0
    %4918 = vmatpush1.bf16.msra.mxu0 0
    %4919 = vmatprep.subr.bf16.mxu0 0
    %4920 = vmatpush1.bf16.msra.mxu0 0
    %4921 = vmatprep.subr.bf16.mxu0 0
    %4922 = vmatpush1.bf16.msra.mxu0 0
    %4923 = vmatprep.subr.bf16.mxu0 0
    %4924 = vmatpush1.bf16.msra.mxu0 0
    %4925 = vmatprep.subr.bf16.mxu0 0
    %4926 = vmatpush1.bf16.msra.mxu0 0
    %4927 = vmatprep.subr.bf16.mxu0 0
    %4928 = vmatpush1.bf16.msra.mxu0 0
    %4929 = vmatprep.subr.bf16.mxu0 0
    %4930 = vmatpush1.bf16.msra.mxu0 0
    %4931 = vmatprep.subr.bf16.mxu0 0
    %4932 = vmatpush1.bf16.msra.mxu0 0
    %4933 = vmatprep.subr.bf16.mxu0 0
    %4934 = vmatpush1.bf16.msra.mxu0 0
    %4935 = vmatprep.subr.bf16.mxu0 0
    %4936 = vmatpush1.bf16.msra.mxu0 0
    %4937 = vmatprep.subr.bf16.mxu0 0
    %4938 = vmatpush1.bf16.msra.mxu0 0
    %4939 = vmatprep.subr.bf16.mxu0 0
    %4940 = vmatpush1.bf16.msra.mxu0 0
    %4941 = vmatprep.subr.bf16.mxu0 0
    %4942 = vmatpush1.bf16.msra.mxu0 0
    %4943 = vmatprep.mubr.bf16.mxu0 0
    %4944 = vmatmul.mubr.bf16.gmra.mrb[0].mxu0 %v4909
    %v4945 = vpop.f32.mrb[0].mxu0
    %v4946 = vadd.f32 0.0, %v4945
    %v4947 = vpop.f32.mrb[0].mxu0
    %v4948 = vpop.f32.mrb[0].mxu0
    %v4949 = vpop.f32.mrb[0].mxu0
    %4950 = vdwg.mxu0
    %v4952 = vunpack.c.l.b16 %v4630
    %v4953 = vunpack.c.h.b16 %v4630
    %4954 = vset.pattern.permute.xlu0 0
    %4955 = vperm.xlu0 %4954, %v4952
    %v4956 = vpop.permute.xlu0 %4955
    %4957 = vset.pattern.permute.xlu0 0
    %4958 = vperm.xlu0 %4957, %v4953
    %v4959 = vpop.permute.xlu0 %4958
    %v4960 = vlaneseq
    %v4961 = vshrl.u32 %v4960, 7
    %v4962 = vsub.s32 %v1140, %v4961
    %v4963 = vrot.slane %v4956, %v4962
    %v4964 = vlaneseq
    %v4965 = vshrl.u32 %v4964, 7
    %v4966 = vsub.s32 %v1145, %v4965
    %v4967 = vrot.slane %v4959, %v4966
    %v4968 = vsel %vm1150, %v4967, %v4963
    %v4969 = vpack.c.b16 %v4968, %v4968
    %v4971 = vsel %vm1310, %v4969, 0
    %4973 = vmatprep.subr.bf16.mxu0 0
    %4974 = vmatpush1.bf16.msra.mxu0 %v2964
    %4975 = vmatprep.subr.bf16.mxu0 0
    %4976 = vmatpush1.bf16.msra.mxu0 0
    %4977 = vmatprep.subr.bf16.mxu0 0
    %4978 = vmatpush1.bf16.msra.mxu0 0
    %4979 = vmatprep.subr.bf16.mxu0 0
    %4980 = vmatpush1.bf16.msra.mxu0 0
    %4981 = vmatprep.subr.bf16.mxu0 0
    %4982 = vmatpush1.bf16.msra.mxu0 0
    %4983 = vmatprep.subr.bf16.mxu0 0
    %4984 = vmatpush1.bf16.msra.mxu0 0
    %4985 = vmatprep.subr.bf16.mxu0 0
    %4986 = vmatpush1.bf16.msra.mxu0 0
    %4987 = vmatprep.subr.bf16.mxu0 0
    %4988 = vmatpush1.bf16.msra.mxu0 0
    %4989 = vmatprep.subr.bf16.mxu0 0
    %4990 = vmatpush1.bf16.msra.mxu0 0
    %4991 = vmatprep.subr.bf16.mxu0 0
    %4992 = vmatpush1.bf16.msra.mxu0 0
    %4993 = vmatprep.subr.bf16.mxu0 0
    %4994 = vmatpush1.bf16.msra.mxu0 0
    %4995 = vmatprep.subr.bf16.mxu0 0
    %4996 = vmatpush1.bf16.msra.mxu0 0
    %4997 = vmatprep.subr.bf16.mxu0 0
    %4998 = vmatpush1.bf16.msra.mxu0 0
    %4999 = vmatprep.subr.bf16.mxu0 0
    %5000 = vmatpush1.bf16.msra.mxu0 0
    %5001 = vmatprep.subr.bf16.mxu0 0
    %5002 = vmatpush1.bf16.msra.mxu0 0
    %5003 = vmatprep.subr.bf16.mxu0 0
    %5004 = vmatpush1.bf16.msra.mxu0 0
    %5005 = vmatprep.mubr.bf16.mxu0 0
    %5006 = vmatmul.mubr.bf16.gmra.mrb[0].mxu0 %v4971
    %v5007 = vpop.f32.mrb[0].mxu0
    %v5008 = vadd.f32 0.0, %v5007
    %v5009 = vpop.f32.mrb[0].mxu0
    %v5010 = vpop.f32.mrb[0].mxu0
    %v5011 = vpop.f32.mrb[0].mxu0
    %5012 = vdwg.mxu0
    %v5014 = vunpack.c.l.b16 %v4631
    %v5015 = vunpack.c.h.b16 %v4631
    %5016 = vset.pattern.permute.xlu0 0
    %5017 = vperm.xlu0 %5016, %v5014
    %v5018 = vpop.permute.xlu0 %5017
    %5019 = vset.pattern.permute.xlu0 0
    %5020 = vperm.xlu0 %5019, %v5015
    %v5021 = vpop.permute.xlu0 %5020
    %v5022 = vlaneseq
    %v5023 = vshrl.u32 %v5022, 7
    %v5024 = vsub.s32 %v1140, %v5023
    %v5025 = vrot.slane %v5018, %v5024
    %v5026 = vlaneseq
    %v5027 = vshrl.u32 %v5026, 7
    %v5028 = vsub.s32 %v1145, %v5027
    %v5029 = vrot.slane %v5021, %v5028
    %v5030 = vsel %vm1150, %v5029, %v5025
    %v5031 = vpack.c.b16 %v5030, %v5030
    %v5033 = vsel %vm1310, %v5031, 0
    %5035 = vmatprep.subr.bf16.mxu0 0
    %5036 = vmatpush1.bf16.msra.mxu0 %v2965
    %5037 = vmatprep.subr.bf16.mxu0 0
    %5038 = vmatpush1.bf16.msra.mxu0 0
    %5039 = vmatprep.subr.bf16.mxu0 0
    %5040 = vmatpush1.bf16.msra.mxu0 0
    %5041 = vmatprep.subr.bf16.mxu0 0
    %5042 = vmatpush1.bf16.msra.mxu0 0
    %5043 = vmatprep.subr.bf16.mxu0 0
    %5044 = vmatpush1.bf16.msra.mxu0 0
    %5045 = vmatprep.subr.bf16.mxu0 0
    %5046 = vmatpush1.bf16.msra.mxu0 0
    %5047 = vmatprep.subr.bf16.mxu0 0
    %5048 = vmatpush1.bf16.msra.mxu0 0
    %5049 = vmatprep.subr.bf16.mxu0 0
    %5050 = vmatpush1.bf16.msra.mxu0 0
    %5051 = vmatprep.subr.bf16.mxu0 0
    %5052 = vmatpush1.bf16.msra.mxu0 0
    %5053 = vmatprep.subr.bf16.mxu0 0
    %5054 = vmatpush1.bf16.msra.mxu0 0
    %5055 = vmatprep.subr.bf16.mxu0 0
    %5056 = vmatpush1.bf16.msra.mxu0 0
    %5057 = vmatprep.subr.bf16.mxu0 0
    %5058 = vmatpush1.bf16.msra.mxu0 0
    %5059 = vmatprep.subr.bf16.mxu0 0
    %5060 = vmatpush1.bf16.msra.mxu0 0
    %5061 = vmatprep.subr.bf16.mxu0 0
    %5062 = vmatpush1.bf16.msra.mxu0 0
    %5063 = vmatprep.subr.bf16.mxu0 0
    %5064 = vmatpush1.bf16.msra.mxu0 0
    %5065 = vmatprep.subr.bf16.mxu0 0
    %5066 = vmatpush1.bf16.msra.mxu0 0
    %5067 = vmatprep.mubr.bf16.mxu0 0
    %5068 = vmatmul.mubr.bf16.gmra.mrb[0].mxu0 %v5033
    %v5069 = vpop.f32.mrb[0].mxu0
    %v5070 = vadd.f32 0.0, %v5069
    %v5071 = vpop.f32.mrb[0].mxu0
    %v5072 = vpop.f32.mrb[0].mxu0
    %v5073 = vpop.f32.mrb[0].mxu0
    %5074 = vdwg.mxu0
    %v5076 = vunpack.c.l.b16 %v4632
    %v5077 = vunpack.c.h.b16 %v4632
    %5078 = vset.pattern.permute.xlu0 0
    %5079 = vperm.xlu0 %5078, %v5076
    %v5080 = vpop.permute.xlu0 %5079
    %5081 = vset.pattern.permute.xlu0 0
    %5082 = vperm.xlu0 %5081, %v5077
    %v5083 = vpop.permute.xlu0 %5082
    %v5084 = vlaneseq
    %v5085 = vshrl.u32 %v5084, 7
    %v5086 = vsub.s32 %v1140, %v5085
    %v5087 = vrot.slane %v5080, %v5086
    %v5088 = vlaneseq
    %v5089 = vshrl.u32 %v5088, 7
    %v5090 = vsub.s32 %v1145, %v5089
    %v5091 = vrot.slane %v5083, %v5090
    %v5092 = vsel %vm1150, %v5091, %v5087
    %v5093 = vpack.c.b16 %v5092, %v5092
    %v5095 = vsel %vm1310, %v5093, 0
    %5097 = vmatprep.subr.bf16.mxu0 0
    %5098 = vmatpush1.bf16.msra.mxu0 %v2966
    %5099 = vmatprep.subr.bf16.mxu0 0
    %5100 = vmatpush1.bf16.msra.mxu0 0
    %5101 = vmatprep.subr.bf16.mxu0 0
    %5102 = vmatpush1.bf16.msra.mxu0 0
    %5103 = vmatprep.subr.bf16.mxu0 0
    %5104 = vmatpush1.bf16.msra.mxu0 0
    %5105 = vmatprep.subr.bf16.mxu0 0
    %5106 = vmatpush1.bf16.msra.mxu0 0
    %5107 = vmatprep.subr.bf16.mxu0 0
    %5108 = vmatpush1.bf16.msra.mxu0 0
    %5109 = vmatprep.subr.bf16.mxu0 0
    %5110 = vmatpush1.bf16.msra.mxu0 0
    %5111 = vmatprep.subr.bf16.mxu0 0
    %5112 = vmatpush1.bf16.msra.mxu0 0
    %5113 = vmatprep.subr.bf16.mxu0 0
    %5114 = vmatpush1.bf16.msra.mxu0 0
    %5115 = vmatprep.subr.bf16.mxu0 0
    %5116 = vmatpush1.bf16.msra.mxu0 0
    %5117 = vmatprep.subr.bf16.mxu0 0
    %5118 = vmatpush1.bf16.msra.mxu0 0
    %5119 = vmatprep.subr.bf16.mxu0 0
    %5120 = vmatpush1.bf16.msra.mxu0 0
    %5121 = vmatprep.subr.bf16.mxu0 0
    %5122 = vmatpush1.bf16.msra.mxu0 0
    %5123 = vmatprep.subr.bf16.mxu0 0
    %5124 = vmatpush1.bf16.msra.mxu0 0
    %5125 = vmatprep.subr.bf16.mxu0 0
    %5126 = vmatpush1.bf16.msra.mxu0 0
    %5127 = vmatprep.subr.bf16.mxu0 0
    %5128 = vmatpush1.bf16.msra.mxu0 0
    %5129 = vmatprep.mubr.bf16.mxu0 0
    %5130 = vmatmul.mubr.bf16.gmra.mrb[0].mxu0 %v5095
    %v5131 = vpop.f32.mrb[0].mxu0
    %v5132 = vadd.f32 0.0, %v5131
    %v5133 = vpop.f32.mrb[0].mxu0
    %v5134 = vpop.f32.mrb[0].mxu0
    %v5135 = vpop.f32.mrb[0].mxu0
    %5136 = vdwg.mxu0
    %v5138 = vunpack.c.l.b16 %v4633
    %v5139 = vunpack.c.h.b16 %v4633
    %5140 = vset.pattern.permute.xlu0 0
    %5141 = vperm.xlu0 %5140, %v5138
    %v5142 = vpop.permute.xlu0 %5141
    %5143 = vset.pattern.permute.xlu0 0
    %5144 = vperm.xlu0 %5143, %v5139
    %v5145 = vpop.permute.xlu0 %5144
    %v5146 = vlaneseq
    %v5147 = vshrl.u32 %v5146, 7
    %v5148 = vsub.s32 %v1140, %v5147
    %v5149 = vrot.slane %v5142, %v5148
    %v5150 = vlaneseq
    %v5151 = vshrl.u32 %v5150, 7
    %v5152 = vsub.s32 %v1145, %v5151
    %v5153 = vrot.slane %v5145, %v5152
    %v5154 = vsel %vm1150, %v5153, %v5149
    %v5155 = vpack.c.b16 %v5154, %v5154
    %v5157 = vsel %vm1310, %v5155, 0
    %5159 = vmatprep.subr.bf16.mxu0 0
    %5160 = vmatpush1.bf16.msra.mxu0 %v2967
    %5161 = vmatprep.subr.bf16.mxu0 0
    %5162 = vmatpush1.bf16.msra.mxu0 0
    %5163 = vmatprep.subr.bf16.mxu0 0
    %5164 = vmatpush1.bf16.msra.mxu0 0
    %5165 = vmatprep.subr.bf16.mxu0 0
    %5166 = vmatpush1.bf16.msra.mxu0 0
    %5167 = vmatprep.subr.bf16.mxu0 0
    %5168 = vmatpush1.bf16.msra.mxu0 0
    %5169 = vmatprep.subr.bf16.mxu0 0
    %5170 = vmatpush1.bf16.msra.mxu0 0
    %5171 = vmatprep.subr.bf16.mxu0 0
    %5172 = vmatpush1.bf16.msra.mxu0 0
    %5173 = vmatprep.subr.bf16.mxu0 0
    %5174 = vmatpush1.bf16.msra.mxu0 0
    %5175 = vmatprep.subr.bf16.mxu0 0
    %5176 = vmatpush1.bf16.msra.mxu0 0
    %5177 = vmatprep.subr.bf16.mxu0 0
    %5178 = vmatpush1.bf16.msra.mxu0 0
    %5179 = vmatprep.subr.bf16.mxu0 0
    %5180 = vmatpush1.bf16.msra.mxu0 0
    %5181 = vmatprep.subr.bf16.mxu0 0
    %5182 = vmatpush1.bf16.msra.mxu0 0
    %5183 = vmatprep.subr.bf16.mxu0 0
    %5184 = vmatpush1.bf16.msra.mxu0 0
    %5185 = vmatprep.subr.bf16.mxu0 0
    %5186 = vmatpush1.bf16.msra.mxu0 0
    %5187 = vmatprep.subr.bf16.mxu0 0
    %5188 = vmatpush1.bf16.msra.mxu0 0
    %5189 = vmatprep.subr.bf16.mxu0 0
    %5190 = vmatpush1.bf16.msra.mxu0 0
    %5191 = vmatprep.mubr.bf16.mxu0 0
    %5192 = vmatmul.mubr.bf16.gmra.mrb[0].mxu0 %v5157
    %v5193 = vpop.f32.mrb[0].mxu0
    %v5194 = vadd.f32 0.0, %v5193
    %v5195 = vpop.f32.mrb[0].mxu0
    %v5196 = vpop.f32.mrb[0].mxu0
    %v5197 = vpop.f32.mrb[0].mxu0
    %5198 = vdwg.mxu0
    %v5200 = vunpack.c.l.b16 %v4634
    %v5201 = vunpack.c.h.b16 %v4634
    %5202 = vset.pattern.permute.xlu0 0
    %5203 = vperm.xlu0 %5202, %v5200
    %v5204 = vpop.permute.xlu0 %5203
    %5205 = vset.pattern.permute.xlu0 0
    %5206 = vperm.xlu0 %5205, %v5201
    %v5207 = vpop.permute.xlu0 %5206
    %v5208 = vlaneseq
    %v5209 = vshrl.u32 %v5208, 7
    %v5210 = vsub.s32 %v1140, %v5209
    %v5211 = vrot.slane %v5204, %v5210
    %v5212 = vlaneseq
    %v5213 = vshrl.u32 %v5212, 7
    %v5214 = vsub.s32 %v1145, %v5213
    %v5215 = vrot.slane %v5207, %v5214
    %v5216 = vsel %vm1150, %v5215, %v5211
    %v5217 = vpack.c.b16 %v5216, %v5216
    %v5219 = vsel %vm1310, %v5217, 0
    %5221 = vmatprep.subr.bf16.mxu0 0
    %5222 = vmatpush1.bf16.msra.mxu0 %v2968
    %5223 = vmatprep.subr.bf16.mxu0 0
    %5224 = vmatpush1.bf16.msra.mxu0 0
    %5225 = vmatprep.subr.bf16.mxu0 0
    %5226 = vmatpush1.bf16.msra.mxu0 0
    %5227 = vmatprep.subr.bf16.mxu0 0
    %5228 = vmatpush1.bf16.msra.mxu0 0
    %5229 = vmatprep.subr.bf16.mxu0 0
    %5230 = vmatpush1.bf16.msra.mxu0 0
    %5231 = vmatprep.subr.bf16.mxu0 0
    %5232 = vmatpush1.bf16.msra.mxu0 0
    %5233 = vmatprep.subr.bf16.mxu0 0
    %5234 = vmatpush1.bf16.msra.mxu0 0
    %5235 = vmatprep.subr.bf16.mxu0 0
    %5236 = vmatpush1.bf16.msra.mxu0 0
    %5237 = vmatprep.subr.bf16.mxu0 0
    %5238 = vmatpush1.bf16.msra.mxu0 0
    %5239 = vmatprep.subr.bf16.mxu0 0
    %5240 = vmatpush1.bf16.msra.mxu0 0
    %5241 = vmatprep.subr.bf16.mxu0 0
    %5242 = vmatpush1.bf16.msra.mxu0 0
    %5243 = vmatprep.subr.bf16.mxu0 0
    %5244 = vmatpush1.bf16.msra.mxu0 0
    %5245 = vmatprep.subr.bf16.mxu0 0
    %5246 = vmatpush1.bf16.msra.mxu0 0
    %5247 = vmatprep.subr.bf16.mxu0 0
    %5248 = vmatpush1.bf16.msra.mxu0 0
    %5249 = vmatprep.subr.bf16.mxu0 0
    %5250 = vmatpush1.bf16.msra.mxu0 0
    %5251 = vmatprep.subr.bf16.mxu0 0
    %5252 = vmatpush1.bf16.msra.mxu0 0
    %5253 = vmatprep.mubr.bf16.mxu0 0
    %5254 = vmatmul.mubr.bf16.gmra.mrb[0].mxu0 %v5219
    %v5255 = vpop.f32.mrb[0].mxu0
    %v5256 = vadd.f32 0.0, %v5255
    %v5257 = vpop.f32.mrb[0].mxu0
    %v5258 = vpop.f32.mrb[0].mxu0
    %v5259 = vpop.f32.mrb[0].mxu0
    %5260 = vdwg.mxu0
    %v5262 = vunpack.c.l.b16 %v4635
    %v5263 = vunpack.c.h.b16 %v4635
    %5264 = vset.pattern.permute.xlu0 0
    %5265 = vperm.xlu0 %5264, %v5262
    %v5266 = vpop.permute.xlu0 %5265
    %5267 = vset.pattern.permute.xlu0 0
    %5268 = vperm.xlu0 %5267, %v5263
    %v5269 = vpop.permute.xlu0 %5268
    %v5270 = vlaneseq
    %v5271 = vshrl.u32 %v5270, 7
    %v5272 = vsub.s32 %v1140, %v5271
    %v5273 = vrot.slane %v5266, %v5272
    %v5274 = vlaneseq
    %v5275 = vshrl.u32 %v5274, 7
    %v5276 = vsub.s32 %v1145, %v5275
    %v5277 = vrot.slane %v5269, %v5276
    %v5278 = vsel %vm1150, %v5277, %v5273
    %v5279 = vpack.c.b16 %v5278, %v5278
    %v5281 = vsel %vm1310, %v5279, 0
    %5283 = vmatprep.subr.bf16.mxu0 0
    %5284 = vmatpush1.bf16.msra.mxu0 %v2969
    %5285 = vmatprep.subr.bf16.mxu0 0
    %5286 = vmatpush1.bf16.msra.mxu0 0
    %5287 = vmatprep.subr.bf16.mxu0 0
    %5288 = vmatpush1.bf16.msra.mxu0 0
    %5289 = vmatprep.subr.bf16.mxu0 0
    %5290 = vmatpush1.bf16.msra.mxu0 0
    %5291 = vmatprep.subr.bf16.mxu0 0
    %5292 = vmatpush1.bf16.msra.mxu0 0
    %5293 = vmatprep.subr.bf16.mxu0 0
    %5294 = vmatpush1.bf16.msra.mxu0 0
    %5295 = vmatprep.subr.bf16.mxu0 0
    %5296 = vmatpush1.bf16.msra.mxu0 0
    %5297 = vmatprep.subr.bf16.mxu0 0
    %5298 = vmatpush1.bf16.msra.mxu0 0
    %5299 = vmatprep.subr.bf16.mxu0 0
    %5300 = vmatpush1.bf16.msra.mxu0 0
    %5301 = vmatprep.subr.bf16.mxu0 0
    %5302 = vmatpush1.bf16.msra.mxu0 0
    %5303 = vmatprep.subr.bf16.mxu0 0
    %5304 = vmatpush1.bf16.msra.mxu0 0
    %5305 = vmatprep.subr.bf16.mxu0 0
    %5306 = vmatpush1.bf16.msra.mxu0 0
    %5307 = vmatprep.subr.bf16.mxu0 0
    %5308 = vmatpush1.bf16.msra.mxu0 0
    %5309 = vmatprep.subr.bf16.mxu0 0
    %5310 = vmatpush1.bf16.msra.mxu0 0
    %5311 = vmatprep.subr.bf16.mxu0 0
    %5312 = vmatpush1.bf16.msra.mxu0 0
    %5313 = vmatprep.subr.bf16.mxu0 0
    %5314 = vmatpush1.bf16.msra.mxu0 0
    %5315 = vmatprep.mubr.bf16.mxu0 0
    %5316 = vmatmul.mubr.bf16.gmra.mrb[0].mxu0 %v5281
    %v5317 = vpop.f32.mrb[0].mxu0
    %v5318 = vadd.f32 0.0, %v5317
    %v5319 = vpop.f32.mrb[0].mxu0
    %v5320 = vpop.f32.mrb[0].mxu0
    %v5321 = vpop.f32.mrb[0].mxu0
    %5322 = vdwg.mxu0
    %v5324 = vunpack.c.l.b16 %v4636
    %v5325 = vunpack.c.h.b16 %v4636
    %5326 = vset.pattern.permute.xlu0 0
    %5327 = vperm.xlu0 %5326, %v5324
    %v5328 = vpop.permute.xlu0 %5327
    %5329 = vset.pattern.permute.xlu0 0
    %5330 = vperm.xlu0 %5329, %v5325
    %v5331 = vpop.permute.xlu0 %5330
    %v5332 = vlaneseq
    %v5333 = vshrl.u32 %v5332, 7
    %v5334 = vsub.s32 %v1140, %v5333
    %v5335 = vrot.slane %v5328, %v5334
    %v5336 = vlaneseq
    %v5337 = vshrl.u32 %v5336, 7
    %v5338 = vsub.s32 %v1145, %v5337
    %v5339 = vrot.slane %v5331, %v5338
    %v5340 = vsel %vm1150, %v5339, %v5335
    %v5341 = vpack.c.b16 %v5340, %v5340
    %v5343 = vsel %vm1310, %v5341, 0
    %5345 = vmatprep.subr.bf16.mxu0 0
    %5346 = vmatpush1.bf16.msra.mxu0 %v2970
    %5347 = vmatprep.subr.bf16.mxu0 0
    %5348 = vmatpush1.bf16.msra.mxu0 0
    %5349 = vmatprep.subr.bf16.mxu0 0
    %5350 = vmatpush1.bf16.msra.mxu0 0
    %5351 = vmatprep.subr.bf16.mxu0 0
    %5352 = vmatpush1.bf16.msra.mxu0 0
    %5353 = vmatprep.subr.bf16.mxu0 0
    %5354 = vmatpush1.bf16.msra.mxu0 0
    %5355 = vmatprep.subr.bf16.mxu0 0
    %5356 = vmatpush1.bf16.msra.mxu0 0
    %5357 = vmatprep.subr.bf16.mxu0 0
    %5358 = vmatpush1.bf16.msra.mxu0 0
    %5359 = vmatprep.subr.bf16.mxu0 0
    %5360 = vmatpush1.bf16.msra.mxu0 0
    %5361 = vmatprep.subr.bf16.mxu0 0
    %5362 = vmatpush1.bf16.msra.mxu0 0
    %5363 = vmatprep.subr.bf16.mxu0 0
    %5364 = vmatpush1.bf16.msra.mxu0 0
    %5365 = vmatprep.subr.bf16.mxu0 0
    %5366 = vmatpush1.bf16.msra.mxu0 0
    %5367 = vmatprep.subr.bf16.mxu0 0
    %5368 = vmatpush1.bf16.msra.mxu0 0
    %5369 = vmatprep.subr.bf16.mxu0 0
    %5370 = vmatpush1.bf16.msra.mxu0 0
    %5371 = vmatprep.subr.bf16.mxu0 0
    %5372 = vmatpush1.bf16.msra.mxu0 0
    %5373 = vmatprep.subr.bf16.mxu0 0
    %5374 = vmatpush1.bf16.msra.mxu0 0
    %5375 = vmatprep.subr.bf16.mxu0 0
    %5376 = vmatpush1.bf16.msra.mxu0 0
    %5377 = vmatprep.mubr.bf16.mxu0 0
    %5378 = vmatmul.mubr.bf16.gmra.mrb[0].mxu0 %v5343
    %v5379 = vpop.f32.mrb[0].mxu0
    %v5380 = vadd.f32 0.0, %v5379
    %v5381 = vpop.f32.mrb[0].mxu0
    %v5382 = vpop.f32.mrb[0].mxu0
    %v5383 = vpop.f32.mrb[0].mxu0
    %5384 = vdwg.mxu0
    %v5386 = vunpack.c.l.b16 %v4637
    %v5387 = vunpack.c.h.b16 %v4637
    %5388 = vset.pattern.permute.xlu0 0
    %5389 = vperm.xlu0 %5388, %v5386
    %v5390 = vpop.permute.xlu0 %5389
    %5391 = vset.pattern.permute.xlu0 0
    %5392 = vperm.xlu0 %5391, %v5387
    %v5393 = vpop.permute.xlu0 %5392
    %v5394 = vlaneseq
    %v5395 = vshrl.u32 %v5394, 7
    %v5396 = vsub.s32 %v1140, %v5395
    %v5397 = vrot.slane %v5390, %v5396
    %v5398 = vlaneseq
    %v5399 = vshrl.u32 %v5398, 7
    %v5400 = vsub.s32 %v1145, %v5399
    %v5401 = vrot.slane %v5393, %v5400
    %v5402 = vsel %vm1150, %v5401, %v5397
    %v5403 = vpack.c.b16 %v5402, %v5402
    %v5405 = vsel %vm1310, %v5403, 0
    %5407 = vmatprep.subr.bf16.mxu0 0
    %5408 = vmatpush1.bf16.msra.mxu0 %v2971
    %5409 = vmatprep.subr.bf16.mxu0 0
    %5410 = vmatpush1.bf16.msra.mxu0 0
    %5411 = vmatprep.subr.bf16.mxu0 0
    %5412 = vmatpush1.bf16.msra.mxu0 0
    %5413 = vmatprep.subr.bf16.mxu0 0
    %5414 = vmatpush1.bf16.msra.mxu0 0
    %5415 = vmatprep.subr.bf16.mxu0 0
    %5416 = vmatpush1.bf16.msra.mxu0 0
    %5417 = vmatprep.subr.bf16.mxu0 0
    %5418 = vmatpush1.bf16.msra.mxu0 0
    %5419 = vmatprep.subr.bf16.mxu0 0
    %5420 = vmatpush1.bf16.msra.mxu0 0
    %5421 = vmatprep.subr.bf16.mxu0 0
    %5422 = vmatpush1.bf16.msra.mxu0 0
    %5423 = vmatprep.subr.bf16.mxu0 0
    %5424 = vmatpush1.bf16.msra.mxu0 0
    %5425 = vmatprep.subr.bf16.mxu0 0
    %5426 = vmatpush1.bf16.msra.mxu0 0
    %5427 = vmatprep.subr.bf16.mxu0 0
    %5428 = vmatpush1.bf16.msra.mxu0 0
    %5429 = vmatprep.subr.bf16.mxu0 0
    %5430 = vmatpush1.bf16.msra.mxu0 0
    %5431 = vmatprep.subr.bf16.mxu0 0
    %5432 = vmatpush1.bf16.msra.mxu0 0
    %5433 = vmatprep.subr.bf16.mxu0 0
    %5434 = vmatpush1.bf16.msra.mxu0 0
    %5435 = vmatprep.subr.bf16.mxu0 0
    %5436 = vmatpush1.bf16.msra.mxu0 0
    %5437 = vmatprep.subr.bf16.mxu0 0
    %5438 = vmatpush1.bf16.msra.mxu0 0
    %5439 = vmatprep.mubr.bf16.mxu0 0
    %5440 = vmatmul.mubr.bf16.gmra.mrb[0].mxu0 %v5405
    %v5441 = vpop.f32.mrb[0].mxu0
    %v5442 = vadd.f32 0.0, %v5441
    %v5443 = vpop.f32.mrb[0].mxu0
    %v5444 = vpop.f32.mrb[0].mxu0
    %v5445 = vpop.f32.mrb[0].mxu0
    %5446 = vdwg.mxu0
    %v5448 = vunpack.c.l.b16 %v4638
    %v5449 = vunpack.c.h.b16 %v4638
    %5450 = vset.pattern.permute.xlu0 0
    %5451 = vperm.xlu0 %5450, %v5448
    %v5452 = vpop.permute.xlu0 %5451
    %5453 = vset.pattern.permute.xlu0 0
    %5454 = vperm.xlu0 %5453, %v5449
    %v5455 = vpop.permute.xlu0 %5454
    %v5456 = vlaneseq
    %v5457 = vshrl.u32 %v5456, 7
    %v5458 = vsub.s32 %v1140, %v5457
    %v5459 = vrot.slane %v5452, %v5458
    %v5460 = vlaneseq
    %v5461 = vshrl.u32 %v5460, 7
    %v5462 = vsub.s32 %v1145, %v5461
    %v5463 = vrot.slane %v5455, %v5462
    %v5464 = vsel %vm1150, %v5463, %v5459
    %v5465 = vpack.c.b16 %v5464, %v5464
    %v5467 = vsel %vm1310, %v5465, 0
    %5469 = vmatprep.subr.bf16.mxu0 0
    %5470 = vmatpush1.bf16.msra.mxu0 %v2972
    %5471 = vmatprep.subr.bf16.mxu0 0
    %5472 = vmatpush1.bf16.msra.mxu0 0
    %5473 = vmatprep.subr.bf16.mxu0 0
    %5474 = vmatpush1.bf16.msra.mxu0 0
    %5475 = vmatprep.subr.bf16.mxu0 0
    %5476 = vmatpush1.bf16.msra.mxu0 0
    %5477 = vmatprep.subr.bf16.mxu0 0
    %5478 = vmatpush1.bf16.msra.mxu0 0
    %5479 = vmatprep.subr.bf16.mxu0 0
    %5480 = vmatpush1.bf16.msra.mxu0 0
    %5481 = vmatprep.subr.bf16.mxu0 0
    %5482 = vmatpush1.bf16.msra.mxu0 0
    %5483 = vmatprep.subr.bf16.mxu0 0
    %5484 = vmatpush1.bf16.msra.mxu0 0
    %5485 = vmatprep.subr.bf16.mxu0 0
    %5486 = vmatpush1.bf16.msra.mxu0 0
    %5487 = vmatprep.subr.bf16.mxu0 0
    %5488 = vmatpush1.bf16.msra.mxu0 0
    %5489 = vmatprep.subr.bf16.mxu0 0
    %5490 = vmatpush1.bf16.msra.mxu0 0
    %5491 = vmatprep.subr.bf16.mxu0 0
    %5492 = vmatpush1.bf16.msra.mxu0 0
    %5493 = vmatprep.subr.bf16.mxu0 0
    %5494 = vmatpush1.bf16.msra.mxu0 0
    %5495 = vmatprep.subr.bf16.mxu0 0
    %5496 = vmatpush1.bf16.msra.mxu0 0
    %5497 = vmatprep.subr.bf16.mxu0 0
    %5498 = vmatpush1.bf16.msra.mxu0 0
    %5499 = vmatprep.subr.bf16.mxu0 0
    %5500 = vmatpush1.bf16.msra.mxu0 0
    %5501 = vmatprep.mubr.bf16.mxu0 0
    %5502 = vmatmul.mubr.bf16.gmra.mrb[0].mxu0 %v5467
    %v5503 = vpop.f32.mrb[0].mxu0
    %v5504 = vadd.f32 0.0, %v5503
    %v5505 = vpop.f32.mrb[0].mxu0
    %v5506 = vpop.f32.mrb[0].mxu0
    %v5507 = vpop.f32.mrb[0].mxu0
    %5508 = vdwg.mxu0
    %v5510 = vunpack.c.l.b16 %v4639
    %v5511 = vunpack.c.h.b16 %v4639
    %5512 = vset.pattern.permute.xlu0 0
    %5513 = vperm.xlu0 %5512, %v5510
    %v5514 = vpop.permute.xlu0 %5513
    %5515 = vset.pattern.permute.xlu0 0
    %5516 = vperm.xlu0 %5515, %v5511
    %v5517 = vpop.permute.xlu0 %5516
    %v5518 = vlaneseq
    %v5519 = vshrl.u32 %v5518, 7
    %v5520 = vsub.s32 %v1140, %v5519
    %v5521 = vrot.slane %v5514, %v5520
    %v5522 = vlaneseq
    %v5523 = vshrl.u32 %v5522, 7
    %v5524 = vsub.s32 %v1145, %v5523
    %v5525 = vrot.slane %v5517, %v5524
    %v5526 = vsel %vm1150, %v5525, %v5521
    %v5527 = vpack.c.b16 %v5526, %v5526
    %v5529 = vsel %vm1310, %v5527, 0
    %5531 = vmatprep.subr.bf16.mxu0 0
    %5532 = vmatpush1.bf16.msra.mxu0 %v2973
    %5533 = vmatprep.subr.bf16.mxu0 0
    %5534 = vmatpush1.bf16.msra.mxu0 0
    %5535 = vmatprep.subr.bf16.mxu0 0
    %5536 = vmatpush1.bf16.msra.mxu0 0
    %5537 = vmatprep.subr.bf16.mxu0 0
    %5538 = vmatpush1.bf16.msra.mxu0 0
    %5539 = vmatprep.subr.bf16.mxu0 0
    %5540 = vmatpush1.bf16.msra.mxu0 0
    %5541 = vmatprep.subr.bf16.mxu0 0
    %5542 = vmatpush1.bf16.msra.mxu0 0
    %5543 = vmatprep.subr.bf16.mxu0 0
    %5544 = vmatpush1.bf16.msra.mxu0 0
    %5545 = vmatprep.subr.bf16.mxu0 0
    %5546 = vmatpush1.bf16.msra.mxu0 0
    %5547 = vmatprep.subr.bf16.mxu0 0
    %5548 = vmatpush1.bf16.msra.mxu0 0
    %5549 = vmatprep.subr.bf16.mxu0 0
    %5550 = vmatpush1.bf16.msra.mxu0 0
    %5551 = vmatprep.subr.bf16.mxu0 0
    %5552 = vmatpush1.bf16.msra.mxu0 0
    %5553 = vmatprep.subr.bf16.mxu0 0
    %5554 = vmatpush1.bf16.msra.mxu0 0
    %5555 = vmatprep.subr.bf16.mxu0 0
    %5556 = vmatpush1.bf16.msra.mxu0 0
    %5557 = vmatprep.subr.bf16.mxu0 0
    %5558 = vmatpush1.bf16.msra.mxu0 0
    %5559 = vmatprep.subr.bf16.mxu0 0
    %5560 = vmatpush1.bf16.msra.mxu0 0
    %5561 = vmatprep.subr.bf16.mxu0 0
    %5562 = vmatpush1.bf16.msra.mxu0 0
    %5563 = vmatprep.mubr.bf16.mxu0 0
    %5564 = vmatmul.mubr.bf16.gmra.mrb[0].mxu0 %v5529
    %v5565 = vpop.f32.mrb[0].mxu0
    %v5566 = vadd.f32 0.0, %v5565
    %v5567 = vpop.f32.mrb[0].mxu0
    %v5568 = vpop.f32.mrb[0].mxu0
    %v5569 = vpop.f32.mrb[0].mxu0
    %5570 = vdwg.mxu0
    %v5572 = vunpack.c.l.b16 %v4640
    %v5573 = vunpack.c.h.b16 %v4640
    %5574 = vset.pattern.permute.xlu0 0
    %5575 = vperm.xlu0 %5574, %v5572
    %v5576 = vpop.permute.xlu0 %5575
    %5577 = vset.pattern.permute.xlu0 0
    %5578 = vperm.xlu0 %5577, %v5573
    %v5579 = vpop.permute.xlu0 %5578
    %v5580 = vlaneseq
    %v5581 = vshrl.u32 %v5580, 7
    %v5582 = vsub.s32 %v1140, %v5581
    %v5583 = vrot.slane %v5576, %v5582
    %v5584 = vlaneseq
    %v5585 = vshrl.u32 %v5584, 7
    %v5586 = vsub.s32 %v1145, %v5585
    %v5587 = vrot.slane %v5579, %v5586
    %v5588 = vsel %vm1150, %v5587, %v5583
    %v5589 = vpack.c.b16 %v5588, %v5588
    %v5591 = vsel %vm1310, %v5589, 0
    %5593 = vmatprep.subr.bf16.mxu0 0
    %5594 = vmatpush1.bf16.msra.mxu0 %v2974
    %5595 = vmatprep.subr.bf16.mxu0 0
    %5596 = vmatpush1.bf16.msra.mxu0 0
    %5597 = vmatprep.subr.bf16.mxu0 0
    %5598 = vmatpush1.bf16.msra.mxu0 0
    %5599 = vmatprep.subr.bf16.mxu0 0
    %5600 = vmatpush1.bf16.msra.mxu0 0
    %5601 = vmatprep.subr.bf16.mxu0 0
    %5602 = vmatpush1.bf16.msra.mxu0 0
    %5603 = vmatprep.subr.bf16.mxu0 0
    %5604 = vmatpush1.bf16.msra.mxu0 0
    %5605 = vmatprep.subr.bf16.mxu0 0
    %5606 = vmatpush1.bf16.msra.mxu0 0
    %5607 = vmatprep.subr.bf16.mxu0 0
    %5608 = vmatpush1.bf16.msra.mxu0 0
    %5609 = vmatprep.subr.bf16.mxu0 0
    %5610 = vmatpush1.bf16.msra.mxu0 0
    %5611 = vmatprep.subr.bf16.mxu0 0
    %5612 = vmatpush1.bf16.msra.mxu0 0
    %5613 = vmatprep.subr.bf16.mxu0 0
    %5614 = vmatpush1.bf16.msra.mxu0 0
    %5615 = vmatprep.subr.bf16.mxu0 0
    %5616 = vmatpush1.bf16.msra.mxu0 0
    %5617 = vmatprep.subr.bf16.mxu0 0
    %5618 = vmatpush1.bf16.msra.mxu0 0
    %5619 = vmatprep.subr.bf16.mxu0 0
    %5620 = vmatpush1.bf16.msra.mxu0 0
    %5621 = vmatprep.subr.bf16.mxu0 0
    %5622 = vmatpush1.bf16.msra.mxu0 0
    %5623 = vmatprep.subr.bf16.mxu0 0
    %5624 = vmatpush1.bf16.msra.mxu0 0
    %5625 = vmatprep.mubr.bf16.mxu0 0
    %5626 = vmatmul.mubr.bf16.gmra.mrb[0].mxu0 %v5591
    %v5627 = vpop.f32.mrb[0].mxu0
    %v5628 = vadd.f32 0.0, %v5627
    %v5629 = vpop.f32.mrb[0].mxu0
    %v5630 = vpop.f32.mrb[0].mxu0
    %v5631 = vpop.f32.mrb[0].mxu0
    %5632 = vdwg.mxu0
    %v5633 = vpack.c.bf16 %v1992, %v1992
    %v5634 = vpack.c.bf16 %v2054, %v2054
    %v5635 = vpack.c.bf16 %v2116, %v2116
    %v5636 = vpack.c.bf16 %v2178, %v2178
    %v5637 = vpack.c.bf16 %v2240, %v2240
    %v5638 = vpack.c.bf16 %v2302, %v2302
    %v5639 = vpack.c.bf16 %v2364, %v2364
    %v5640 = vpack.c.bf16 %v2426, %v2426
    %v5641 = vpack.c.bf16 %v2488, %v2488
    %v5642 = vpack.c.bf16 %v2550, %v2550
    %v5643 = vpack.c.bf16 %v2612, %v2612
    %v5644 = vpack.c.bf16 %v2674, %v2674
    %v5645 = vpack.c.bf16 %v2736, %v2736
    %v5646 = vpack.c.bf16 %v2798, %v2798
    %v5647 = vpack.c.bf16 %v2860, %v2860
    %v5648 = vpack.c.bf16 %v2922, %v2922
    %v5649 = vld [vmem:[%s5] sm:$0xf]
    %v5650 = vld [vmem:[%s5 + $0x4] sm:$0xf]
    %v5651 = vld [vmem:[%s5 + $0x8] sm:$0xf]
    %v5652 = vld [vmem:[%s5 + $0xc] sm:$0xf]
    %v5653 = vld [vmem:[%s5 + $0x10] sm:$0xf]
    %v5654 = vld [vmem:[%s5 + $0x14] sm:$0xf]
    %v5655 = vld [vmem:[%s5 + $0x18] sm:$0xf]
    %v5656 = vld [vmem:[%s5 + $0x1c] sm:$0xf]
    %v5657 = vpack.c.bf16 %v4698, %v4698
    %v5658 = vpack.c.bf16 %v4760, %v4760
    %v5659 = vpack.c.bf16 %v4822, %v4822
    %v5660 = vpack.c.bf16 %v4884, %v4884
    %v5661 = vpack.c.bf16 %v4946, %v4946
    %v5662 = vpack.c.bf16 %v5008, %v5008
    %v5663 = vpack.c.bf16 %v5070, %v5070
    %v5664 = vpack.c.bf16 %v5132, %v5132
    %v5665 = vpack.c.bf16 %v5194, %v5194
    %v5666 = vpack.c.bf16 %v5256, %v5256
    %v5667 = vpack.c.bf16 %v5318, %v5318
    %v5668 = vpack.c.bf16 %v5380, %v5380
    %v5669 = vpack.c.bf16 %v5442, %v5442
    %v5670 = vpack.c.bf16 %v5504, %v5504
    %v5671 = vpack.c.bf16 %v5566, %v5566
    %v5672 = vpack.c.bf16 %v5628, %v5628
    %s5673 = scalar_lea.vmem %s5, 32
    %v5674 = vld [vmem:[%s5673] sm:$0xf]
    %v5675 = vld [vmem:[%s5673 + $0x4] sm:$0xf]
    %v5676 = vld [vmem:[%s5673 + $0x8] sm:$0xf]
    %v5677 = vld [vmem:[%s5673 + $0xc] sm:$0xf]
    %v5678 = vld [vmem:[%s5673 + $0x10] sm:$0xf]
    %v5679 = vld [vmem:[%s5673 + $0x14] sm:$0xf]
    %v5680 = vld [vmem:[%s5673 + $0x18] sm:$0xf]
    %v5681 = vld [vmem:[%s5673 + $0x1c] sm:$0xf]
    %v5698 = vunpack.c.l.b16 %v5657
    %v5699 = vunpack.c.l.b16 %v5658
    %v5700 = vunpack.c.l.b16 %v5659
    %v5701 = vunpack.c.l.b16 %v5660
    %v5702 = vunpack.c.l.b16 %v5661
    %v5703 = vunpack.c.l.b16 %v5662
    %v5704 = vunpack.c.l.b16 %v5663
    %v5705 = vunpack.c.l.b16 %v5664
    %v5706 = vunpack.c.l.b16 %v5665
    %v5707 = vunpack.c.l.b16 %v5666
    %v5708 = vunpack.c.l.b16 %v5667
    %v5709 = vunpack.c.l.b16 %v5668
    %v5710 = vunpack.c.l.b16 %v5669
    %v5711 = vunpack.c.l.b16 %v5670
    %v5712 = vunpack.c.l.b16 %v5671
    %v5713 = vunpack.c.l.b16 %v5672
    %v5714 = vrot.slane %v5699, 7
    %v5715 = vsel %vm1287, %v5714, %v5698
    %v5716 = vrot.slane %v5700, 6
    %v5717 = vsel %vm1289, %v5716, %v5715
    %v5718 = vrot.slane %v5701, 5
    %v5719 = vsel %vm1291, %v5718, %v5717
    %v5720 = vrot.slane %v5702, 4
    %v5721 = vsel %vm1293, %v5720, %v5719
    %v5722 = vrot.slane %v5703, 3
    %v5723 = vsel %vm1295, %v5722, %v5721
    %v5724 = vrot.slane %v5704, 2
    %v5725 = vsel %vm1297, %v5724, %v5723
    %v5726 = vrot.slane %v5705, 1
    %v5727 = vsel %vm1299, %v5726, %v5725
    %v5728 = vrot.slane %v5707, 7
    %v5729 = vsel %vm1287, %v5728, %v5706
    %v5730 = vrot.slane %v5708, 6
    %v5731 = vsel %vm1289, %v5730, %v5729
    %v5732 = vrot.slane %v5709, 5
    %v5733 = vsel %vm1291, %v5732, %v5731
    %v5734 = vrot.slane %v5710, 4
    %v5735 = vsel %vm1293, %v5734, %v5733
    %v5736 = vrot.slane %v5711, 3
    %v5737 = vsel %vm1295, %v5736, %v5735
    %v5738 = vrot.slane %v5712, 2
    %v5739 = vsel %vm1297, %v5738, %v5737
    %v5740 = vrot.slane %v5713, 1
    %v5741 = vsel %vm1299, %v5740, %v5739
    %v5742 = vpack.c.b16 %v5741, %v5727
    %v5751 = vunpack.c.l.b16 %v5674
    %v5752 = vunpack.c.l.b16 %v5675
    %v5753 = vunpack.c.l.b16 %v5676
    %v5754 = vunpack.c.l.b16 %v5677
    %v5755 = vunpack.c.l.b16 %v5678
    %v5756 = vunpack.c.l.b16 %v5679
    %v5757 = vunpack.c.l.b16 %v5680
    %v5758 = vunpack.c.l.b16 %v5681
    %v5759 = vpack.c.b16 %v5752, %v5751
    %v5760 = vpack.c.b16 %v5754, %v5753
    %v5761 = vpack.c.b16 %v5756, %v5755
    %v5762 = vpack.c.b16 %v5758, %v5757
    %v5768 = vsel %vm235, %v5742, 0
    %5770 = vmatprep.subr.bf16.mxu0 0
    %5771 = vmatpush1.bf16.msra.mxu0 %v5759
    %5772 = vmatprep.subr.bf16.mxu0 0
    %5773 = vmatpush1.bf16.msra.mxu0 %v5760
    %5774 = vmatprep.subr.bf16.mxu0 0
    %5775 = vmatpush1.bf16.msra.mxu0 %v5761
    %5776 = vmatprep.subr.bf16.mxu0 0
    %5777 = vmatpush1.bf16.msra.mxu0 %v5762
    %5778 = vmatprep.subr.bf16.mxu0 0
    %5779 = vmatpush1.bf16.msra.mxu0 0
    %5780 = vmatprep.subr.bf16.mxu0 0
    %5781 = vmatpush1.bf16.msra.mxu0 0
    %5782 = vmatprep.subr.bf16.mxu0 0
    %5783 = vmatpush1.bf16.msra.mxu0 0
    %5784 = vmatprep.subr.bf16.mxu0 0
    %5785 = vmatpush1.bf16.msra.mxu0 0
    %5786 = vmatprep.subr.bf16.mxu0 0
    %5787 = vmatpush1.bf16.msra.mxu0 0
    %5788 = vmatprep.subr.bf16.mxu0 0
    %5789 = vmatpush1.bf16.msra.mxu0 0
    %5790 = vmatprep.subr.bf16.mxu0 0
    %5791 = vmatpush1.bf16.msra.mxu0 0
    %5792 = vmatprep.subr.bf16.mxu0 0
    %5793 = vmatpush1.bf16.msra.mxu0 0
    %5794 = vmatprep.subr.bf16.mxu0 0
    %5795 = vmatpush1.bf16.msra.mxu0 0
    %5796 = vmatprep.subr.bf16.mxu0 0
    %5797 = vmatpush1.bf16.msra.mxu0 0
    %5798 = vmatprep.subr.bf16.mxu0 0
    %5799 = vmatpush1.bf16.msra.mxu0 0
    %5800 = vmatprep.subr.bf16.mxu0 0
    %5801 = vmatpush1.bf16.msra.mxu0 0
    %5802 = vmatprep.mubr.bf16.mxu0 0
    %5803 = vmatmul.mubr.bf16.gmra.mrb[0].mxu0 %v5768
    %v5804 = vpop.f32.mrb[0].mxu0
    %v5805 = vadd.f32 0.0, %v5804
    %v5806 = vpop.f32.mrb[0].mxu0
    %v5807 = vpop.f32.mrb[0].mxu0
    %v5808 = vadd.f32 0.0, %v5807
    %v5809 = vpop.f32.mrb[0].mxu0
    %5810 = vdwg.mxu0
    %v5827 = vunpack.c.l.b16 %v5633
    %v5828 = vunpack.c.l.b16 %v5634
    %v5829 = vunpack.c.l.b16 %v5635
    %v5830 = vunpack.c.l.b16 %v5636
    %v5831 = vunpack.c.l.b16 %v5637
    %v5832 = vunpack.c.l.b16 %v5638
    %v5833 = vunpack.c.l.b16 %v5639
    %v5834 = vunpack.c.l.b16 %v5640
    %v5835 = vunpack.c.l.b16 %v5641
    %v5836 = vunpack.c.l.b16 %v5642
    %v5837 = vunpack.c.l.b16 %v5643
    %v5838 = vunpack.c.l.b16 %v5644
    %v5839 = vunpack.c.l.b16 %v5645
    %v5840 = vunpack.c.l.b16 %v5646
    %v5841 = vunpack.c.l.b16 %v5647
    %v5842 = vunpack.c.l.b16 %v5648
    %v5843 = vrot.slane %v5828, 7
    %v5844 = vsel %vm1287, %v5843, %v5827
    %v5845 = vrot.slane %v5829, 6
    %v5846 = vsel %vm1289, %v5845, %v5844
    %v5847 = vrot.slane %v5830, 5
    %v5848 = vsel %vm1291, %v5847, %v5846
    %v5849 = vrot.slane %v5831, 4
    %v5850 = vsel %vm1293, %v5849, %v5848
    %v5851 = vrot.slane %v5832, 3
    %v5852 = vsel %vm1295, %v5851, %v5850
    %v5853 = vrot.slane %v5833, 2
    %v5854 = vsel %vm1297, %v5853, %v5852
    %v5855 = vrot.slane %v5834, 1
    %v5856 = vsel %vm1299, %v5855, %v5854
    %v5857 = vrot.slane %v5836, 7
    %v5858 = vsel %vm1287, %v5857, %v5835
    %v5859 = vrot.slane %v5837, 6
    %v5860 = vsel %vm1289, %v5859, %v5858
    %v5861 = vrot.slane %v5838, 5
    %v5862 = vsel %vm1291, %v5861, %v5860
    %v5863 = vrot.slane %v5839, 4
    %v5864 = vsel %vm1293, %v5863, %v5862
    %v5865 = vrot.slane %v5840, 3
    %v5866 = vsel %vm1295, %v5865, %v5864
    %v5867 = vrot.slane %v5841, 2
    %v5868 = vsel %vm1297, %v5867, %v5866
    %v5869 = vrot.slane %v5842, 1
    %v5870 = vsel %vm1299, %v5869, %v5868
    %v5871 = vpack.c.b16 %v5870, %v5856
    %v5880 = vunpack.c.l.b16 %v5649
    %v5881 = vunpack.c.l.b16 %v5650
    %v5882 = vunpack.c.l.b16 %v5651
    %v5883 = vunpack.c.l.b16 %v5652
    %v5884 = vunpack.c.l.b16 %v5653
    %v5885 = vunpack.c.l.b16 %v5654
    %v5886 = vunpack.c.l.b16 %v5655
    %v5887 = vunpack.c.l.b16 %v5656
    %v5888 = vpack.c.b16 %v5881, %v5880
    %v5889 = vpack.c.b16 %v5883, %v5882
    %v5890 = vpack.c.b16 %v5885, %v5884
    %v5891 = vpack.c.b16 %v5887, %v5886
    %v5897 = vsel %vm235, %v5871, 0
    %5899 = vmatprep.subr.bf16.mxu0 0
    %5900 = vmatpush1.bf16.msra.mxu0 %v5888
    %5901 = vmatprep.subr.bf16.mxu0 0
    %5902 = vmatpush1.bf16.msra.mxu0 %v5889
    %5903 = vmatprep.subr.bf16.mxu0 0
    %5904 = vmatpush1.bf16.msra.mxu0 %v5890
    %5905 = vmatprep.subr.bf16.mxu0 0
    %5906 = vmatpush1.bf16.msra.mxu0 %v5891
    %5907 = vmatprep.subr.bf16.mxu0 0
    %5908 = vmatpush1.bf16.msra.mxu0 0
    %5909 = vmatprep.subr.bf16.mxu0 0
    %5910 = vmatpush1.bf16.msra.mxu0 0
    %5911 = vmatprep.subr.bf16.mxu0 0
    %5912 = vmatpush1.bf16.msra.mxu0 0
    %5913 = vmatprep.subr.bf16.mxu0 0
    %5914 = vmatpush1.bf16.msra.mxu0 0
    %5915 = vmatprep.subr.bf16.mxu0 0
    %5916 = vmatpush1.bf16.msra.mxu0 0
    %5917 = vmatprep.subr.bf16.mxu0 0
    %5918 = vmatpush1.bf16.msra.mxu0 0
    %5919 = vmatprep.subr.bf16.mxu0 0
    %5920 = vmatpush1.bf16.msra.mxu0 0
    %5921 = vmatprep.subr.bf16.mxu0 0
    %5922 = vmatpush1.bf16.msra.mxu0 0
    %5923 = vmatprep.subr.bf16.mxu0 0
    %5924 = vmatpush1.bf16.msra.mxu0 0
    %5925 = vmatprep.subr.bf16.mxu0 0
    %5926 = vmatpush1.bf16.msra.mxu0 0
    %5927 = vmatprep.subr.bf16.mxu0 0
    %5928 = vmatpush1.bf16.msra.mxu0 0
    %5929 = vmatprep.subr.bf16.mxu0 0
    %5930 = vmatpush1.bf16.msra.mxu0 0
    %5931 = vmatprep.mubr.bf16.mxu0 0
    %5932 = vmatmul.mubr.bf16.gmra.mrb[0].mxu0 %v5897
    %v5933 = vpop.f32.mrb[0].mxu0
    %v5934 = vadd.f32 %v5805, %v5933
    %v5935 = vpop.f32.mrb[0].mxu0
    %v5936 = vpop.f32.mrb[0].mxu0
    %v5937 = vadd.f32 %v5808, %v5936
    %v5938 = vpop.f32.mrb[0].mxu0
    %5939 = vdwg.mxu0
    %v5940 = vld [vmem:[%s6] sm:$0x1]
    %v5942 = vlaneseq
    %v5943 = vshrl.u32 %v5942, 7
    %v5944 = vsub.s32 0, %v5943
    %v5945 = vrot.slane %v5940, %v5944
    %v5947 = vadd.f32 %v5934, %v5945
    %v5948 = vadd.f32 %v5937, %v5945
    %vm5949 = vcmask 64512
    %5950 = vst.msk [vmem:[%s7] sm:$0xff] %vm5949, %v5947
    %5951 = vst.msk [vmem:[%s7 + $0x8] sm:$0xff] %vm5949, %v5948
    // Predicated region
    $region42: #{tpu_custom_call.1} parent=1 // pred_check
      _
    $region43: #{tpu_custom_call.1} parent=1 // pred_check_branch
      %5953 = sbr.rel (0) target = $region45
    $region44: #{tpu_custom_call.1} parent=1 // pred_region
      _
    $region45: #{tpu_custom_call.1} parent=1 // pred_fallthru
      _
    // Predicated region
    $region46: #{tpu_custom_call.1} parent=1 // pred_check
      _
    $region47: #{tpu_custom_call.1} parent=1 // pred_check_branch
      %5955 = sbr.rel (0) target = $region49
    $region48: #{tpu_custom_call.1} parent=1 // pred_region
      _
    $region49: #{tpu_custom_call.1} parent=1 // pred_fallthru
      _
    %5956 = vsyncpa [#allocation3], 1
    %5957 = vsyncpa [#allocation5], 1

</llo_original>
